<compile_context>
chip_gen: v7x
topology: tpu7x:2x2x1
jax: 0.10.0
libtpu: 0.0.40
codegen_flags: <defaults>
</compile_context>

<pallas_src>
import math
import functools

import jax
import jax.numpy as jnp
from jax import lax
from jax.experimental import pallas as pl
from jax.experimental.pallas import tpu as pltpu

LN_EPS = 1e-5


# ----------------------------- small math helpers ---------------------------

def _layernorm(x, gamma, beta):
    mu = jnp.mean(x, axis=-1, keepdims=True)
    var = jnp.mean((x - mu) ** 2, axis=-1, keepdims=True)
    return (x - mu) * lax.rsqrt(var + LN_EPS) * gamma + beta


_ERF_P = 0.3275911
_ERF_A = (0.254829592, -0.284496736, 1.421413741, -1.453152027, 1.061405429)


def _erf_poly(x):
    # Abramowitz & Stegun 7.1.26, |err| <= 1.5e-7: keeps nn.GELU()'s exact-erf
    # semantics using only exp/mul/add/select (no lax.erf lowering required).
    a1, a2, a3, a4, a5 = _ERF_A
    ax = jnp.abs(x)
    t = 1.0 / (1.0 + _ERF_P * ax)
    poly = t * (a1 + t * (a2 + t * (a3 + t * (a4 + t * a5))))
    e = 1.0 - poly * jnp.exp(-ax * ax)
    return jnp.where(x >= 0, e, -e)


def _gelu_exact(x):
    return 0.5 * x * (1.0 + _erf_poly(x * (1.0 / math.sqrt(2.0))))


def _rotate_half(x):
    # torch: cat((-x2, x1), -1); pure slice+concat (safe Mosaic lowering).
    d = x.shape[-1]
    return jnp.concatenate([-x[..., d // 2:], x[..., :d // 2]], axis=-1)


# ------------------------------- block math ---------------------------------

def _block_math(x, p, n_head, recip):
    """Shared math for the kernel (recip = EUP reciprocal) and the reference.

    x: (T, C) f32.  Weights in `p` are bf16, biases/LN/tables f32, Q scale and
    the causal bias are pre-folded on the host.
    """
    T, C = x.shape
    H = n_head
    D = C // H
    bf16 = jnp.bfloat16
    f32 = jnp.float32

    # ---- LayerNorm 1 + single fused QKV projection (wide N = 3C) -----------
    h1 = _layernorm(x, p['ln1_g'], p['ln1_b'])                       # (T, C) f32
    qkv = jnp.dot(h1.astype(bf16), p['wqkv'],
                  preferred_element_type=f32) + p['bqkv']            # (T, 3C)

    # ---- per-head views via static lane slices + leading-axis stack --------
    def heads(base):
        return jnp.stack(
            [qkv[:, base + h * D: base + (h + 1) * D] for h in range(H)],
            axis=0)                                                  # (H, T, D)
    q = heads(0)
    k = heads(C)
    v = heads(2 * C)

    # ---- RoPE (1/sqrt(D) already folded into the Q weights/bias) -----------
    cos = p['cos']                                                   # (T, D)
    sin = p['sin']                                                   # (T, D)
    qr = q * cos + _rotate_half(q) * sin
    kr = k * cos + _rotate_half(k) * sin

    # ---- causal attention, heads batched; additive mask precomputed --------
    s = jnp.einsum('htd,hsd->hts', qr.astype(bf16), kr.astype(bf16),
                   preferred_element_type=f32) + p['mask']           # (H, T, T)
    m = jnp.max(s, axis=-1, keepdims=True)
    e = jnp.exp(s - m)
    l = jnp.sum(e, axis=-1, keepdims=True)
    att = e * recip(l)                                               # softmax
    y = jnp.einsum('hts,hsd->htd', att.astype(bf16), v.astype(bf16),
                   preferred_element_type=f32)                       # (H, T, D)

    # ---- merge heads along lanes, single output projection (K = C) ---------
    y_cat = jnp.concatenate([y[h] for h in range(H)], axis=-1)       # (T, C)
    x1 = x + jnp.dot(y_cat.astype(bf16), p['wo'],
                     preferred_element_type=f32) + p['bo']           # residual 1

    # ---- LayerNorm 2 + MLP (exact-erf GELU), dropout = 0 --------------------
    h2 = _layernorm(x1, p['ln2_g'], p['ln2_b'])
    f = jnp.dot(h2.astype(bf16), p['wfc'],
                preferred_element_type=f32) + p['bfc']               # (T, 4C)
    g = _gelu_exact(f)
    mo = jnp.dot(g.astype(bf16), p['wpr'],
                 preferred_element_type=f32) + p['bpr']              # (T, C)
    return x1 + mo                                                   # residual 2


# --------------------------------- kernel -----------------------------------

def block_kernel(x_ref,
                 ln1g_ref, ln1b_ref,
                 wqkv_ref, bqkv_ref, wo_ref, bo_ref,
                 ln2g_ref, ln2b_ref,
                 wfc_ref, bfc_ref, wpr_ref, bpr_ref,
                 cos_ref, sin_ref, mask_ref,
                 o_ref, *, n_head):
    p = dict(ln1_g=ln1g_ref[...], ln1_b=ln1b_ref[...],
             wqkv=wqkv_ref[...], bqkv=bqkv_ref[...],
             wo=wo_ref[...], bo=bo_ref[...],
             ln2_g=ln2g_ref[...], ln2_b=ln2b_ref[...],
             wfc=wfc_ref[...], bfc=bfc_ref[...],
             wpr=wpr_ref[...], bpr=bpr_ref[...],
             cos=cos_ref[...], sin=sin_ref[...], mask=mask_ref[...])
    out = _block_math(x_ref[0], p, n_head,
                      recip=lambda val: pl.reciprocal(val, approx=True))
    o_ref[0] = out.astype(o_ref.dtype)


# ------------------------------ host-side prep ------------------------------

def make_rotary_tables(T, D):
    inv_freq = 1.0 / (10000.0 ** (jnp.arange(0, D, 2, dtype=jnp.float32) / D))
    t = jnp.arange(T, dtype=jnp.float32)
    freqs = jnp.einsum('i,j->ij', t, inv_freq)                # (T, D/2)
    emb = jnp.concatenate([freqs, freqs], axis=-1)            # (T, D)
    return jnp.cos(emb), jnp.sin(emb)


def make_causal_bias(T):
    idx = jnp.arange(T)
    return jnp.where(idx[:, None] >= idx[None, :], 0.0, -1e30).astype(jnp.float32)


def prepare_params(params, n_head, T):
    """Host prep: fuse QKV to (C,3C), fold 1/sqrt(D) into Q, bf16 weights."""
    C = params['wq'].shape[0]
    D = C // n_head
    scale = 1.0 / math.sqrt(D)

    wqkv = jnp.concatenate(
        [params['wq'] * scale, params['wk'], params['wv']],
        axis=1).astype(jnp.bfloat16)                                  # (C, 3C)
    bqkv = jnp.concatenate(
        [params['bq'] * scale, params['bk'], params['bv']],
        axis=1).astype(jnp.float32)                                   # (1, 3C)

    cos, sin = make_rotary_tables(T, D)                               # (T, D)

    return dict(
        ln1_g=params['ln1_g'], ln1_b=params['ln1_b'],
        wqkv=wqkv, bqkv=bqkv,
        wo=params['wo'].astype(jnp.bfloat16), bo=params['bo'],
        ln2_g=params['ln2_g'], ln2_b=params['ln2_b'],
        wfc=params['wfc'].astype(jnp.bfloat16), bfc=params['bfc'],
        wpr=params['wpr'].astype(jnp.bfloat16), bpr=params['bpr'],
        cos=cos, sin=sin, mask=make_causal_bias(T))


# ------------------------------ pallas wrapper -------------------------------

def _vmem_limit_bytes():
    cap = 64 * 1024 * 1024          # conservative fallback (v7x physical VMEM)
    try:
        cap = int(pltpu.get_tpu_info().vmem_capacity_bytes)
    except Exception:
        pass
    limit = cap * 3 // 4            # leave headroom; raise cap on 128-MiB parts
    return int(min(max(limit, 32 * 1024 * 1024), 100 * 1024 * 1024))


def _block_forward_impl(x, prep, n_head, *, single_buffer_weights):
    B, T, C = x.shape
    D = C // n_head

    def const(shape):
        nd = len(shape)
        kwargs = {}
        if single_buffer_weights:
            # Weights never change across the grid -> single buffer saves VMEM.
            kwargs["pipeline_mode"] = pl.Buffered(1)
        return pl.BlockSpec(shape, lambda b, nd=nd: (0,) * nd, **kwargs)

    in_specs = [
        pl.BlockSpec((1, T, C), lambda b: (b, 0, 0)),   # x
        const((1, C)), const((1, C)),                   # ln1 gamma/beta
        const((C, 3 * C)), const((1, 3 * C)),           # wqkv, bqkv
        const((C, C)), const((1, C)),                   # wo, bo
        const((1, C)), const((1, C)),                   # ln2 gamma/beta
        const((C, 4 * C)), const((1, 4 * C)),           # w_fc, b_fc
        const((4 * C, C)), const((1, C)),               # w_proj, b_proj
        const((T, D)), const((T, D)),                   # cos, sin
        const((T, T)),                                  # additive causal bias
    ]

    kernel = functools.partial(block_kernel, n_head=n_head)
    return pl.pallas_call(
        kernel,
        out_shape=jax.ShapeDtypeStruct((B, T, C), x.dtype),
        grid_spec=pltpu.PrefetchScalarGridSpec(
            num_scalar_prefetch=0,
            grid=(B,),                                  # extent 2 -> both v7x TCs
            in_specs=in_specs,
            out_specs=pl.BlockSpec((1, T, C), lambda b: (b, 0, 0)),
        ),
        compiler_params=pltpu.CompilerParams(
            dimension_semantics=("parallel",),
            vmem_limit_bytes=_vmem_limit_bytes()),
    )(x,
      prep['ln1_g'], prep['ln1_b'],
      prep['wqkv'], prep['bqkv'], prep['wo'], prep['bo'],
      prep['ln2_g'], prep['ln2_b'],
      prep['wfc'], prep['bfc'], prep['wpr'], prep['bpr'],
      prep['cos'], prep['sin'], prep['mask'])


def block_forward(x, prep, n_head):
    # Prefer single-buffered constant weights; fall back to default buffering
    # if this Pallas build rejects pipeline_mode=pl.Buffered(1).
    try:
        out = _block_forward_impl(x, prep, n_head, single_buffer_weights=True)
        return jax.block_until_ready(out)
    except Exception:
        return _block_forward_impl(x, prep, n_head, single_buffer_weights=False)


def block_forward_ref(x, prep, n_head):
    """Pure-JAX reference mirroring the kernel math (same bf16 casts)."""
    recip = lambda val: 1.0 / val
    return jax.vmap(lambda xb: _block_math(xb, prep, n_head, recip=recip))(x)


# --------------------------------- params -----------------------------------

def init_params(key, C):
    ks = jax.random.split(key, 8)
    std = 0.02
    return {
        'ln1_g': jnp.ones((1, C), jnp.float32),
        'ln1_b': jnp.zeros((1, C), jnp.float32),
        'ln2_g': jnp.ones((1, C), jnp.float32),
        'ln2_b': jnp.zeros((1, C), jnp.float32),
        'wq': std * jax.random.normal(ks[0], (C, C), jnp.float32),
        'wk': std * jax.random.normal(ks[1], (C, C), jnp.float32),
        'wv': std * jax.random.normal(ks[2], (C, C), jnp.float32),
        'wo': std * jax.random.normal(ks[3], (C, C), jnp.float32),
        'bq': std * jax.random.normal(ks[4], (1, C), jnp.float32),
        'bk': std * jax.random.normal(ks[5], (1, C), jnp.float32),
        'bv': std * jax.random.normal(ks[6], (1, C), jnp.float32),
        'bo': jnp.zeros((1, C), jnp.float32),
        'wfc': std * jax.random.normal(ks[7], (C, 4 * C), jnp.float32),
        'bfc': jnp.zeros((1, 4 * C), jnp.float32),
        'wpr': std * jax.random.normal(jax.random.fold_in(key, 99), (4 * C, C), jnp.float32),
        'bpr': jnp.zeros((1, C), jnp.float32),
    }


if __name__ == "__main__":
    # Config: n_embd=32, n_head=4, bias=True, dropout=0, use_rotary=True
    B, T, C, n_head = 2, 8, 32, 4

    key = jax.random.PRNGKey(0)
    kx, kp = jax.random.split(key)
    x = jax.random.normal(kx, (B, T, C), jnp.float32)
    params = init_params(kp, C)
    prep = prepare_params(params, n_head, T)

    out = jax.block_until_ready(block_forward(x, prep, n_head))
    ref = jax.block_until_ready(block_forward_ref(x, prep, n_head))

    assert out.shape == (B, T, C)
    err = float(jnp.max(jnp.abs(out - ref)))
    assert jnp.allclose(out, ref, atol=2e-3, rtol=2e-3), f"max err {err}"

    print("KERNEL_OK")
</pallas_src>

<mosaic_0001>
module attributes {stable_mosaic.version = 11 : i64} {
  func.func @block_kernel(%arg0: i32, %arg1: memref<1x8x32xf32, #tpu.memory_space<vmem>>, %arg2: memref<1x32xf32, #tpu.memory_space<vmem>>, %arg3: memref<1x32xf32, #tpu.memory_space<vmem>>, %arg4: memref<32x96xbf16, #tpu.memory_space<vmem>>, %arg5: memref<1x96xf32, #tpu.memory_space<vmem>>, %arg6: memref<32x32xbf16, #tpu.memory_space<vmem>>, %arg7: memref<1x32xf32, #tpu.memory_space<vmem>>, %arg8: memref<1x32xf32, #tpu.memory_space<vmem>>, %arg9: memref<1x32xf32, #tpu.memory_space<vmem>>, %arg10: memref<32x128xbf16, #tpu.memory_space<vmem>>, %arg11: memref<1x128xf32, #tpu.memory_space<vmem>>, %arg12: memref<128x32xbf16, #tpu.memory_space<vmem>>, %arg13: memref<1x32xf32, #tpu.memory_space<vmem>>, %arg14: memref<8x8xf32, #tpu.memory_space<vmem>>, %arg15: memref<8x8xf32, #tpu.memory_space<vmem>>, %arg16: memref<8x8xf32, #tpu.memory_space<vmem>>, %arg17: memref<1x8x32xf32, #tpu.memory_space<vmem>>) attributes {dimension_semantics = [#tpu.dimension_semantics<parallel>], iteration_bounds = array<i64: 2>, scalar_prefetch = 0 : i64, scratch_operands = 0 : i64, tpu.core_type = #tpu.core_type<tc>, window_params = [{transform_indices = @transform_0, window_bounds = array<i64: 1, 8, 32>}, {pipeline_mode = #tpu.pipeline_mode<synchronous>, transform_indices = @transform_1, window_bounds = array<i64: 1, 32>}, {pipeline_mode = #tpu.pipeline_mode<synchronous>, transform_indices = @transform_2, window_bounds = array<i64: 1, 32>}, {pipeline_mode = #tpu.pipeline_mode<synchronous>, transform_indices = @transform_3, window_bounds = array<i64: 32, 96>}, {pipeline_mode = #tpu.pipeline_mode<synchronous>, transform_indices = @transform_4, window_bounds = array<i64: 1, 96>}, {pipeline_mode = #tpu.pipeline_mode<synchronous>, transform_indices = @transform_5, window_bounds = array<i64: 32, 32>}, {pipeline_mode = #tpu.pipeline_mode<synchronous>, transform_indices = @transform_6, window_bounds = array<i64: 1, 32>}, {pipeline_mode = #tpu.pipeline_mode<synchronous>, transform_indices = @transform_7, window_bounds = array<i64: 1, 32>}, {pipeline_mode = #tpu.pipeline_mode<synchronous>, transform_indices = @transform_8, window_bounds = array<i64: 1, 32>}, {pipeline_mode = #tpu.pipeline_mode<synchronous>, transform_indices = @transform_9, window_bounds = array<i64: 32, 128>}, {pipeline_mode = #tpu.pipeline_mode<synchronous>, transform_indices = @transform_10, window_bounds = array<i64: 1, 128>}, {pipeline_mode = #tpu.pipeline_mode<synchronous>, transform_indices = @transform_11, window_bounds = array<i64: 128, 32>}, {pipeline_mode = #tpu.pipeline_mode<synchronous>, transform_indices = @transform_12, window_bounds = array<i64: 1, 32>}, {pipeline_mode = #tpu.pipeline_mode<synchronous>, transform_indices = @transform_13, window_bounds = array<i64: 8, 8>}, {pipeline_mode = #tpu.pipeline_mode<synchronous>, transform_indices = @transform_14, window_bounds = array<i64: 8, 8>}, {pipeline_mode = #tpu.pipeline_mode<synchronous>, transform_indices = @transform_15, window_bounds = array<i64: 8, 8>}, {transform_indices = @transform_16, window_bounds = array<i64: 1, 8, 32>}]} {
    %c0 = arith.constant 0 : index
    %c0_0 = arith.constant 0 : index
    %0 = vector.load %arg2[%c0, %c0_0] : memref<1x32xf32, #tpu.memory_space<vmem>>, vector<1x32xf32>
    %c0_1 = arith.constant 0 : index
    %c0_2 = arith.constant 0 : index
    %1 = vector.load %arg3[%c0_1, %c0_2] : memref<1x32xf32, #tpu.memory_space<vmem>>, vector<1x32xf32>
    %c0_3 = arith.constant 0 : index
    %c0_4 = arith.constant 0 : index
    %2 = vector.load %arg4[%c0_3, %c0_4] : memref<32x96xbf16, #tpu.memory_space<vmem>>, vector<32x96xbf16>
    %c0_5 = arith.constant 0 : index
    %c0_6 = arith.constant 0 : index
    %3 = vector.load %arg5[%c0_5, %c0_6] : memref<1x96xf32, #tpu.memory_space<vmem>>, vector<1x96xf32>
    %c0_7 = arith.constant 0 : index
    %c0_8 = arith.constant 0 : index
    %4 = vector.load %arg6[%c0_7, %c0_8] : memref<32x32xbf16, #tpu.memory_space<vmem>>, vector<32x32xbf16>
    %c0_9 = arith.constant 0 : index
    %c0_10 = arith.constant 0 : index
    %5 = vector.load %arg7[%c0_9, %c0_10] : memref<1x32xf32, #tpu.memory_space<vmem>>, vector<1x32xf32>
    %c0_11 = arith.constant 0 : index
    %c0_12 = arith.constant 0 : index
    %6 = vector.load %arg8[%c0_11, %c0_12] : memref<1x32xf32, #tpu.memory_space<vmem>>, vector<1x32xf32>
    %c0_13 = arith.constant 0 : index
    %c0_14 = arith.constant 0 : index
    %7 = vector.load %arg9[%c0_13, %c0_14] : memref<1x32xf32, #tpu.memory_space<vmem>>, vector<1x32xf32>
    %c0_15 = arith.constant 0 : index
    %c0_16 = arith.constant 0 : index
    %8 = vector.load %arg10[%c0_15, %c0_16] : memref<32x128xbf16, #tpu.memory_space<vmem>>, vector<32x128xbf16>
    %c0_17 = arith.constant 0 : index
    %c0_18 = arith.constant 0 : index
    %9 = vector.load %arg11[%c0_17, %c0_18] : memref<1x128xf32, #tpu.memory_space<vmem>>, vector<1x128xf32>
    %c0_19 = arith.constant 0 : index
    %c0_20 = arith.constant 0 : index
    %10 = vector.load %arg12[%c0_19, %c0_20] : memref<128x32xbf16, #tpu.memory_space<vmem>>, vector<128x32xbf16>
    %c0_21 = arith.constant 0 : index
    %c0_22 = arith.constant 0 : index
    %11 = vector.load %arg13[%c0_21, %c0_22] : memref<1x32xf32, #tpu.memory_space<vmem>>, vector<1x32xf32>
    %c0_23 = arith.constant 0 : index
    %c0_24 = arith.constant 0 : index
    %12 = vector.load %arg14[%c0_23, %c0_24] : memref<8x8xf32, #tpu.memory_space<vmem>>, vector<8x8xf32>
    %c0_25 = arith.constant 0 : index
    %c0_26 = arith.constant 0 : index
    %13 = vector.load %arg15[%c0_25, %c0_26] : memref<8x8xf32, #tpu.memory_space<vmem>>, vector<8x8xf32>
    %c0_27 = arith.constant 0 : index
    %c0_28 = arith.constant 0 : index
    %14 = vector.load %arg16[%c0_27, %c0_28] : memref<8x8xf32, #tpu.memory_space<vmem>>, vector<8x8xf32>
    %c0_29 = arith.constant 0 : index
    %c0_30 = arith.constant 0 : index
    %c0_31 = arith.constant 0 : index
    %15 = vector.load %arg1[%c0_29, %c0_30, %c0_31] : memref<1x8x32xf32, #tpu.memory_space<vmem>>, vector<1x8x32xf32>
    %16 = vector.shape_cast %15 : vector<1x8x32xf32> to vector<8x32xf32>
    %cst = arith.constant dense<0.000000e+00> : vector<8xf32>
    %17 = vector.multi_reduction <add>, %16, %cst [1] : vector<8x32xf32> to vector<8xf32>
    %18 = vector.shape_cast %17 : vector<8xf32> to vector<8x1xf32>
    %cst_32 = arith.constant 3.200000e+01 : f32
    %19 = vector.broadcast %cst_32 : f32 to vector<8x1xf32>
    %20 = arith.divf %18, %19 : vector<8x1xf32>
    %21 = vector.broadcast %20 : vector<8x1xf32> to vector<8x32xf32>
    %22 = arith.subf %16, %21 : vector<8x32xf32>
    %23 = arith.mulf %22, %22 : vector<8x32xf32>
    %cst_33 = arith.constant dense<0.000000e+00> : vector<8xf32>
    %24 = vector.multi_reduction <add>, %23, %cst_33 [1] : vector<8x32xf32> to vector<8xf32>
    %25 = vector.shape_cast %24 : vector<8xf32> to vector<8x1xf32>
    %cst_34 = arith.constant 3.200000e+01 : f32
    %26 = vector.broadcast %cst_34 : f32 to vector<8x1xf32>
    %27 = arith.divf %25, %26 : vector<8x1xf32>
    %28 = vector.broadcast %20 : vector<8x1xf32> to vector<8x32xf32>
    %29 = arith.subf %16, %28 : vector<8x32xf32>
    %cst_35 = arith.constant 9.99999974E-6 : f32
    %30 = vector.broadcast %cst_35 : f32 to vector<8x1xf32>
    %31 = arith.addf %27, %30 : vector<8x1xf32>
    %32 = math.rsqrt %31 : vector<8x1xf32>
    %33 = vector.broadcast %32 : vector<8x1xf32> to vector<8x32xf32>
    %34 = arith.mulf %29, %33 : vector<8x32xf32>
    %35 = vector.broadcast %0 : vector<1x32xf32> to vector<8x32xf32>
    %36 = arith.mulf %34, %35 : vector<8x32xf32>
    %37 = vector.broadcast %1 : vector<1x32xf32> to vector<8x32xf32>
    %38 = arith.addf %36, %37 : vector<8x32xf32>
    %39 = arith.truncf %38 : vector<8x32xf32> to vector<8x32xbf16>
    %cst_36 = arith.constant dense<0.000000e+00> : vector<8x96xf32>
    %40 = tpu.matmul %39, %2, %cst_36 {dimension_numbers = #tpu.dot_dimension_numbers<[1], [0], [0], [1], [0, 0, 1, 1], [], []>} : vector<8x32xbf16>, vector<32x96xbf16>, vector<8x96xf32> -> vector<8x96xf32>
    %41 = vector.broadcast %3 : vector<1x96xf32> to vector<8x96xf32>
    %42 = arith.addf %40, %41 : vector<8x96xf32>
    %43 = vector.extract_strided_slice %42 {offsets = [0, 0], sizes = [8, 8], strides = [1, 1]} : vector<8x96xf32> to vector<8x8xf32>
    %44 = vector.extract_strided_slice %42 {offsets = [0, 8], sizes = [8, 8], strides = [1, 1]} : vector<8x96xf32> to vector<8x8xf32>
    %45 = vector.extract_strided_slice %42 {offsets = [0, 16], sizes = [8, 8], strides = [1, 1]} : vector<8x96xf32> to vector<8x8xf32>
    %46 = vector.extract_strided_slice %42 {offsets = [0, 24], sizes = [8, 8], strides = [1, 1]} : vector<8x96xf32> to vector<8x8xf32>
    %47 = vector.shape_cast %43 : vector<8x8xf32> to vector<1x8x8xf32>
    %48 = vector.shape_cast %44 : vector<8x8xf32> to vector<1x8x8xf32>
    %49 = vector.shape_cast %45 : vector<8x8xf32> to vector<1x8x8xf32>
    %50 = vector.shape_cast %46 : vector<8x8xf32> to vector<1x8x8xf32>
    %51 = tpu.concatenate %47, %48, %49, %50 in 0 : vector<1x8x8xf32>, vector<1x8x8xf32>, vector<1x8x8xf32>, vector<1x8x8xf32> -> vector<4x8x8xf32>
    %52 = vector.extract_strided_slice %42 {offsets = [0, 32], sizes = [8, 8], strides = [1, 1]} : vector<8x96xf32> to vector<8x8xf32>
    %53 = vector.extract_strided_slice %42 {offsets = [0, 40], sizes = [8, 8], strides = [1, 1]} : vector<8x96xf32> to vector<8x8xf32>
    %54 = vector.extract_strided_slice %42 {offsets = [0, 48], sizes = [8, 8], strides = [1, 1]} : vector<8x96xf32> to vector<8x8xf32>
    %55 = vector.extract_strided_slice %42 {offsets = [0, 56], sizes = [8, 8], strides = [1, 1]} : vector<8x96xf32> to vector<8x8xf32>
    %56 = vector.shape_cast %52 : vector<8x8xf32> to vector<1x8x8xf32>
    %57 = vector.shape_cast %53 : vector<8x8xf32> to vector<1x8x8xf32>
    %58 = vector.shape_cast %54 : vector<8x8xf32> to vector<1x8x8xf32>
    %59 = vector.shape_cast %55 : vector<8x8xf32> to vector<1x8x8xf32>
    %60 = tpu.concatenate %56, %57, %58, %59 in 0 : vector<1x8x8xf32>, vector<1x8x8xf32>, vector<1x8x8xf32>, vector<1x8x8xf32> -> vector<4x8x8xf32>
    %61 = vector.extract_strided_slice %42 {offsets = [0, 64], sizes = [8, 8], strides = [1, 1]} : vector<8x96xf32> to vector<8x8xf32>
    %62 = vector.extract_strided_slice %42 {offsets = [0, 72], sizes = [8, 8], strides = [1, 1]} : vector<8x96xf32> to vector<8x8xf32>
    %63 = vector.extract_strided_slice %42 {offsets = [0, 80], sizes = [8, 8], strides = [1, 1]} : vector<8x96xf32> to vector<8x8xf32>
    %64 = vector.extract_strided_slice %42 {offsets = [0, 88], sizes = [8, 8], strides = [1, 1]} : vector<8x96xf32> to vector<8x8xf32>
    %65 = vector.shape_cast %61 : vector<8x8xf32> to vector<1x8x8xf32>
    %66 = vector.shape_cast %62 : vector<8x8xf32> to vector<1x8x8xf32>
    %67 = vector.shape_cast %63 : vector<8x8xf32> to vector<1x8x8xf32>
    %68 = vector.shape_cast %64 : vector<8x8xf32> to vector<1x8x8xf32>
    %69 = tpu.concatenate %65, %66, %67, %68 in 0 : vector<1x8x8xf32>, vector<1x8x8xf32>, vector<1x8x8xf32>, vector<1x8x8xf32> -> vector<4x8x8xf32>
    %70 = vector.shape_cast %12 : vector<8x8xf32> to vector<1x8x8xf32>
    %71 = vector.broadcast %70 : vector<1x8x8xf32> to vector<4x8x8xf32>
    %72 = arith.mulf %51, %71 : vector<4x8x8xf32>
    %73 = vector.extract_strided_slice %51 {offsets = [0, 0, 4], sizes = [4, 8, 4], strides = [1, 1, 1]} : vector<4x8x8xf32> to vector<4x8x4xf32>
    %cst_37 = arith.constant 0.000000e+00 : f32
    %74 = vector.broadcast %cst_37 : f32 to vector<4x8x4xf32>
    %75 = arith.subf %74, %73 : vector<4x8x4xf32>
    %76 = vector.extract_strided_slice %51 {offsets = [0, 0, 0], sizes = [4, 8, 4], strides = [1, 1, 1]} : vector<4x8x8xf32> to vector<4x8x4xf32>
    %77 = tpu.concatenate %75, %76 in 2 : vector<4x8x4xf32>, vector<4x8x4xf32> -> vector<4x8x8xf32>
    %78 = vector.shape_cast %13 : vector<8x8xf32> to vector<1x8x8xf32>
    %79 = vector.broadcast %78 : vector<1x8x8xf32> to vector<4x8x8xf32>
    %80 = arith.mulf %77, %79 : vector<4x8x8xf32>
    %81 = arith.addf %72, %80 : vector<4x8x8xf32>
    %82 = vector.shape_cast %12 : vector<8x8xf32> to vector<1x8x8xf32>
    %83 = vector.broadcast %82 : vector<1x8x8xf32> to vector<4x8x8xf32>
    %84 = arith.mulf %60, %83 : vector<4x8x8xf32>
    %85 = vector.extract_strided_slice %60 {offsets = [0, 0, 4], sizes = [4, 8, 4], strides = [1, 1, 1]} : vector<4x8x8xf32> to vector<4x8x4xf32>
    %cst_38 = arith.constant 0.000000e+00 : f32
    %86 = vector.broadcast %cst_38 : f32 to vector<4x8x4xf32>
    %87 = arith.subf %86, %85 : vector<4x8x4xf32>
    %88 = vector.extract_strided_slice %60 {offsets = [0, 0, 0], sizes = [4, 8, 4], strides = [1, 1, 1]} : vector<4x8x8xf32> to vector<4x8x4xf32>
    %89 = tpu.concatenate %87, %88 in 2 : vector<4x8x4xf32>, vector<4x8x4xf32> -> vector<4x8x8xf32>
    %90 = vector.shape_cast %13 : vector<8x8xf32> to vector<1x8x8xf32>
    %91 = vector.broadcast %90 : vector<1x8x8xf32> to vector<4x8x8xf32>
    %92 = arith.mulf %89, %91 : vector<4x8x8xf32>
    %93 = arith.addf %84, %92 : vector<4x8x8xf32>
    %94 = arith.truncf %81 : vector<4x8x8xf32> to vector<4x8x8xbf16>
    %95 = arith.truncf %93 : vector<4x8x8xf32> to vector<4x8x8xbf16>
    "tpu.trace_start"() <{level = 10 : i32, message = "htd,hsd->hts"}> : () -> ()
    %cst_39 = arith.constant dense<0.000000e+00> : vector<4x8x8xf32>
    %96 = tpu.matmul %94, %95, %cst_39 {dimension_numbers = #tpu.dot_dimension_numbers<[2], [2], [1], [1], [0, 0, 0, 1, 1, 1], [0], [0]>} : vector<4x8x8xbf16>, vector<4x8x8xbf16>, vector<4x8x8xf32> -> vector<4x8x8xf32>
    "tpu.trace_stop"() : () -> ()
    %97 = vector.shape_cast %14 : vector<8x8xf32> to vector<1x8x8xf32>
    %98 = vector.broadcast %97 : vector<1x8x8xf32> to vector<4x8x8xf32>
    %99 = arith.addf %96, %98 : vector<4x8x8xf32>
    %cst_40 = arith.constant dense<0xFF800000> : vector<4x8xf32>
    %100 = vector.multi_reduction <maximumf>, %99, %cst_40 [2] : vector<4x8x8xf32> to vector<4x8xf32>
    %101 = vector.shape_cast %100 : vector<4x8xf32> to vector<4x8x1xf32>
    %102 = vector.broadcast %101 : vector<4x8x1xf32> to vector<4x8x8xf32>
    %103 = arith.subf %99, %102 : vector<4x8x8xf32>
    %104 = math.exp %103 : vector<4x8x8xf32>
    %cst_41 = arith.constant dense<0.000000e+00> : vector<4x8xf32>
    %105 = vector.multi_reduction <add>, %104, %cst_41 [2] : vector<4x8x8xf32> to vector<4x8xf32>
    %106 = vector.shape_cast %105 : vector<4x8xf32> to vector<4x8x1xf32>
    %107 = tpu.reciprocal %106 {approx = true} : vector<4x8x1xf32> -> vector<4x8x1xf32>
    %108 = vector.broadcast %107 : vector<4x8x1xf32> to vector<4x8x8xf32>
    %109 = arith.mulf %104, %108 : vector<4x8x8xf32>
    %110 = arith.truncf %109 : vector<4x8x8xf32> to vector<4x8x8xbf16>
    %111 = arith.truncf %69 : vector<4x8x8xf32> to vector<4x8x8xbf16>
    "tpu.trace_start"() <{level = 10 : i32, message = "hts,hsd->htd"}> : () -> ()
    %cst_42 = arith.constant dense<0.000000e+00> : vector<4x8x8xf32>
    %112 = tpu.matmul %110, %111, %cst_42 {dimension_numbers = #tpu.dot_dimension_numbers<[2], [1], [1], [2], [0, 0, 0, 1, 1, 2], [0], [0]>} : vector<4x8x8xbf16>, vector<4x8x8xbf16>, vector<4x8x8xf32> -> vector<4x8x8xf32>
    "tpu.trace_stop"() : () -> ()
    %113 = vector.extract_strided_slice %112 {offsets = [0, 0, 0], sizes = [1, 8, 8], strides = [1, 1, 1]} : vector<4x8x8xf32> to vector<1x8x8xf32>
    %114 = vector.shape_cast %113 : vector<1x8x8xf32> to vector<8x8xf32>
    %115 = vector.extract_strided_slice %112 {offsets = [1, 0, 0], sizes = [1, 8, 8], strides = [1, 1, 1]} : vector<4x8x8xf32> to vector<1x8x8xf32>
    %116 = vector.shape_cast %115 : vector<1x8x8xf32> to vector<8x8xf32>
    %117 = vector.extract_strided_slice %112 {offsets = [2, 0, 0], sizes = [1, 8, 8], strides = [1, 1, 1]} : vector<4x8x8xf32> to vector<1x8x8xf32>
    %118 = vector.shape_cast %117 : vector<1x8x8xf32> to vector<8x8xf32>
    %119 = vector.extract_strided_slice %112 {offsets = [3, 0, 0], sizes = [1, 8, 8], strides = [1, 1, 1]} : vector<4x8x8xf32> to vector<1x8x8xf32>
    %120 = vector.shape_cast %119 : vector<1x8x8xf32> to vector<8x8xf32>
    %121 = tpu.concatenate %114, %116, %118, %120 in 1 : vector<8x8xf32>, vector<8x8xf32>, vector<8x8xf32>, vector<8x8xf32> -> vector<8x32xf32>
    %122 = arith.truncf %121 : vector<8x32xf32> to vector<8x32xbf16>
    %cst_43 = arith.constant dense<0.000000e+00> : vector<8x32xf32>
    %123 = tpu.matmul %122, %4, %cst_43 {dimension_numbers = #tpu.dot_dimension_numbers<[1], [0], [0], [1], [0, 0, 1, 1], [], []>} : vector<8x32xbf16>, vector<32x32xbf16>, vector<8x32xf32> -> vector<8x32xf32>
    %124 = arith.addf %16, %123 : vector<8x32xf32>
    %125 = vector.broadcast %5 : vector<1x32xf32> to vector<8x32xf32>
    %126 = arith.addf %124, %125 : vector<8x32xf32>
    %cst_44 = arith.constant dense<0.000000e+00> : vector<8xf32>
    %127 = vector.multi_reduction <add>, %126, %cst_44 [1] : vector<8x32xf32> to vector<8xf32>
    %128 = vector.shape_cast %127 : vector<8xf32> to vector<8x1xf32>
    %cst_45 = arith.constant 3.200000e+01 : f32
    %129 = vector.broadcast %cst_45 : f32 to vector<8x1xf32>
    %130 = arith.divf %128, %129 : vector<8x1xf32>
    %131 = vector.broadcast %130 : vector<8x1xf32> to vector<8x32xf32>
    %132 = arith.subf %126, %131 : vector<8x32xf32>
    %133 = arith.mulf %132, %132 : vector<8x32xf32>
    %cst_46 = arith.constant dense<0.000000e+00> : vector<8xf32>
    %134 = vector.multi_reduction <add>, %133, %cst_46 [1] : vector<8x32xf32> to vector<8xf32>
    %135 = vector.shape_cast %134 : vector<8xf32> to vector<8x1xf32>
    %cst_47 = arith.constant 3.200000e+01 : f32
    %136 = vector.broadcast %cst_47 : f32 to vector<8x1xf32>
    %137 = arith.divf %135, %136 : vector<8x1xf32>
    %138 = vector.broadcast %130 : vector<8x1xf32> to vector<8x32xf32>
    %139 = arith.subf %126, %138 : vector<8x32xf32>
    %cst_48 = arith.constant 9.99999974E-6 : f32
    %140 = vector.broadcast %cst_48 : f32 to vector<8x1xf32>
    %141 = arith.addf %137, %140 : vector<8x1xf32>
    %142 = math.rsqrt %141 : vector<8x1xf32>
    %143 = vector.broadcast %142 : vector<8x1xf32> to vector<8x32xf32>
    %144 = arith.mulf %139, %143 : vector<8x32xf32>
    %145 = vector.broadcast %6 : vector<1x32xf32> to vector<8x32xf32>
    %146 = arith.mulf %144, %145 : vector<8x32xf32>
    %147 = vector.broadcast %7 : vector<1x32xf32> to vector<8x32xf32>
    %148 = arith.addf %146, %147 : vector<8x32xf32>
    %149 = arith.truncf %148 : vector<8x32xf32> to vector<8x32xbf16>
    %cst_49 = arith.constant dense<0.000000e+00> : vector<8x128xf32>
    %150 = tpu.matmul %149, %8, %cst_49 {dimension_numbers = #tpu.dot_dimension_numbers<[1], [0], [0], [1], [0, 0, 1, 1], [], []>} : vector<8x32xbf16>, vector<32x128xbf16>, vector<8x128xf32> -> vector<8x128xf32>
    %151 = vector.broadcast %9 : vector<1x128xf32> to vector<8x128xf32>
    %152 = arith.addf %150, %151 : vector<8x128xf32>
    %cst_50 = arith.constant 5.000000e-01 : f32
    %153 = vector.broadcast %cst_50 : f32 to vector<8x128xf32>
    %154 = arith.mulf %153, %152 : vector<8x128xf32>
    %cst_51 = arith.constant 0.707106769 : f32
    %155 = vector.broadcast %cst_51 : f32 to vector<8x128xf32>
    %156 = arith.mulf %152, %155 : vector<8x128xf32>
    %157 = math.absf %156 : vector<8x128xf32>
    %cst_52 = arith.constant 0.327591091 : f32
    %158 = vector.broadcast %cst_52 : f32 to vector<8x128xf32>
    %159 = arith.mulf %158, %157 : vector<8x128xf32>
    %cst_53 = arith.constant 1.000000e+00 : f32
    %160 = vector.broadcast %cst_53 : f32 to vector<8x128xf32>
    %161 = arith.addf %160, %159 : vector<8x128xf32>
    %cst_54 = arith.constant 1.000000e+00 : f32
    %162 = vector.broadcast %cst_54 : f32 to vector<8x128xf32>
    %163 = arith.divf %162, %161 : vector<8x128xf32>
    %cst_55 = arith.constant 1.06140542 : f32
    %164 = vector.broadcast %cst_55 : f32 to vector<8x128xf32>
    %165 = arith.mulf %163, %164 : vector<8x128xf32>
    %cst_56 = arith.constant -1.45315206 : f32
    %166 = vector.broadcast %cst_56 : f32 to vector<8x128xf32>
    %167 = arith.addf %166, %165 : vector<8x128xf32>
    %168 = arith.mulf %163, %167 : vector<8x128xf32>
    %cst_57 = arith.constant 1.42141378 : f32
    %169 = vector.broadcast %cst_57 : f32 to vector<8x128xf32>
    %170 = arith.addf %169, %168 : vector<8x128xf32>
    %171 = arith.mulf %163, %170 : vector<8x128xf32>
    %cst_58 = arith.constant -0.284496725 : f32
    %172 = vector.broadcast %cst_58 : f32 to vector<8x128xf32>
    %173 = arith.addf %172, %171 : vector<8x128xf32>
    %174 = arith.mulf %163, %173 : vector<8x128xf32>
    %cst_59 = arith.constant 0.254829586 : f32
    %175 = vector.broadcast %cst_59 : f32 to vector<8x128xf32>
    %176 = arith.addf %175, %174 : vector<8x128xf32>
    %177 = arith.mulf %163, %176 : vector<8x128xf32>
    %cst_60 = arith.constant 0.000000e+00 : f32
    %178 = vector.broadcast %cst_60 : f32 to vector<8x128xf32>
    %179 = arith.subf %178, %157 : vector<8x128xf32>
    %180 = arith.mulf %179, %157 : vector<8x128xf32>
    %181 = math.exp %180 : vector<8x128xf32>
    %182 = arith.mulf %177, %181 : vector<8x128xf32>
    %cst_61 = arith.constant 1.000000e+00 : f32
    %183 = vector.broadcast %cst_61 : f32 to vector<8x128xf32>
    %184 = arith.subf %183, %182 : vector<8x128xf32>
    %cst_62 = arith.constant 0.000000e+00 : f32
    %185 = vector.broadcast %cst_62 : f32 to vector<8x128xf32>
    %186 = arith.cmpf oge, %156, %185 : vector<8x128xf32>
    %cst_63 = arith.constant 0.000000e+00 : f32
    %187 = vector.broadcast %cst_63 : f32 to vector<8x128xf32>
    %188 = arith.subf %187, %184 : vector<8x128xf32>
    %189 = arith.select %186, %184, %188 : vector<8x128xi1>, vector<8x128xf32>
    %cst_64 = arith.constant 1.000000e+00 : f32
    %190 = vector.broadcast %cst_64 : f32 to vector<8x128xf32>
    %191 = arith.addf %190, %189 : vector<8x128xf32>
    %192 = arith.mulf %154, %191 : vector<8x128xf32>
    %193 = arith.truncf %192 : vector<8x128xf32> to vector<8x128xbf16>
    %cst_65 = arith.constant dense<0.000000e+00> : vector<8x32xf32>
    %194 = tpu.matmul %193, %10, %cst_65 {dimension_numbers = #tpu.dot_dimension_numbers<[1], [0], [0], [1], [0, 0, 1, 1], [], []>} : vector<8x128xbf16>, vector<128x32xbf16>, vector<8x32xf32> -> vector<8x32xf32>
    %195 = vector.broadcast %11 : vector<1x32xf32> to vector<8x32xf32>
    %196 = arith.addf %194, %195 : vector<8x32xf32>
    %197 = arith.addf %126, %196 : vector<8x32xf32>
    %c0_66 = arith.constant 0 : index
    %c0_67 = arith.constant 0 : index
    %c0_68 = arith.constant 0 : index
    %198 = vector.load %arg17[%c0_66, %c0_67, %c0_68] : memref<1x8x32xf32, #tpu.memory_space<vmem>>, vector<1x8x32xf32>
    %199 = vector.shape_cast %198 : vector<1x8x32xf32> to vector<8x32xf32>
    %200 = vector.shape_cast %197 : vector<8x32xf32> to vector<1x8x32xf32>
    tpu.vector_store %arg17[%c0_66, %c0_67, %c0_68], %200 {strides = array<i32>} : memref<1x8x32xf32, #tpu.memory_space<vmem>>, vector<1x8x32xf32>,
    return
  }
  func.func @transform_0(%arg0: i32) -> (i32, i32, i32) {
    %c0_i32 = arith.constant 0 : i32
    %c0_i32_0 = arith.constant 0 : i32
    %c0_i32_1 = arith.constant 0 : i32
    return %arg0, %c0_i32, %c0_i32_0 : i32, i32, i32
  }
  func.func @transform_1(%arg0: i32) -> (i32, i32) {
    %c0_i32 = arith.constant 0 : i32
    %c0_i32_0 = arith.constant 0 : i32
    %c0_i32_1 = arith.constant 0 : i32
    return %c0_i32, %c0_i32_0 : i32, i32
  }
  func.func @transform_2(%arg0: i32) -> (i32, i32) {
    %c0_i32 = arith.constant 0 : i32
    %c0_i32_0 = arith.constant 0 : i32
    %c0_i32_1 = arith.constant 0 : i32
    return %c0_i32, %c0_i32_0 : i32, i32
  }
  func.func @transform_3(%arg0: i32) -> (i32, i32) {
    %c0_i32 = arith.constant 0 : i32
    %c0_i32_0 = arith.constant 0 : i32
    %c0_i32_1 = arith.constant 0 : i32
    return %c0_i32, %c0_i32_0 : i32, i32
  }
  func.func @transform_4(%arg0: i32) -> (i32, i32) {
    %c0_i32 = arith.constant 0 : i32
    %c0_i32_0 = arith.constant 0 : i32
    %c0_i32_1 = arith.constant 0 : i32
    return %c0_i32, %c0_i32_0 : i32, i32
  }
  func.func @transform_5(%arg0: i32) -> (i32, i32) {
    %c0_i32 = arith.constant 0 : i32
    %c0_i32_0 = arith.constant 0 : i32
    %c0_i32_1 = arith.constant 0 : i32
    return %c0_i32, %c0_i32_0 : i32, i32
  }
  func.func @transform_6(%arg0: i32) -> (i32, i32) {
    %c0_i32 = arith.constant 0 : i32
    %c0_i32_0 = arith.constant 0 : i32
    %c0_i32_1 = arith.constant 0 : i32
    return %c0_i32, %c0_i32_0 : i32, i32
  }
  func.func @transform_7(%arg0: i32) -> (i32, i32) {
    %c0_i32 = arith.constant 0 : i32
    %c0_i32_0 = arith.constant 0 : i32
    %c0_i32_1 = arith.constant 0 : i32
    return %c0_i32, %c0_i32_0 : i32, i32
  }
  func.func @transform_8(%arg0: i32) -> (i32, i32) {
    %c0_i32 = arith.constant 0 : i32
    %c0_i32_0 = arith.constant 0 : i32
    %c0_i32_1 = arith.constant 0 : i32
    return %c0_i32, %c0_i32_0 : i32, i32
  }
  func.func @transform_9(%arg0: i32) -> (i32, i32) {
    %c0_i32 = arith.constant 0 : i32
    %c0_i32_0 = arith.constant 0 : i32
    %c0_i32_1 = arith.constant 0 : i32
    return %c0_i32, %c0_i32_0 : i32, i32
  }
  func.func @transform_10(%arg0: i32) -> (i32, i32) {
    %c0_i32 = arith.constant 0 : i32
    %c0_i32_0 = arith.constant 0 : i32
    %c0_i32_1 = arith.constant 0 : i32
    return %c0_i32, %c0_i32_0 : i32, i32
  }
  func.func @transform_11(%arg0: i32) -> (i32, i32) {
    %c0_i32 = arith.constant 0 : i32
    %c0_i32_0 = arith.constant 0 : i32
    %c0_i32_1 = arith.constant 0 : i32
    return %c0_i32, %c0_i32_0 : i32, i32
  }
  func.func @transform_12(%arg0: i32) -> (i32, i32) {
    %c0_i32 = arith.constant 0 : i32
    %c0_i32_0 = arith.constant 0 : i32
    %c0_i32_1 = arith.constant 0 : i32
    return %c0_i32, %c0_i32_0 : i32, i32
  }
  func.func @transform_13(%arg0: i32) -> (i32, i32) {
    %c0_i32 = arith.constant 0 : i32
    %c0_i32_0 = arith.constant 0 : i32
    %c0_i32_1 = arith.constant 0 : i32
    return %c0_i32, %c0_i32_0 : i32, i32
  }
  func.func @transform_14(%arg0: i32) -> (i32, i32) {
    %c0_i32 = arith.constant 0 : i32
    %c0_i32_0 = arith.constant 0 : i32
    %c0_i32_1 = arith.constant 0 : i32
    return %c0_i32, %c0_i32_0 : i32, i32
  }
  func.func @transform_15(%arg0: i32) -> (i32, i32) {
    %c0_i32 = arith.constant 0 : i32
    %c0_i32_0 = arith.constant 0 : i32
    %c0_i32_1 = arith.constant 0 : i32
    return %c0_i32, %c0_i32_0 : i32, i32
  }
  func.func @transform_16(%arg0: i32) -> (i32, i32, i32) {
    %c0_i32 = arith.constant 0 : i32
    %c0_i32_0 = arith.constant 0 : i32
    %c0_i32_1 = arith.constant 0 : i32
    return %arg0, %c0_i32, %c0_i32_0 : i32, i32, i32
  }
}

module attributes {stable_mosaic.version = 11 : i64} {
  func.func @block_kernel(%arg0: i32, %arg1: memref<1x8x32xf32, #tpu.memory_space<vmem>>, %arg2: memref<1x32xf32, #tpu.memory_space<vmem>>, %arg3: memref<1x32xf32, #tpu.memory_space<vmem>>, %arg4: memref<32x96xbf16, #tpu.memory_space<vmem>>, %arg5: memref<1x96xf32, #tpu.memory_space<vmem>>, %arg6: memref<32x32xbf16, #tpu.memory_space<vmem>>, %arg7: memref<1x32xf32, #tpu.memory_space<vmem>>, %arg8: memref<1x32xf32, #tpu.memory_space<vmem>>, %arg9: memref<1x32xf32, #tpu.memory_space<vmem>>, %arg10: memref<32x128xbf16, #tpu.memory_space<vmem>>, %arg11: memref<1x128xf32, #tpu.memory_space<vmem>>, %arg12: memref<128x32xbf16, #tpu.memory_space<vmem>>, %arg13: memref<1x32xf32, #tpu.memory_space<vmem>>, %arg14: memref<8x8xf32, #tpu.memory_space<vmem>>, %arg15: memref<8x8xf32, #tpu.memory_space<vmem>>, %arg16: memref<8x8xf32, #tpu.memory_space<vmem>>, %arg17: memref<1x8x32xf32, #tpu.memory_space<vmem>>) attributes {dimension_semantics = [#tpu.dimension_semantics<parallel>], iteration_bounds = array<i64: 2>, scalar_prefetch = 0 : i64, scratch_operands = 0 : i64, tpu.core_type = #tpu.core_type<tc>, window_params = [{transform_indices = @transform_0, window_bounds = array<i64: 1, 8, 32>}, {pipeline_mode = #tpu.pipeline_mode<synchronous>, transform_indices = @transform_1, window_bounds = array<i64: 1, 32>}, {pipeline_mode = #tpu.pipeline_mode<synchronous>, transform_indices = @transform_2, window_bounds = array<i64: 1, 32>}, {pipeline_mode = #tpu.pipeline_mode<synchronous>, transform_indices = @transform_3, window_bounds = array<i64: 32, 96>}, {pipeline_mode = #tpu.pipeline_mode<synchronous>, transform_indices = @transform_4, window_bounds = array<i64: 1, 96>}, {pipeline_mode = #tpu.pipeline_mode<synchronous>, transform_indices = @transform_5, window_bounds = array<i64: 32, 32>}, {pipeline_mode = #tpu.pipeline_mode<synchronous>, transform_indices = @transform_6, window_bounds = array<i64: 1, 32>}, {pipeline_mode = #tpu.pipeline_mode<synchronous>, transform_indices = @transform_7, window_bounds = array<i64: 1, 32>}, {pipeline_mode = #tpu.pipeline_mode<synchronous>, transform_indices = @transform_8, window_bounds = array<i64: 1, 32>}, {pipeline_mode = #tpu.pipeline_mode<synchronous>, transform_indices = @transform_9, window_bounds = array<i64: 32, 128>}, {pipeline_mode = #tpu.pipeline_mode<synchronous>, transform_indices = @transform_10, window_bounds = array<i64: 1, 128>}, {pipeline_mode = #tpu.pipeline_mode<synchronous>, transform_indices = @transform_11, window_bounds = array<i64: 128, 32>}, {pipeline_mode = #tpu.pipeline_mode<synchronous>, transform_indices = @transform_12, window_bounds = array<i64: 1, 32>}, {pipeline_mode = #tpu.pipeline_mode<synchronous>, transform_indices = @transform_13, window_bounds = array<i64: 8, 8>}, {pipeline_mode = #tpu.pipeline_mode<synchronous>, transform_indices = @transform_14, window_bounds = array<i64: 8, 8>}, {pipeline_mode = #tpu.pipeline_mode<synchronous>, transform_indices = @transform_15, window_bounds = array<i64: 8, 8>}, {transform_indices = @transform_16, window_bounds = array<i64: 1, 8, 32>}]} {
    %c0 = arith.constant 0 : index
    %c0_0 = arith.constant 0 : index
    %0 = vector.load %arg2[%c0, %c0_0] : memref<1x32xf32, #tpu.memory_space<vmem>>, vector<1x32xf32>
    %c0_1 = arith.constant 0 : index
    %c0_2 = arith.constant 0 : index
    %1 = vector.load %arg3[%c0_1, %c0_2] : memref<1x32xf32, #tpu.memory_space<vmem>>, vector<1x32xf32>
    %c0_3 = arith.constant 0 : index
    %c0_4 = arith.constant 0 : index
    %2 = vector.load %arg4[%c0_3, %c0_4] : memref<32x96xbf16, #tpu.memory_space<vmem>>, vector<32x96xbf16>
    %c0_5 = arith.constant 0 : index
    %c0_6 = arith.constant 0 : index
    %3 = vector.load %arg5[%c0_5, %c0_6] : memref<1x96xf32, #tpu.memory_space<vmem>>, vector<1x96xf32>
    %c0_7 = arith.constant 0 : index
    %c0_8 = arith.constant 0 : index
    %4 = vector.load %arg6[%c0_7, %c0_8] : memref<32x32xbf16, #tpu.memory_space<vmem>>, vector<32x32xbf16>
    %c0_9 = arith.constant 0 : index
    %c0_10 = arith.constant 0 : index
    %5 = vector.load %arg7[%c0_9, %c0_10] : memref<1x32xf32, #tpu.memory_space<vmem>>, vector<1x32xf32>
    %c0_11 = arith.constant 0 : index
    %c0_12 = arith.constant 0 : index
    %6 = vector.load %arg8[%c0_11, %c0_12] : memref<1x32xf32, #tpu.memory_space<vmem>>, vector<1x32xf32>
    %c0_13 = arith.constant 0 : index
    %c0_14 = arith.constant 0 : index
    %7 = vector.load %arg9[%c0_13, %c0_14] : memref<1x32xf32, #tpu.memory_space<vmem>>, vector<1x32xf32>
    %c0_15 = arith.constant 0 : index
    %c0_16 = arith.constant 0 : index
    %8 = vector.load %arg10[%c0_15, %c0_16] : memref<32x128xbf16, #tpu.memory_space<vmem>>, vector<32x128xbf16>
    %c0_17 = arith.constant 0 : index
    %c0_18 = arith.constant 0 : index
    %9 = vector.load %arg11[%c0_17, %c0_18] : memref<1x128xf32, #tpu.memory_space<vmem>>, vector<1x128xf32>
    %c0_19 = arith.constant 0 : index
    %c0_20 = arith.constant 0 : index
    %10 = vector.load %arg12[%c0_19, %c0_20] : memref<128x32xbf16, #tpu.memory_space<vmem>>, vector<128x32xbf16>
    %c0_21 = arith.constant 0 : index
    %c0_22 = arith.constant 0 : index
    %11 = vector.load %arg13[%c0_21, %c0_22] : memref<1x32xf32, #tpu.memory_space<vmem>>, vector<1x32xf32>
    %c0_23 = arith.constant 0 : index
    %c0_24 = arith.constant 0 : index
    %12 = vector.load %arg14[%c0_23, %c0_24] : memref<8x8xf32, #tpu.memory_space<vmem>>, vector<8x8xf32>
    %c0_25 = arith.constant 0 : index
    %c0_26 = arith.constant 0 : index
    %13 = vector.load %arg15[%c0_25, %c0_26] : memref<8x8xf32, #tpu.memory_space<vmem>>, vector<8x8xf32>
    %c0_27 = arith.constant 0 : index
    %c0_28 = arith.constant 0 : index
    %14 = vector.load %arg16[%c0_27, %c0_28] : memref<8x8xf32, #tpu.memory_space<vmem>>, vector<8x8xf32>
    %c0_29 = arith.constant 0 : index
    %c0_30 = arith.constant 0 : index
    %c0_31 = arith.constant 0 : index
    %15 = vector.load %arg1[%c0_29, %c0_30, %c0_31] : memref<1x8x32xf32, #tpu.memory_space<vmem>>, vector<1x8x32xf32>
    %16 = vector.shape_cast %15 : vector<1x8x32xf32> to vector<8x32xf32>
    %cst = arith.constant dense<0.000000e+00> : vector<8xf32>
    %17 = vector.multi_reduction <add>, %16, %cst [1] : vector<8x32xf32> to vector<8xf32>
    %18 = vector.shape_cast %17 : vector<8xf32> to vector<8x1xf32>
    %cst_32 = arith.constant 3.200000e+01 : f32
    %19 = vector.broadcast %cst_32 : f32 to vector<8x1xf32>
    %20 = arith.divf %18, %19 : vector<8x1xf32>
    %21 = vector.broadcast %20 : vector<8x1xf32> to vector<8x32xf32>
    %22 = arith.subf %16, %21 : vector<8x32xf32>
    %23 = arith.mulf %22, %22 : vector<8x32xf32>
    %cst_33 = arith.constant dense<0.000000e+00> : vector<8xf32>
    %24 = vector.multi_reduction <add>, %23, %cst_33 [1] : vector<8x32xf32> to vector<8xf32>
    %25 = vector.shape_cast %24 : vector<8xf32> to vector<8x1xf32>
    %cst_34 = arith.constant 3.200000e+01 : f32
    %26 = vector.broadcast %cst_34 : f32 to vector<8x1xf32>
    %27 = arith.divf %25, %26 : vector<8x1xf32>
    %28 = vector.broadcast %20 : vector<8x1xf32> to vector<8x32xf32>
    %29 = arith.subf %16, %28 : vector<8x32xf32>
    %cst_35 = arith.constant 9.99999974E-6 : f32
    %30 = vector.broadcast %cst_35 : f32 to vector<8x1xf32>
    %31 = arith.addf %27, %30 : vector<8x1xf32>
    %32 = math.rsqrt %31 : vector<8x1xf32>
    %33 = vector.broadcast %32 : vector<8x1xf32> to vector<8x32xf32>
    %34 = arith.mulf %29, %33 : vector<8x32xf32>
    %35 = vector.broadcast %0 : vector<1x32xf32> to vector<8x32xf32>
    %36 = arith.mulf %34, %35 : vector<8x32xf32>
    %37 = vector.broadcast %1 : vector<1x32xf32> to vector<8x32xf32>
    %38 = arith.addf %36, %37 : vector<8x32xf32>
    %39 = arith.truncf %38 : vector<8x32xf32> to vector<8x32xbf16>
    %cst_36 = arith.constant dense<0.000000e+00> : vector<8x96xf32>
    %40 = tpu.matmul %39, %2, %cst_36 {dimension_numbers = #tpu.dot_dimension_numbers<[1], [0], [0], [1], [0, 0, 1, 1], [], []>} : vector<8x32xbf16>, vector<32x96xbf16>, vector<8x96xf32> -> vector<8x96xf32>
    %41 = vector.broadcast %3 : vector<1x96xf32> to vector<8x96xf32>
    %42 = arith.addf %40, %41 : vector<8x96xf32>
    %43 = vector.extract_strided_slice %42 {offsets = [0, 0], sizes = [8, 8], strides = [1, 1]} : vector<8x96xf32> to vector<8x8xf32>
    %44 = vector.extract_strided_slice %42 {offsets = [0, 8], sizes = [8, 8], strides = [1, 1]} : vector<8x96xf32> to vector<8x8xf32>
    %45 = vector.extract_strided_slice %42 {offsets = [0, 16], sizes = [8, 8], strides = [1, 1]} : vector<8x96xf32> to vector<8x8xf32>
    %46 = vector.extract_strided_slice %42 {offsets = [0, 24], sizes = [8, 8], strides = [1, 1]} : vector<8x96xf32> to vector<8x8xf32>
    %47 = vector.shape_cast %43 : vector<8x8xf32> to vector<1x8x8xf32>
    %48 = vector.shape_cast %44 : vector<8x8xf32> to vector<1x8x8xf32>
    %49 = vector.shape_cast %45 : vector<8x8xf32> to vector<1x8x8xf32>
    %50 = vector.shape_cast %46 : vector<8x8xf32> to vector<1x8x8xf32>
    %51 = tpu.concatenate %47, %48, %49, %50 in 0 : vector<1x8x8xf32>, vector<1x8x8xf32>, vector<1x8x8xf32>, vector<1x8x8xf32> -> vector<4x8x8xf32>
    %52 = vector.extract_strided_slice %42 {offsets = [0, 32], sizes = [8, 8], strides = [1, 1]} : vector<8x96xf32> to vector<8x8xf32>
    %53 = vector.extract_strided_slice %42 {offsets = [0, 40], sizes = [8, 8], strides = [1, 1]} : vector<8x96xf32> to vector<8x8xf32>
    %54 = vector.extract_strided_slice %42 {offsets = [0, 48], sizes = [8, 8], strides = [1, 1]} : vector<8x96xf32> to vector<8x8xf32>
    %55 = vector.extract_strided_slice %42 {offsets = [0, 56], sizes = [8, 8], strides = [1, 1]} : vector<8x96xf32> to vector<8x8xf32>
    %56 = vector.shape_cast %52 : vector<8x8xf32> to vector<1x8x8xf32>
    %57 = vector.shape_cast %53 : vector<8x8xf32> to vector<1x8x8xf32>
    %58 = vector.shape_cast %54 : vector<8x8xf32> to vector<1x8x8xf32>
    %59 = vector.shape_cast %55 : vector<8x8xf32> to vector<1x8x8xf32>
    %60 = tpu.concatenate %56, %57, %58, %59 in 0 : vector<1x8x8xf32>, vector<1x8x8xf32>, vector<1x8x8xf32>, vector<1x8x8xf32> -> vector<4x8x8xf32>
    %61 = vector.extract_strided_slice %42 {offsets = [0, 64], sizes = [8, 8], strides = [1, 1]} : vector<8x96xf32> to vector<8x8xf32>
    %62 = vector.extract_strided_slice %42 {offsets = [0, 72], sizes = [8, 8], strides = [1, 1]} : vector<8x96xf32> to vector<8x8xf32>
    %63 = vector.extract_strided_slice %42 {offsets = [0, 80], sizes = [8, 8], strides = [1, 1]} : vector<8x96xf32> to vector<8x8xf32>
    %64 = vector.extract_strided_slice %42 {offsets = [0, 88], sizes = [8, 8], strides = [1, 1]} : vector<8x96xf32> to vector<8x8xf32>
    %65 = vector.shape_cast %61 : vector<8x8xf32> to vector<1x8x8xf32>
    %66 = vector.shape_cast %62 : vector<8x8xf32> to vector<1x8x8xf32>
    %67 = vector.shape_cast %63 : vector<8x8xf32> to vector<1x8x8xf32>
    %68 = vector.shape_cast %64 : vector<8x8xf32> to vector<1x8x8xf32>
    %69 = tpu.concatenate %65, %66, %67, %68 in 0 : vector<1x8x8xf32>, vector<1x8x8xf32>, vector<1x8x8xf32>, vector<1x8x8xf32> -> vector<4x8x8xf32>
    %70 = vector.shape_cast %12 : vector<8x8xf32> to vector<1x8x8xf32>
    %71 = vector.broadcast %70 : vector<1x8x8xf32> to vector<4x8x8xf32>
    %72 = arith.mulf %51, %71 : vector<4x8x8xf32>
    %73 = vector.extract_strided_slice %51 {offsets = [0, 0, 4], sizes = [4, 8, 4], strides = [1, 1, 1]} : vector<4x8x8xf32> to vector<4x8x4xf32>
    %cst_37 = arith.constant 0.000000e+00 : f32
    %74 = vector.broadcast %cst_37 : f32 to vector<4x8x4xf32>
    %75 = arith.subf %74, %73 : vector<4x8x4xf32>
    %76 = vector.extract_strided_slice %51 {offsets = [0, 0, 0], sizes = [4, 8, 4], strides = [1, 1, 1]} : vector<4x8x8xf32> to vector<4x8x4xf32>
    %77 = tpu.concatenate %75, %76 in 2 : vector<4x8x4xf32>, vector<4x8x4xf32> -> vector<4x8x8xf32>
    %78 = vector.shape_cast %13 : vector<8x8xf32> to vector<1x8x8xf32>
    %79 = vector.broadcast %78 : vector<1x8x8xf32> to vector<4x8x8xf32>
    %80 = arith.mulf %77, %79 : vector<4x8x8xf32>
    %81 = arith.addf %72, %80 : vector<4x8x8xf32>
    %82 = vector.shape_cast %12 : vector<8x8xf32> to vector<1x8x8xf32>
    %83 = vector.broadcast %82 : vector<1x8x8xf32> to vector<4x8x8xf32>
    %84 = arith.mulf %60, %83 : vector<4x8x8xf32>
    %85 = vector.extract_strided_slice %60 {offsets = [0, 0, 4], sizes = [4, 8, 4], strides = [1, 1, 1]} : vector<4x8x8xf32> to vector<4x8x4xf32>
    %cst_38 = arith.constant 0.000000e+00 : f32
    %86 = vector.broadcast %cst_38 : f32 to vector<4x8x4xf32>
    %87 = arith.subf %86, %85 : vector<4x8x4xf32>
    %88 = vector.extract_strided_slice %60 {offsets = [0, 0, 0], sizes = [4, 8, 4], strides = [1, 1, 1]} : vector<4x8x8xf32> to vector<4x8x4xf32>
    %89 = tpu.concatenate %87, %88 in 2 : vector<4x8x4xf32>, vector<4x8x4xf32> -> vector<4x8x8xf32>
    %90 = vector.shape_cast %13 : vector<8x8xf32> to vector<1x8x8xf32>
    %91 = vector.broadcast %90 : vector<1x8x8xf32> to vector<4x8x8xf32>
    %92 = arith.mulf %89, %91 : vector<4x8x8xf32>
    %93 = arith.addf %84, %92 : vector<4x8x8xf32>
    %94 = arith.truncf %81 : vector<4x8x8xf32> to vector<4x8x8xbf16>
    %95 = arith.truncf %93 : vector<4x8x8xf32> to vector<4x8x8xbf16>
    "tpu.trace_start"() <{level = 10 : i32, message = "htd,hsd->hts"}> : () -> ()
    %cst_39 = arith.constant dense<0.000000e+00> : vector<4x8x8xf32>
    %96 = tpu.matmul %94, %95, %cst_39 {dimension_numbers = #tpu.dot_dimension_numbers<[2], [2], [1], [1], [0, 0, 0, 1, 1, 1], [0], [0]>} : vector<4x8x8xbf16>, vector<4x8x8xbf16>, vector<4x8x8xf32> -> vector<4x8x8xf32>
    "tpu.trace_stop"() : () -> ()
    %97 = vector.shape_cast %14 : vector<8x8xf32> to vector<1x8x8xf32>
    %98 = vector.broadcast %97 : vector<1x8x8xf32> to vector<4x8x8xf32>
    %99 = arith.addf %96, %98 : vector<4x8x8xf32>
    %cst_40 = arith.constant dense<0xFF800000> : vector<4x8xf32>
    %100 = vector.multi_reduction <maximumf>, %99, %cst_40 [2] : vector<4x8x8xf32> to vector<4x8xf32>
    %101 = vector.shape_cast %100 : vector<4x8xf32> to vector<4x8x1xf32>
    %102 = vector.broadcast %101 : vector<4x8x1xf32> to vector<4x8x8xf32>
    %103 = arith.subf %99, %102 : vector<4x8x8xf32>
    %104 = math.exp %103 : vector<4x8x8xf32>
    %cst_41 = arith.constant dense<0.000000e+00> : vector<4x8xf32>
    %105 = vector.multi_reduction <add>, %104, %cst_41 [2] : vector<4x8x8xf32> to vector<4x8xf32>
    %106 = vector.shape_cast %105 : vector<4x8xf32> to vector<4x8x1xf32>
    %107 = tpu.reciprocal %106 {approx = true} : vector<4x8x1xf32> -> vector<4x8x1xf32>
    %108 = vector.broadcast %107 : vector<4x8x1xf32> to vector<4x8x8xf32>
    %109 = arith.mulf %104, %108 : vector<4x8x8xf32>
    %110 = arith.truncf %109 : vector<4x8x8xf32> to vector<4x8x8xbf16>
    %111 = arith.truncf %69 : vector<4x8x8xf32> to vector<4x8x8xbf16>
    "tpu.trace_start"() <{level = 10 : i32, message = "hts,hsd->htd"}> : () -> ()
    %cst_42 = arith.constant dense<0.000000e+00> : vector<4x8x8xf32>
    %112 = tpu.matmul %110, %111, %cst_42 {dimension_numbers = #tpu.dot_dimension_numbers<[2], [1], [1], [2], [0, 0, 0, 1, 1, 2], [0], [0]>} : vector<4x8x8xbf16>, vector<4x8x8xbf16>, vector<4x8x8xf32> -> vector<4x8x8xf32>
    "tpu.trace_stop"() : () -> ()
    %113 = vector.extract_strided_slice %112 {offsets = [0, 0, 0], sizes = [1, 8, 8], strides = [1, 1, 1]} : vector<4x8x8xf32> to vector<1x8x8xf32>
    %114 = vector.shape_cast %113 : vector<1x8x8xf32> to vector<8x8xf32>
    %115 = vector.extract_strided_slice %112 {offsets = [1, 0, 0], sizes = [1, 8, 8], strides = [1, 1, 1]} : vector<4x8x8xf32> to vector<1x8x8xf32>
    %116 = vector.shape_cast %115 : vector<1x8x8xf32> to vector<8x8xf32>
    %117 = vector.extract_strided_slice %112 {offsets = [2, 0, 0], sizes = [1, 8, 8], strides = [1, 1, 1]} : vector<4x8x8xf32> to vector<1x8x8xf32>
    %118 = vector.shape_cast %117 : vector<1x8x8xf32> to vector<8x8xf32>
    %119 = vector.extract_strided_slice %112 {offsets = [3, 0, 0], sizes = [1, 8, 8], strides = [1, 1, 1]} : vector<4x8x8xf32> to vector<1x8x8xf32>
    %120 = vector.shape_cast %119 : vector<1x8x8xf32> to vector<8x8xf32>
    %121 = tpu.concatenate %114, %116, %118, %120 in 1 : vector<8x8xf32>, vector<8x8xf32>, vector<8x8xf32>, vector<8x8xf32> -> vector<8x32xf32>
    %122 = arith.truncf %121 : vector<8x32xf32> to vector<8x32xbf16>
    %cst_43 = arith.constant dense<0.000000e+00> : vector<8x32xf32>
    %123 = tpu.matmul %122, %4, %cst_43 {dimension_numbers = #tpu.dot_dimension_numbers<[1], [0], [0], [1], [0, 0, 1, 1], [], []>} : vector<8x32xbf16>, vector<32x32xbf16>, vector<8x32xf32> -> vector<8x32xf32>
    %124 = arith.addf %16, %123 : vector<8x32xf32>
    %125 = vector.broadcast %5 : vector<1x32xf32> to vector<8x32xf32>
    %126 = arith.addf %124, %125 : vector<8x32xf32>
    %cst_44 = arith.constant dense<0.000000e+00> : vector<8xf32>
    %127 = vector.multi_reduction <add>, %126, %cst_44 [1] : vector<8x32xf32> to vector<8xf32>
    %128 = vector.shape_cast %127 : vector<8xf32> to vector<8x1xf32>
    %cst_45 = arith.constant 3.200000e+01 : f32
    %129 = vector.broadcast %cst_45 : f32 to vector<8x1xf32>
    %130 = arith.divf %128, %129 : vector<8x1xf32>
    %131 = vector.broadcast %130 : vector<8x1xf32> to vector<8x32xf32>
    %132 = arith.subf %126, %131 : vector<8x32xf32>
    %133 = arith.mulf %132, %132 : vector<8x32xf32>
    %cst_46 = arith.constant dense<0.000000e+00> : vector<8xf32>
    %134 = vector.multi_reduction <add>, %133, %cst_46 [1] : vector<8x32xf32> to vector<8xf32>
    %135 = vector.shape_cast %134 : vector<8xf32> to vector<8x1xf32>
    %cst_47 = arith.constant 3.200000e+01 : f32
    %136 = vector.broadcast %cst_47 : f32 to vector<8x1xf32>
    %137 = arith.divf %135, %136 : vector<8x1xf32>
    %138 = vector.broadcast %130 : vector<8x1xf32> to vector<8x32xf32>
    %139 = arith.subf %126, %138 : vector<8x32xf32>
    %cst_48 = arith.constant 9.99999974E-6 : f32
    %140 = vector.broadcast %cst_48 : f32 to vector<8x1xf32>
    %141 = arith.addf %137, %140 : vector<8x1xf32>
    %142 = math.rsqrt %141 : vector<8x1xf32>
    %143 = vector.broadcast %142 : vector<8x1xf32> to vector<8x32xf32>
    %144 = arith.mulf %139, %143 : vector<8x32xf32>
    %145 = vector.broadcast %6 : vector<1x32xf32> to vector<8x32xf32>
    %146 = arith.mulf %144, %145 : vector<8x32xf32>
    %147 = vector.broadcast %7 : vector<1x32xf32> to vector<8x32xf32>
    %148 = arith.addf %146, %147 : vector<8x32xf32>
    %149 = arith.truncf %148 : vector<8x32xf32> to vector<8x32xbf16>
    %cst_49 = arith.constant dense<0.000000e+00> : vector<8x128xf32>
    %150 = tpu.matmul %149, %8, %cst_49 {dimension_numbers = #tpu.dot_dimension_numbers<[1], [0], [0], [1], [0, 0, 1, 1], [], []>} : vector<8x32xbf16>, vector<32x128xbf16>, vector<8x128xf32> -> vector<8x128xf32>
    %151 = vector.broadcast %9 : vector<1x128xf32> to vector<8x128xf32>
    %152 = arith.addf %150, %151 : vector<8x128xf32>
    %cst_50 = arith.constant 5.000000e-01 : f32
    %153 = vector.broadcast %cst_50 : f32 to vector<8x128xf32>
    %154 = arith.mulf %153, %152 : vector<8x128xf32>
    %cst_51 = arith.constant 0.707106769 : f32
    %155 = vector.broadcast %cst_51 : f32 to vector<8x128xf32>
    %156 = arith.mulf %152, %155 : vector<8x128xf32>
    %157 = math.absf %156 : vector<8x128xf32>
    %cst_52 = arith.constant 0.327591091 : f32
    %158 = vector.broadcast %cst_52 : f32 to vector<8x128xf32>
    %159 = arith.mulf %158, %157 : vector<8x128xf32>
    %cst_53 = arith.constant 1.000000e+00 : f32
    %160 = vector.broadcast %cst_53 : f32 to vector<8x128xf32>
    %161 = arith.addf %160, %159 : vector<8x128xf32>
    %cst_54 = arith.constant 1.000000e+00 : f32
    %162 = vector.broadcast %cst_54 : f32 to vector<8x128xf32>
    %163 = arith.divf %162, %161 : vector<8x128xf32>
    %cst_55 = arith.constant 1.06140542 : f32
    %164 = vector.broadcast %cst_55 : f32 to vector<8x128xf32>
    %165 = arith.mulf %163, %164 : vector<8x128xf32>
    %cst_56 = arith.constant -1.45315206 : f32
    %166 = vector.broadcast %cst_56 : f32 to vector<8x128xf32>
    %167 = arith.addf %166, %165 : vector<8x128xf32>
    %168 = arith.mulf %163, %167 : vector<8x128xf32>
    %cst_57 = arith.constant 1.42141378 : f32
    %169 = vector.broadcast %cst_57 : f32 to vector<8x128xf32>
    %170 = arith.addf %169, %168 : vector<8x128xf32>
    %171 = arith.mulf %163, %170 : vector<8x128xf32>
    %cst_58 = arith.constant -0.284496725 : f32
    %172 = vector.broadcast %cst_58 : f32 to vector<8x128xf32>
    %173 = arith.addf %172, %171 : vector<8x128xf32>
    %174 = arith.mulf %163, %173 : vector<8x128xf32>
    %cst_59 = arith.constant 0.254829586 : f32
    %175 = vector.broadcast %cst_59 : f32 to vector<8x128xf32>
    %176 = arith.addf %175, %174 : vector<8x128xf32>
    %177 = arith.mulf %163, %176 : vector<8x128xf32>
    %cst_60 = arith.constant 0.000000e+00 : f32
    %178 = vector.broadcast %cst_60 : f32 to vector<8x128xf32>
    %179 = arith.subf %178, %157 : vector<8x128xf32>
    %180 = arith.mulf %179, %157 : vector<8x128xf32>
    %181 = math.exp %180 : vector<8x128xf32>
    %182 = arith.mulf %177, %181 : vector<8x128xf32>
    %cst_61 = arith.constant 1.000000e+00 : f32
    %183 = vector.broadcast %cst_61 : f32 to vector<8x128xf32>
    %184 = arith.subf %183, %182 : vector<8x128xf32>
    %cst_62 = arith.constant 0.000000e+00 : f32
    %185 = vector.broadcast %cst_62 : f32 to vector<8x128xf32>
    %186 = arith.cmpf oge, %156, %185 : vector<8x128xf32>
    %cst_63 = arith.constant 0.000000e+00 : f32
    %187 = vector.broadcast %cst_63 : f32 to vector<8x128xf32>
    %188 = arith.subf %187, %184 : vector<8x128xf32>
    %189 = arith.select %186, %184, %188 : vector<8x128xi1>, vector<8x128xf32>
    %cst_64 = arith.constant 1.000000e+00 : f32
    %190 = vector.broadcast %cst_64 : f32 to vector<8x128xf32>
    %191 = arith.addf %190, %189 : vector<8x128xf32>
    %192 = arith.mulf %154, %191 : vector<8x128xf32>
    %193 = arith.truncf %192 : vector<8x128xf32> to vector<8x128xbf16>
    %cst_65 = arith.constant dense<0.000000e+00> : vector<8x32xf32>
    %194 = tpu.matmul %193, %10, %cst_65 {dimension_numbers = #tpu.dot_dimension_numbers<[1], [0], [0], [1], [0, 0, 1, 1], [], []>} : vector<8x128xbf16>, vector<128x32xbf16>, vector<8x32xf32> -> vector<8x32xf32>
    %195 = vector.broadcast %11 : vector<1x32xf32> to vector<8x32xf32>
    %196 = arith.addf %194, %195 : vector<8x32xf32>
    %197 = arith.addf %126, %196 : vector<8x32xf32>
    %c0_66 = arith.constant 0 : index
    %c0_67 = arith.constant 0 : index
    %c0_68 = arith.constant 0 : index
    %198 = vector.load %arg17[%c0_66, %c0_67, %c0_68] : memref<1x8x32xf32, #tpu.memory_space<vmem>>, vector<1x8x32xf32>
    %199 = vector.shape_cast %198 : vector<1x8x32xf32> to vector<8x32xf32>
    %200 = vector.shape_cast %197 : vector<8x32xf32> to vector<1x8x32xf32>
    tpu.vector_store %arg17[%c0_66, %c0_67, %c0_68], %200 {strides = array<i32>} : memref<1x8x32xf32, #tpu.memory_space<vmem>>, vector<1x8x32xf32>,
    return
  }
  func.func @transform_0(%arg0: i32) -> (i32, i32, i32) {
    %c0_i32 = arith.constant 0 : i32
    %c0_i32_0 = arith.constant 0 : i32
    %c0_i32_1 = arith.constant 0 : i32
    return %arg0, %c0_i32, %c0_i32_0 : i32, i32, i32
  }
  func.func @transform_1(%arg0: i32) -> (i32, i32) {
    %c0_i32 = arith.constant 0 : i32
    %c0_i32_0 = arith.constant 0 : i32
    %c0_i32_1 = arith.constant 0 : i32
    return %c0_i32, %c0_i32_0 : i32, i32
  }
  func.func @transform_2(%arg0: i32) -> (i32, i32) {
    %c0_i32 = arith.constant 0 : i32
    %c0_i32_0 = arith.constant 0 : i32
    %c0_i32_1 = arith.constant 0 : i32
    return %c0_i32, %c0_i32_0 : i32, i32
  }
  func.func @transform_3(%arg0: i32) -> (i32, i32) {
    %c0_i32 = arith.constant 0 : i32
    %c0_i32_0 = arith.constant 0 : i32
    %c0_i32_1 = arith.constant 0 : i32
    return %c0_i32, %c0_i32_0 : i32, i32
  }
  func.func @transform_4(%arg0: i32) -> (i32, i32) {
    %c0_i32 = arith.constant 0 : i32
    %c0_i32_0 = arith.constant 0 : i32
    %c0_i32_1 = arith.constant 0 : i32
    return %c0_i32, %c0_i32_0 : i32, i32
  }
  func.func @transform_5(%arg0: i32) -> (i32, i32) {
    %c0_i32 = arith.constant 0 : i32
    %c0_i32_0 = arith.constant 0 : i32
    %c0_i32_1 = arith.constant 0 : i32
    return %c0_i32, %c0_i32_0 : i32, i32
  }
  func.func @transform_6(%arg0: i32) -> (i32, i32) {
    %c0_i32 = arith.constant 0 : i32
    %c0_i32_0 = arith.constant 0 : i32
    %c0_i32_1 = arith.constant 0 : i32
    return %c0_i32, %c0_i32_0 : i32, i32
  }
  func.func @transform_7(%arg0: i32) -> (i32, i32) {
    %c0_i32 = arith.constant 0 : i32
    %c0_i32_0 = arith.constant 0 : i32
    %c0_i32_1 = arith.constant 0 : i32
    return %c0_i32, %c0_i32_0 : i32, i32
  }
  func.func @transform_8(%arg0: i32) -> (i32, i32) {
    %c0_i32 = arith.constant 0 : i32
    %c0_i32_0 = arith.constant 0 : i32
    %c0_i32_1 = arith.constant 0 : i32
    return %c0_i32, %c0_i32_0 : i32, i32
  }
  func.func @transform_9(%arg0: i32) -> (i32, i32) {
    %c0_i32 = arith.constant 0 : i32
    %c0_i32_0 = arith.constant 0 : i32
    %c0_i32_1 = arith.constant 0 : i32
    return %c0_i32, %c0_i32_0 : i32, i32
  }
  func.func @transform_10(%arg0: i32) -> (i32, i32) {
    %c0_i32 = arith.constant 0 : i32
    %c0_i32_0 = arith.constant 0 : i32
    %c0_i32_1 = arith.constant 0 : i32
    return %c0_i32, %c0_i32_0 : i32, i32
  }
  func.func @transform_11(%arg0: i32) -> (i32, i32) {
    %c0_i32 = arith.constant 0 : i32
    %c0_i32_0 = arith.constant 0 : i32
    %c0_i32_1 = arith.constant 0 : i32
    return %c0_i32, %c0_i32_0 : i32, i32
  }
  func.func @transform_12(%arg0: i32) -> (i32, i32) {
    %c0_i32 = arith.constant 0 : i32
    %c0_i32_0 = arith.constant 0 : i32
    %c0_i32_1 = arith.constant 0 : i32
    return %c0_i32, %c0_i32_0 : i32, i32
  }
  func.func @transform_13(%arg0: i32) -> (i32, i32) {
    %c0_i32 = arith.constant 0 : i32
    %c0_i32_0 = arith.constant 0 : i32
    %c0_i32_1 = arith.constant 0 : i32
    return %c0_i32, %c0_i32_0 : i32, i32
  }
  func.func @transform_14(%arg0: i32) -> (i32, i32) {
    %c0_i32 = arith.constant 0 : i32
    %c0_i32_0 = arith.constant 0 : i32
    %c0_i32_1 = arith.constant 0 : i32
    return %c0_i32, %c0_i32_0 : i32, i32
  }
  func.func @transform_15(%arg0: i32) -> (i32, i32) {
    %c0_i32 = arith.constant 0 : i32
    %c0_i32_0 = arith.constant 0 : i32
    %c0_i32_1 = arith.constant 0 : i32
    return %c0_i32, %c0_i32_0 : i32, i32
  }
  func.func @transform_16(%arg0: i32) -> (i32, i32, i32) {
    %c0_i32 = arith.constant 0 : i32
    %c0_i32_0 = arith.constant 0 : i32
    %c0_i32_1 = arith.constant 0 : i32
    return %arg0, %c0_i32, %c0_i32_0 : i32, i32, i32
  }
}

</mosaic_0001>

<llo_original>
// kernel: tpu_custom_call.1
$region0: #{tpu_custom_call.1}
  #allocation0 [shape = 'u32[]', space=smem, size = 0x4, offset = 0x4, fixed_abs, tag = 'smem constant byte address 0x4 - core index']
  #allocation1 [shape = 'u32[144,128]{1,0:T(1,128)}', space=vmem, size = 0x12000, scoped, tag = 'internal scratch']
  %s0 = inlined_call_operand.vmem [shape: f32[2,8,32], index: 0, kind: input, shape index: {}]
  %s1 = inlined_call_operand.vmem [shape: f32[1,32], index: 1, kind: input, shape index: {}]
  %s2 = inlined_call_operand.vmem [shape: f32[1,32], index: 2, kind: input, shape index: {}]
  %s3 = inlined_call_operand.vmem [shape: bf16[32,96], index: 3, kind: input, shape index: {}]
  %s4 = inlined_call_operand.vmem [shape: f32[1,96], index: 4, kind: input, shape index: {}]
  %s5 = inlined_call_operand.vmem [shape: bf16[32,32], index: 5, kind: input, shape index: {}]
  %s6 = inlined_call_operand.vmem [shape: f32[1,32], index: 6, kind: input, shape index: {}]
  %s7 = inlined_call_operand.vmem [shape: f32[1,32], index: 7, kind: input, shape index: {}]
  %s8 = inlined_call_operand.vmem [shape: f32[1,32], index: 8, kind: input, shape index: {}]
  %s9 = inlined_call_operand.vmem [shape: bf16[32,128], index: 9, kind: input, shape index: {}]
  %s10 = inlined_call_operand.vmem [shape: f32[1,128], index: 10, kind: input, shape index: {}]
  %s11 = inlined_call_operand.vmem [shape: bf16[128,32], index: 11, kind: input, shape index: {}]
  %s12 = inlined_call_operand.vmem [shape: f32[1,32], index: 12, kind: input, shape index: {}]
  %s13 = inlined_call_operand.vmem [shape: f32[8,8], index: 13, kind: input, shape index: {}]
  %s14 = inlined_call_operand.vmem [shape: f32[8,8], index: 14, kind: input, shape index: {}]
  %s15 = inlined_call_operand.vmem [shape: f32[8,8], index: 15, kind: input, shape index: {}]
  %s16 = inlined_call_operand.hbm [shape: f32[2,8,32], index: 16, kind: output, shape index: {}]
  %s17 = sld [smem:[#allocation0]]
  $region97: #{tpu_custom_call.1} parent=0
    _
  %s19 = ssub.s32 1, %s17
  %s20 = scalar_select 0, %s19, %s17
  $region1: #{tpu_custom_call.1} parent=0
    #allocation2 [shape = 'u8[8192]{0}', space=vmem, size = 0x2000, scoped, tag = 'output window, operand 0']
    #allocation3 [shape = 's32[2]{0}', space=sflag, size = 0x8, scoped, tag = 'scoped memory for tpu_custom_call.1']
    %21 = vsyncpa [#allocation3], 0
    %s22 = scalar_lea.sflag [#allocation3], 1
    %23 = vsyncpa %s22, 0
    loop: start=0, step=1, limit=4
    $region2: #{tpu_custom_call.1} parent=1 // loop_pre_header
      _
    $region3: #{tpu_custom_call.1} parent=1 // loop_header
      %s25 = sphi 0, %s29
      %p26 = scmp.ge.s32.totalorder %s25, 4
      %s35 = sphi 0, %s37
      %s38 = sphi 0, %s35
      %s39 = sphi 0, %s38
      %s55 = sphi 0, %s39
      %s59 = sphi 0, %s59
      %s61 = sphi 0, %s59
      %s62 = sphi 0, %s61
      %s76 = sphi 0, %s62
      %s80 = sphi 0, %s80
      %s82 = sphi 0, %s80
      %s83 = sphi 0, %s82
      %s97 = sphi 0, %s83
      %s101 = sphi 0, %s101
      %s103 = sphi 0, %s101
      %s104 = sphi 0, %s103
      %s118 = sphi 0, %s104
      %s122 = sphi 0, %s122
      %s124 = sphi 0, %s122
      %s125 = sphi 0, %s124
      %s139 = sphi 0, %s125
      %s143 = sphi 0, %s143
      %s145 = sphi 0, %s143
      %s146 = sphi 0, %s145
      %s160 = sphi 0, %s146
      %s164 = sphi 0, %s164
      %s166 = sphi 0, %s164
      %s167 = sphi 0, %s166
      %s181 = sphi 0, %s167
      %s185 = sphi 0, %s185
      %s187 = sphi 0, %s185
      %s188 = sphi 0, %s187
      %s202 = sphi 0, %s188
      %s206 = sphi 0, %s206
      %s208 = sphi 0, %s206
      %s209 = sphi 0, %s208
      %s223 = sphi 0, %s209
      %s227 = sphi 0, %s227
      %s229 = sphi 0, %s227
      %s230 = sphi 0, %s229
      %s244 = sphi 0, %s230
      %s248 = sphi 0, %s248
      %s250 = sphi 0, %s248
      %s251 = sphi 0, %s250
      %s265 = sphi 0, %s251
      %s269 = sphi 0, %s269
      %s271 = sphi 0, %s269
      %s272 = sphi 0, %s271
      %s286 = sphi 0, %s272
      %s290 = sphi 0, %s290
      %s292 = sphi 0, %s290
      %s293 = sphi 0, %s292
      %s307 = sphi 0, %s293
      %s311 = sphi 0, %s311
      %s313 = sphi 0, %s311
      %s314 = sphi 0, %s313
      %s328 = sphi 0, %s314
      %s332 = sphi 0, %s332
      %s334 = sphi 0, %s332
      %s335 = sphi 0, %s334
      %s349 = sphi 0, %s335
      %s353 = sphi 0, %s353
      %s355 = sphi 0, %s353
      %s356 = sphi 0, %s355
      %s370 = sphi 0, %s356
      %s376 = sphi 0, %s378
      %s379 = sphi 0, %s376
      %s380 = sphi 0, %s379
      %s396 = sphi 0, %s380
    $region4: #{tpu_custom_call.1} parent=1 // loop_header_branch
      %28 = sbr.rel (%p26) target = $region8
    $region5: #{tpu_custom_call.1} parent=1 // loop_body
      %s30 = ssub.s32 %s25, 1
      %s31 = ssub.s32 %s25, 2
      %s32 = sadd.s32 %s25, 1
      %s33 = ssub.s32 %s25, %s32
      %p34 = scmp.eq.s32.totalorder %s33, 0
      %s36 = sadd.s32 %s35, 1
      %s37 = scalar_select %p34, %s35, %s36
      %p40 = pneg %p34
      %p41 = scmp.eq.s32.totalorder %s25, 1
      %p42 = por %p40, %p41
      %p43 = scmp.ne.s32.totalorder %s35, %s38
      %p44 = scmp.eq.s32.totalorder %s25, 0
      %p45 = por %p43, %p44
      %p46 = scmp.ne.s32.totalorder %s35, %s38
      %p47 = scmp.eq.s32.totalorder %s30, 1
      %p48 = por %p46, %p47
      %p49 = scmp.ne.s32.totalorder %s38, %s39
      %p50 = scmp.eq.s32.totalorder %s30, 0
      %p51 = por %p49, %p50
      %p52 = scmp.ne.s32.totalorder %s38, %s39
      %p53 = scmp.eq.s32.totalorder %s31, 1
      %p54 = por %p52, %p53
      %p56 = scmp.ne.s32.totalorder %s39, %s55
      %p57 = scmp.eq.s32.totalorder %s31, 0
      %p58 = por %p56, %p57
      %s60 = sadd.s32 %s59, 1
      %p63 = scmp.eq.s32.totalorder %s25, 1
      %p64 = scmp.ne.s32.totalorder %s59, %s61
      %p65 = scmp.eq.s32.totalorder %s25, 0
      %p66 = por %p64, %p65
      %p67 = scmp.ne.s32.totalorder %s59, %s61
      %p68 = scmp.eq.s32.totalorder %s30, 1
      %p69 = por %p67, %p68
      %p70 = scmp.ne.s32.totalorder %s61, %s62
      %p71 = scmp.eq.s32.totalorder %s30, 0
      %p72 = por %p70, %p71
      %p73 = scmp.ne.s32.totalorder %s61, %s62
      %p74 = scmp.eq.s32.totalorder %s31, 1
      %p75 = por %p73, %p74
      %p77 = scmp.ne.s32.totalorder %s62, %s76
      %p78 = scmp.eq.s32.totalorder %s31, 0
      %p79 = por %p77, %p78
      %s81 = sadd.s32 %s80, 1
      %p84 = scmp.eq.s32.totalorder %s25, 1
      %p85 = scmp.ne.s32.totalorder %s80, %s82
      %p86 = scmp.eq.s32.totalorder %s25, 0
      %p87 = por %p85, %p86
      %p88 = scmp.ne.s32.totalorder %s80, %s82
      %p89 = scmp.eq.s32.totalorder %s30, 1
      %p90 = por %p88, %p89
      %p91 = scmp.ne.s32.totalorder %s82, %s83
      %p92 = scmp.eq.s32.totalorder %s30, 0
      %p93 = por %p91, %p92
      %p94 = scmp.ne.s32.totalorder %s82, %s83
      %p95 = scmp.eq.s32.totalorder %s31, 1
      %p96 = por %p94, %p95
      %p98 = scmp.ne.s32.totalorder %s83, %s97
      %p99 = scmp.eq.s32.totalorder %s31, 0
      %p100 = por %p98, %p99
      %s102 = sadd.s32 %s101, 1
      %p105 = scmp.eq.s32.totalorder %s25, 1
      %p106 = scmp.ne.s32.totalorder %s101, %s103
      %p107 = scmp.eq.s32.totalorder %s25, 0
      %p108 = por %p106, %p107
      %p109 = scmp.ne.s32.totalorder %s101, %s103
      %p110 = scmp.eq.s32.totalorder %s30, 1
      %p111 = por %p109, %p110
      %p112 = scmp.ne.s32.totalorder %s103, %s104
      %p113 = scmp.eq.s32.totalorder %s30, 0
      %p114 = por %p112, %p113
      %p115 = scmp.ne.s32.totalorder %s103, %s104
      %p116 = scmp.eq.s32.totalorder %s31, 1
      %p117 = por %p115, %p116
      %p119 = scmp.ne.s32.totalorder %s104, %s118
      %p120 = scmp.eq.s32.totalorder %s31, 0
      %p121 = por %p119, %p120
      %s123 = sadd.s32 %s122, 1
      %p126 = scmp.eq.s32.totalorder %s25, 1
      %p127 = scmp.ne.s32.totalorder %s122, %s124
      %p128 = scmp.eq.s32.totalorder %s25, 0
      %p129 = por %p127, %p128
      %p130 = scmp.ne.s32.totalorder %s122, %s124
      %p131 = scmp.eq.s32.totalorder %s30, 1
      %p132 = por %p130, %p131
      %p133 = scmp.ne.s32.totalorder %s124, %s125
      %p134 = scmp.eq.s32.totalorder %s30, 0
      %p135 = por %p133, %p134
      %p136 = scmp.ne.s32.totalorder %s124, %s125
      %p137 = scmp.eq.s32.totalorder %s31, 1
      %p138 = por %p136, %p137
      %p140 = scmp.ne.s32.totalorder %s125, %s139
      %p141 = scmp.eq.s32.totalorder %s31, 0
      %p142 = por %p140, %p141
      %s144 = sadd.s32 %s143, 1
      %p147 = scmp.eq.s32.totalorder %s25, 1
      %p148 = scmp.ne.s32.totalorder %s143, %s145
      %p149 = scmp.eq.s32.totalorder %s25, 0
      %p150 = por %p148, %p149
      %p151 = scmp.ne.s32.totalorder %s143, %s145
      %p152 = scmp.eq.s32.totalorder %s30, 1
      %p153 = por %p151, %p152
      %p154 = scmp.ne.s32.totalorder %s145, %s146
      %p155 = scmp.eq.s32.totalorder %s30, 0
      %p156 = por %p154, %p155
      %p157 = scmp.ne.s32.totalorder %s145, %s146
      %p158 = scmp.eq.s32.totalorder %s31, 1
      %p159 = por %p157, %p158
      %p161 = scmp.ne.s32.totalorder %s146, %s160
      %p162 = scmp.eq.s32.totalorder %s31, 0
      %p163 = por %p161, %p162
      %s165 = sadd.s32 %s164, 1
      %p168 = scmp.eq.s32.totalorder %s25, 1
      %p169 = scmp.ne.s32.totalorder %s164, %s166
      %p170 = scmp.eq.s32.totalorder %s25, 0
      %p171 = por %p169, %p170
      %p172 = scmp.ne.s32.totalorder %s164, %s166
      %p173 = scmp.eq.s32.totalorder %s30, 1
      %p174 = por %p172, %p173
      %p175 = scmp.ne.s32.totalorder %s166, %s167
      %p176 = scmp.eq.s32.totalorder %s30, 0
      %p177 = por %p175, %p176
      %p178 = scmp.ne.s32.totalorder %s166, %s167
      %p179 = scmp.eq.s32.totalorder %s31, 1
      %p180 = por %p178, %p179
      %p182 = scmp.ne.s32.totalorder %s167, %s181
      %p183 = scmp.eq.s32.totalorder %s31, 0
      %p184 = por %p182, %p183
      %s186 = sadd.s32 %s185, 1
      %p189 = scmp.eq.s32.totalorder %s25, 1
      %p190 = scmp.ne.s32.totalorder %s185, %s187
      %p191 = scmp.eq.s32.totalorder %s25, 0
      %p192 = por %p190, %p191
      %p193 = scmp.ne.s32.totalorder %s185, %s187
      %p194 = scmp.eq.s32.totalorder %s30, 1
      %p195 = por %p193, %p194
      %p196 = scmp.ne.s32.totalorder %s187, %s188
      %p197 = scmp.eq.s32.totalorder %s30, 0
      %p198 = por %p196, %p197
      %p199 = scmp.ne.s32.totalorder %s187, %s188
      %p200 = scmp.eq.s32.totalorder %s31, 1
      %p201 = por %p199, %p200
      %p203 = scmp.ne.s32.totalorder %s188, %s202
      %p204 = scmp.eq.s32.totalorder %s31, 0
      %p205 = por %p203, %p204
      %s207 = sadd.s32 %s206, 1
      %p210 = scmp.eq.s32.totalorder %s25, 1
      %p211 = scmp.ne.s32.totalorder %s206, %s208
      %p212 = scmp.eq.s32.totalorder %s25, 0
      %p213 = por %p211, %p212
      %p214 = scmp.ne.s32.totalorder %s206, %s208
      %p215 = scmp.eq.s32.totalorder %s30, 1
      %p216 = por %p214, %p215
      %p217 = scmp.ne.s32.totalorder %s208, %s209
      %p218 = scmp.eq.s32.totalorder %s30, 0
      %p219 = por %p217, %p218
      %p220 = scmp.ne.s32.totalorder %s208, %s209
      %p221 = scmp.eq.s32.totalorder %s31, 1
      %p222 = por %p220, %p221
      %p224 = scmp.ne.s32.totalorder %s209, %s223
      %p225 = scmp.eq.s32.totalorder %s31, 0
      %p226 = por %p224, %p225
      %s228 = sadd.s32 %s227, 1
      %p231 = scmp.eq.s32.totalorder %s25, 1
      %p232 = scmp.ne.s32.totalorder %s227, %s229
      %p233 = scmp.eq.s32.totalorder %s25, 0
      %p234 = por %p232, %p233
      %p235 = scmp.ne.s32.totalorder %s227, %s229
      %p236 = scmp.eq.s32.totalorder %s30, 1
      %p237 = por %p235, %p236
      %p238 = scmp.ne.s32.totalorder %s229, %s230
      %p239 = scmp.eq.s32.totalorder %s30, 0
      %p240 = por %p238, %p239
      %p241 = scmp.ne.s32.totalorder %s229, %s230
      %p242 = scmp.eq.s32.totalorder %s31, 1
      %p243 = por %p241, %p242
      %p245 = scmp.ne.s32.totalorder %s230, %s244
      %p246 = scmp.eq.s32.totalorder %s31, 0
      %p247 = por %p245, %p246
      %s249 = sadd.s32 %s248, 1
      %p252 = scmp.eq.s32.totalorder %s25, 1
      %p253 = scmp.ne.s32.totalorder %s248, %s250
      %p254 = scmp.eq.s32.totalorder %s25, 0
      %p255 = por %p253, %p254
      %p256 = scmp.ne.s32.totalorder %s248, %s250
      %p257 = scmp.eq.s32.totalorder %s30, 1
      %p258 = por %p256, %p257
      %p259 = scmp.ne.s32.totalorder %s250, %s251
      %p260 = scmp.eq.s32.totalorder %s30, 0
      %p261 = por %p259, %p260
      %p262 = scmp.ne.s32.totalorder %s250, %s251
      %p263 = scmp.eq.s32.totalorder %s31, 1
      %p264 = por %p262, %p263
      %p266 = scmp.ne.s32.totalorder %s251, %s265
      %p267 = scmp.eq.s32.totalorder %s31, 0
      %p268 = por %p266, %p267
      %s270 = sadd.s32 %s269, 1
      %p273 = scmp.eq.s32.totalorder %s25, 1
      %p274 = scmp.ne.s32.totalorder %s269, %s271
      %p275 = scmp.eq.s32.totalorder %s25, 0
      %p276 = por %p274, %p275
      %p277 = scmp.ne.s32.totalorder %s269, %s271
      %p278 = scmp.eq.s32.totalorder %s30, 1
      %p279 = por %p277, %p278
      %p280 = scmp.ne.s32.totalorder %s271, %s272
      %p281 = scmp.eq.s32.totalorder %s30, 0
      %p282 = por %p280, %p281
      %p283 = scmp.ne.s32.totalorder %s271, %s272
      %p284 = scmp.eq.s32.totalorder %s31, 1
      %p285 = por %p283, %p284
      %p287 = scmp.ne.s32.totalorder %s272, %s286
      %p288 = scmp.eq.s32.totalorder %s31, 0
      %p289 = por %p287, %p288
      %s291 = sadd.s32 %s290, 1
      %p294 = scmp.eq.s32.totalorder %s25, 1
      %p295 = scmp.ne.s32.totalorder %s290, %s292
      %p296 = scmp.eq.s32.totalorder %s25, 0
      %p297 = por %p295, %p296
      %p298 = scmp.ne.s32.totalorder %s290, %s292
      %p299 = scmp.eq.s32.totalorder %s30, 1
      %p300 = por %p298, %p299
      %p301 = scmp.ne.s32.totalorder %s292, %s293
      %p302 = scmp.eq.s32.totalorder %s30, 0
      %p303 = por %p301, %p302
      %p304 = scmp.ne.s32.totalorder %s292, %s293
      %p305 = scmp.eq.s32.totalorder %s31, 1
      %p306 = por %p304, %p305
      %p308 = scmp.ne.s32.totalorder %s293, %s307
      %p309 = scmp.eq.s32.totalorder %s31, 0
      %p310 = por %p308, %p309
      %s312 = sadd.s32 %s311, 1
      %p315 = scmp.eq.s32.totalorder %s25, 1
      %p316 = scmp.ne.s32.totalorder %s311, %s313
      %p317 = scmp.eq.s32.totalorder %s25, 0
      %p318 = por %p316, %p317
      %p319 = scmp.ne.s32.totalorder %s311, %s313
      %p320 = scmp.eq.s32.totalorder %s30, 1
      %p321 = por %p319, %p320
      %p322 = scmp.ne.s32.totalorder %s313, %s314
      %p323 = scmp.eq.s32.totalorder %s30, 0
      %p324 = por %p322, %p323
      %p325 = scmp.ne.s32.totalorder %s313, %s314
      %p326 = scmp.eq.s32.totalorder %s31, 1
      %p327 = por %p325, %p326
      %p329 = scmp.ne.s32.totalorder %s314, %s328
      %p330 = scmp.eq.s32.totalorder %s31, 0
      %p331 = por %p329, %p330
      %s333 = sadd.s32 %s332, 1
      %p336 = scmp.eq.s32.totalorder %s25, 1
      %p337 = scmp.ne.s32.totalorder %s332, %s334
      %p338 = scmp.eq.s32.totalorder %s25, 0
      %p339 = por %p337, %p338
      %p340 = scmp.ne.s32.totalorder %s332, %s334
      %p341 = scmp.eq.s32.totalorder %s30, 1
      %p342 = por %p340, %p341
      %p343 = scmp.ne.s32.totalorder %s334, %s335
      %p344 = scmp.eq.s32.totalorder %s30, 0
      %p345 = por %p343, %p344
      %p346 = scmp.ne.s32.totalorder %s334, %s335
      %p347 = scmp.eq.s32.totalorder %s31, 1
      %p348 = por %p346, %p347
      %p350 = scmp.ne.s32.totalorder %s335, %s349
      %p351 = scmp.eq.s32.totalorder %s31, 0
      %p352 = por %p350, %p351
      %s354 = sadd.s32 %s353, 1
      %p357 = scmp.eq.s32.totalorder %s25, 1
      %p358 = scmp.ne.s32.totalorder %s353, %s355
      %p359 = scmp.eq.s32.totalorder %s25, 0
      %p360 = por %p358, %p359
      %p361 = scmp.ne.s32.totalorder %s353, %s355
      %p362 = scmp.eq.s32.totalorder %s30, 1
      %p363 = por %p361, %p362
      %p364 = scmp.ne.s32.totalorder %s355, %s356
      %p365 = scmp.eq.s32.totalorder %s30, 0
      %p366 = por %p364, %p365
      %p367 = scmp.ne.s32.totalorder %s355, %s356
      %p368 = scmp.eq.s32.totalorder %s31, 1
      %p369 = por %p367, %p368
      %p371 = scmp.ne.s32.totalorder %s356, %s370
      %p372 = scmp.eq.s32.totalorder %s31, 0
      %p373 = por %p371, %p372
      %s374 = ssub.s32 %s25, %s32
      %p375 = scmp.eq.s32.totalorder %s374, 0
      %s377 = sadd.s32 %s376, 1
      %s378 = scalar_select %p375, %s376, %s377
      %p381 = pneg %p375
      %p382 = scmp.eq.s32.totalorder %s25, 1
      %p383 = por %p381, %p382
      %p384 = scmp.ne.s32.totalorder %s376, %s379
      %p385 = scmp.eq.s32.totalorder %s25, 0
      %p386 = por %p384, %p385
      %p387 = scmp.ne.s32.totalorder %s376, %s379
      %p388 = scmp.eq.s32.totalorder %s30, 1
      %p389 = por %p387, %p388
      %p390 = scmp.ne.s32.totalorder %s379, %s380
      %p391 = scmp.eq.s32.totalorder %s30, 0
      %p392 = por %p390, %p391
      %p393 = scmp.ne.s32.totalorder %s379, %s380
      %p394 = scmp.eq.s32.totalorder %s31, 1
      %p395 = por %p393, %p394
      %p397 = scmp.ne.s32.totalorder %s380, %s396
      %p398 = scmp.eq.s32.totalorder %s31, 0
      %p399 = por %p397, %p398
      %p400 = scmp.le.s32.totalorder 1, %s25
      %p401 = scmp.lt.s32.totalorder %s25, 3
      %p402 = pnand %p400, %p401
      %p403 = pneg %p402
      // Predicated region
      $region9: #{tpu_custom_call.1} parent=5 // pred_check
        _
      $region10: #{tpu_custom_call.1} parent=5 // pred_check_branch
        %405 = sbr.rel (%p402) target = $region12
      $region11: #{tpu_custom_call.1} parent=5 // pred_region
        %s406 = ssub.s32 %s25, 1
        // Predicated region
        $region13: #{tpu_custom_call.1} parent=11 // pred_check
          %p407 = pneg %p72
        $region14: #{tpu_custom_call.1} parent=11 // pred_check_branch
          %409 = sbr.rel (%p407) target = $region16
        $region15: #{tpu_custom_call.1} parent=11 // pred_region
          _
        $region16: #{tpu_custom_call.1} parent=11 // pred_fallthru
          _
        // Predicated region
        $region17: #{tpu_custom_call.1} parent=11 // pred_check
          %p410 = pneg %p93
        $region18: #{tpu_custom_call.1} parent=11 // pred_check_branch
          %412 = sbr.rel (%p410) target = $region20
        $region19: #{tpu_custom_call.1} parent=11 // pred_region
          _
        $region20: #{tpu_custom_call.1} parent=11 // pred_fallthru
          _
        // Predicated region
        $region21: #{tpu_custom_call.1} parent=11 // pred_check
          %p413 = pneg %p114
        $region22: #{tpu_custom_call.1} parent=11 // pred_check_branch
          %415 = sbr.rel (%p413) target = $region24
        $region23: #{tpu_custom_call.1} parent=11 // pred_region
          _
        $region24: #{tpu_custom_call.1} parent=11 // pred_fallthru
          _
        // Predicated region
        $region25: #{tpu_custom_call.1} parent=11 // pred_check
          %p416 = pneg %p135
        $region26: #{tpu_custom_call.1} parent=11 // pred_check_branch
          %418 = sbr.rel (%p416) target = $region28
        $region27: #{tpu_custom_call.1} parent=11 // pred_region
          _
        $region28: #{tpu_custom_call.1} parent=11 // pred_fallthru
          _
        // Predicated region
        $region29: #{tpu_custom_call.1} parent=11 // pred_check
          %p419 = pneg %p156
        $region30: #{tpu_custom_call.1} parent=11 // pred_check_branch
          %421 = sbr.rel (%p419) target = $region32
        $region31: #{tpu_custom_call.1} parent=11 // pred_region
          _
        $region32: #{tpu_custom_call.1} parent=11 // pred_fallthru
          _
        // Predicated region
        $region33: #{tpu_custom_call.1} parent=11 // pred_check
          %p422 = pneg %p177
        $region34: #{tpu_custom_call.1} parent=11 // pred_check_branch
          %424 = sbr.rel (%p422) target = $region36
        $region35: #{tpu_custom_call.1} parent=11 // pred_region
          _
        $region36: #{tpu_custom_call.1} parent=11 // pred_fallthru
          _
        // Predicated region
        $region37: #{tpu_custom_call.1} parent=11 // pred_check
          %p425 = pneg %p198
        $region38: #{tpu_custom_call.1} parent=11 // pred_check_branch
          %427 = sbr.rel (%p425) target = $region40
        $region39: #{tpu_custom_call.1} parent=11 // pred_region
          _
        $region40: #{tpu_custom_call.1} parent=11 // pred_fallthru
          _
        // Predicated region
        $region41: #{tpu_custom_call.1} parent=11 // pred_check
          %p428 = pneg %p219
        $region42: #{tpu_custom_call.1} parent=11 // pred_check_branch
          %430 = sbr.rel (%p428) target = $region44
        $region43: #{tpu_custom_call.1} parent=11 // pred_region
          _
        $region44: #{tpu_custom_call.1} parent=11 // pred_fallthru
          _
        // Predicated region
        $region45: #{tpu_custom_call.1} parent=11 // pred_check
          %p431 = pneg %p240
        $region46: #{tpu_custom_call.1} parent=11 // pred_check_branch
          %433 = sbr.rel (%p431) target = $region48
        $region47: #{tpu_custom_call.1} parent=11 // pred_region
          _
        $region48: #{tpu_custom_call.1} parent=11 // pred_fallthru
          _
        // Predicated region
        $region49: #{tpu_custom_call.1} parent=11 // pred_check
          %p434 = pneg %p261
        $region50: #{tpu_custom_call.1} parent=11 // pred_check_branch
          %436 = sbr.rel (%p434) target = $region52
        $region51: #{tpu_custom_call.1} parent=11 // pred_region
          _
        $region52: #{tpu_custom_call.1} parent=11 // pred_fallthru
          _
        // Predicated region
        $region53: #{tpu_custom_call.1} parent=11 // pred_check
          %p437 = pneg %p282
        $region54: #{tpu_custom_call.1} parent=11 // pred_check_branch
          %439 = sbr.rel (%p437) target = $region56
        $region55: #{tpu_custom_call.1} parent=11 // pred_region
          _
        $region56: #{tpu_custom_call.1} parent=11 // pred_fallthru
          _
        // Predicated region
        $region57: #{tpu_custom_call.1} parent=11 // pred_check
          %p440 = pneg %p303
        $region58: #{tpu_custom_call.1} parent=11 // pred_check_branch
          %442 = sbr.rel (%p440) target = $region60
        $region59: #{tpu_custom_call.1} parent=11 // pred_region
          _
        $region60: #{tpu_custom_call.1} parent=11 // pred_fallthru
          _
        // Predicated region
        $region61: #{tpu_custom_call.1} parent=11 // pred_check
          %p443 = pneg %p324
        $region62: #{tpu_custom_call.1} parent=11 // pred_check_branch
          %445 = sbr.rel (%p443) target = $region64
        $region63: #{tpu_custom_call.1} parent=11 // pred_region
          _
        $region64: #{tpu_custom_call.1} parent=11 // pred_fallthru
          _
        // Predicated region
        $region65: #{tpu_custom_call.1} parent=11 // pred_check
          %p446 = pneg %p345
        $region66: #{tpu_custom_call.1} parent=11 // pred_check_branch
          %448 = sbr.rel (%p446) target = $region68
        $region67: #{tpu_custom_call.1} parent=11 // pred_region
          _
        $region68: #{tpu_custom_call.1} parent=11 // pred_fallthru
          _
        // Predicated region
        $region69: #{tpu_custom_call.1} parent=11 // pred_check
          %p449 = pneg %p366
        $region70: #{tpu_custom_call.1} parent=11 // pred_check_branch
          %451 = sbr.rel (%p449) target = $region72
        $region71: #{tpu_custom_call.1} parent=11 // pred_region
          _
        $region72: #{tpu_custom_call.1} parent=11 // pred_fallthru
          _
      $region12: #{tpu_custom_call.1} parent=5 // pred_fallthru
        _
      %p452 = scmp.lt.s32.totalorder %s25, 2
      // Predicated region
      $region73: #{tpu_custom_call.1} parent=5 // pred_check
        %p453 = pneg %p452
      $region74: #{tpu_custom_call.1} parent=5 // pred_check_branch
        %455 = sbr.rel (%p453) target = $region76
      $region75: #{tpu_custom_call.1} parent=5 // pred_region
        // Predicated region
        $region77: #{tpu_custom_call.1} parent=75 // pred_check
          %p456 = pneg %p45
        $region78: #{tpu_custom_call.1} parent=75 // pred_check_branch
          %458 = sbr.rel (%p456) target = $region80
        $region79: #{tpu_custom_call.1} parent=75 // pred_region
          %p459 = scmp.lt.s32.totalorder %s25, 1
          %s460 = scalar_select %p459, %s25, 1
          %s461 = smul.addr %s460, 8
          %s462 = scalar_lea.vmem %s0, %s461
        $region80: #{tpu_custom_call.1} parent=75 // pred_fallthru
          _
      $region76: #{tpu_custom_call.1} parent=5 // pred_fallthru
        _
      %p463 = scmp.le.s32.totalorder 1, %s25
      %p464 = scmp.lt.s32.totalorder %s25, 3
      %p465 = pnand %p463, %p464
      %p466 = pneg %p465
      // Predicated region
      $region81: #{tpu_custom_call.1} parent=5 // pred_check
        _
      $region82: #{tpu_custom_call.1} parent=5 // pred_check_branch
        %468 = sbr.rel (%p465) target = $region84
      $region83: #{tpu_custom_call.1} parent=5 // pred_region
        %s469 = ssub.s32 %s25, 1
        %p470 = scmp.lt.s32.totalorder %s30, 1
        %s471 = scalar_select %p470, %s30, 1
        %s472 = smul.addr %s471, 8
        %s473 = scalar_lea.vmem %s0, %s472
        %p474 = pneg %p51
        %p475 = pneg %p48
        %p476 = pneg %p72
        %p477 = pneg %p69
        %p478 = pneg %p93
        %p479 = pneg %p90
        %p480 = pneg %p114
        %p481 = pneg %p111
        %p482 = pneg %p135
        %p483 = pneg %p132
        %p484 = pneg %p156
        %p485 = pneg %p153
        %p486 = pneg %p177
        %p487 = pneg %p174
        %p488 = pneg %p198
        %p489 = pneg %p195
        %p490 = pneg %p219
        %p491 = pneg %p216
        %p492 = pneg %p240
        %p493 = pneg %p237
        %p494 = pneg %p261
        %p495 = pneg %p258
        %p496 = pneg %p282
        %p497 = pneg %p279
        %p498 = pneg %p303
        %p499 = pneg %p300
        %p500 = pneg %p324
        %p501 = pneg %p321
        %p502 = pneg %p345
        %p503 = pneg %p342
        %p504 = pneg %p366
        %p505 = pneg %p363
        %p506 = pneg %p392
        %p507 = pneg %p389
        %s508 = sand.u32 %s379, 1
        %s509 = scalar_lea.sflag [#allocation3], %s508
        %s510 = sand.u32 %s379, 1
        %s511 = smul.addr %s510, 8
        %s512 = scalar_lea.vmem [#allocation2], %s511
        %p513 = scmp.lt.s32.totalorder %s30, 1
        %s514 = scalar_select %p513, %s30, 1
        %s515 = smul.addr %s514, 8
        %s516 = scalar_lea.vmem %s0, %s515
        %v518 = vld [vmem:[%s1] sm:$0x1]
        %v519 = vld [vmem:[%s2] sm:$0x1]
        %v520 = vld [vmem:[%s3] sm:$0xf]
        %v521 = vld [vmem:[%s3 + $0x4] sm:$0xf]
        %v522 = vld [vmem:[%s3 + $0x8] sm:$0xf]
        %v523 = vld [vmem:[%s3 + $0xc] sm:$0xf]
        %v524 = vld [vmem:[%s4] sm:$0x1]
        %v525 = vld [vmem:[%s5] sm:$0xf]
        %v526 = vld [vmem:[%s5 + $0x4] sm:$0xf]
        %v527 = vld [vmem:[%s5 + $0x8] sm:$0xf]
        %v528 = vld [vmem:[%s5 + $0xc] sm:$0xf]
        %v529 = vld [vmem:[%s6] sm:$0x1]
        %v530 = vld [vmem:[%s7] sm:$0x1]
        %v531 = vld [vmem:[%s8] sm:$0x1]
        %v532 = vld [vmem:[%s9] sm:$0xf]
        %v533 = vld [vmem:[%s9 + $0x4] sm:$0xf]
        %v534 = vld [vmem:[%s9 + $0x8] sm:$0xf]
        %v535 = vld [vmem:[%s9 + $0xc] sm:$0xf]
        %v536 = vld [vmem:[%s10] sm:$0x1]
        %v537 = vld [vmem:[%s11] sm:$0xf]
        %v538 = vld [vmem:[%s11 + $0x4] sm:$0xf]
        %v539 = vld [vmem:[%s11 + $0x8] sm:$0xf]
        %v540 = vld [vmem:[%s11 + $0xc] sm:$0xf]
        %v541 = vld [vmem:[%s11 + $0x10] sm:$0xf]
        %v542 = vld [vmem:[%s11 + $0x14] sm:$0xf]
        %v543 = vld [vmem:[%s11 + $0x18] sm:$0xf]
        %v544 = vld [vmem:[%s11 + $0x1c] sm:$0xf]
        %v545 = vld [vmem:[%s11 + $0x20] sm:$0xf]
        %v546 = vld [vmem:[%s11 + $0x24] sm:$0xf]
        %v547 = vld [vmem:[%s11 + $0x28] sm:$0xf]
        %v548 = vld [vmem:[%s11 + $0x2c] sm:$0xf]
        %v549 = vld [vmem:[%s11 + $0x30] sm:$0xf]
        %v550 = vld [vmem:[%s11 + $0x34] sm:$0xf]
        %v551 = vld [vmem:[%s11 + $0x38] sm:$0xf]
        %v552 = vld [vmem:[%s11 + $0x3c] sm:$0xf]
        %v553 = vld [vmem:[%s12] sm:$0x1]
        %v554 = vld [vmem:[%s13] sm:$0xff]
        %v555 = vld [vmem:[%s14] sm:$0xff]
        %v556 = vld [vmem:[%s15] sm:$0xff]
        %v557 = vld [vmem:[%s516] sm:$0xff]
        %vm558 = vcmask 261120
        %v559 = vsel %vm558, %v557, 0.0
        %560 = vadd.xlane.f32.xlu0 %v559
        %v561 = vpop.xlane.xlu0 %560
        %v562 = vrcp.pop 32.0
        %v563 = vmul.f32 %v561, %v562
        %v564 = vsub.f32 %v557, %v563
        %v565 = vmul.f32 %v564, %v564
        %v566 = vsel %vm558, %v565, 0.0
        %567 = vadd.xlane.f32.xlu0 %v566
        %v568 = vpop.xlane.xlu0 %567
        %v569 = vmul.f32 %v568, %v562
        %v570 = vadd.f32 %v569, 1e-05
        %v571 = vrsqrt.pop %v570
        %v572 = vmul.f32 %v564, %v571
        %v574 = vlaneseq
        %v575 = vshrl.u32 %v574, 7
        %v576 = vsub.s32 0, %v575
        %v577 = vrot.slane %v518, %v576
        %v579 = vmul.f32 %v572, %v577
        %v581 = vlaneseq
        %v582 = vshrl.u32 %v581, 7
        %v583 = vsub.s32 0, %v582
        %v584 = vrot.slane %v519, %v583
        %v586 = vadd.f32 %v579, %v584
        %v587 = vpack.c.bf16 %v586, %v586
        %v589 = vlaneseq
        %v590 = vshrl.u32 %v589, 7
        %v591 = vsub.s32 0, %v590
        %v592 = vrot.slane %v524, %v591
        %v598 = vunpack.c.l.b16 %v520
        %v599 = vunpack.c.l.b16 %v521
        %v600 = vunpack.c.l.b16 %v522
        %v601 = vunpack.c.l.b16 %v523
        %v602 = vpack.c.b16 %v599, %v598
        %v603 = vpack.c.b16 %v601, %v600
        %v607 = vsel %vm558, %v587, 0
        %609 = vmatprep.subr.bf16.mxu0 0
        %610 = vmatpush1.bf16.msra.mxu0 %v602
        %611 = vmatprep.subr.bf16.mxu0 0
        %612 = vmatpush1.bf16.msra.mxu0 %v603
        %613 = vmatprep.subr.bf16.mxu0 0
        %614 = vmatpush1.bf16.msra.mxu0 0
        %615 = vmatprep.subr.bf16.mxu0 0
        %616 = vmatpush1.bf16.msra.mxu0 0
        %617 = vmatprep.subr.bf16.mxu0 0
        %618 = vmatpush1.bf16.msra.mxu0 0
        %619 = vmatprep.subr.bf16.mxu0 0
        %620 = vmatpush1.bf16.msra.mxu0 0
        %621 = vmatprep.subr.bf16.mxu0 0
        %622 = vmatpush1.bf16.msra.mxu0 0
        %623 = vmatprep.subr.bf16.mxu0 0
        %624 = vmatpush1.bf16.msra.mxu0 0
        %625 = vmatprep.subr.bf16.mxu0 0
        %626 = vmatpush1.bf16.msra.mxu0 0
        %627 = vmatprep.subr.bf16.mxu0 0
        %628 = vmatpush1.bf16.msra.mxu0 0
        %629 = vmatprep.subr.bf16.mxu0 0
        %630 = vmatpush1.bf16.msra.mxu0 0
        %631 = vmatprep.subr.bf16.mxu0 0
        %632 = vmatpush1.bf16.msra.mxu0 0
        %633 = vmatprep.subr.bf16.mxu0 0
        %634 = vmatpush1.bf16.msra.mxu0 0
        %635 = vmatprep.subr.bf16.mxu0 0
        %636 = vmatpush1.bf16.msra.mxu0 0
        %637 = vmatprep.subr.bf16.mxu0 0
        %638 = vmatpush1.bf16.msra.mxu0 0
        %639 = vmatprep.subr.bf16.mxu0 0
        %640 = vmatpush1.bf16.msra.mxu0 0
        %641 = vmatprep.mubr.bf16.mxu0 0
        %642 = vmatmul.mubr.bf16.gmra.mrb[0].mxu0 %v607
        %v643 = vpop.f32.mrb[0].mxu0
        %v644 = vadd.f32 %v592, %v643
        %v645 = vpop.f32.mrb[0].mxu0
        %v646 = vpop.f32.mrb[0].mxu0
        %v647 = vpop.f32.mrb[0].mxu0
        %648 = vdwg.mxu0
        %650 = vrot.lane.b32.xlu0 %v644, 120
        %v651 = vpop.permute.xlu0 %650
        %653 = vrot.lane.b32.xlu0 %v644, 112
        %v654 = vpop.permute.xlu0 %653
        %656 = vrot.lane.b32.xlu0 %v644, 104
        %v657 = vpop.permute.xlu0 %656
        %v659 = vmul.f32 %v644, %v554
        %v660 = vmul.f32 %v651, %v554
        %v661 = vmul.f32 %v654, %v554
        %v662 = vmul.f32 %v657, %v554
        %v663 = vsub.f32 0.0, %v644
        %v664 = vsub.f32 0.0, %v651
        %v665 = vsub.f32 0.0, %v654
        %v666 = vsub.f32 0.0, %v657
        %671 = vrot.lane.b32.xlu0 %v663, 124
        %v672 = vpop.permute.xlu0 %671
        %673 = vrot.lane.b32.xlu0 %v664, 124
        %v674 = vpop.permute.xlu0 %673
        %675 = vrot.lane.b32.xlu0 %v665, 124
        %v676 = vpop.permute.xlu0 %675
        %677 = vrot.lane.b32.xlu0 %v666, 124
        %v678 = vpop.permute.xlu0 %677
        %683 = vrot.lane.b32.xlu0 %v644, 4
        %v684 = vpop.permute.xlu0 %683
        %685 = vrot.lane.b32.xlu0 %v651, 4
        %v686 = vpop.permute.xlu0 %685
        %687 = vrot.lane.b32.xlu0 %v654, 4
        %v688 = vpop.permute.xlu0 %687
        %689 = vrot.lane.b32.xlu0 %v657, 4
        %v690 = vpop.permute.xlu0 %689
        %vm695 = vcmask 31744
        %v696 = vsel %vm695, %v672, %v684
        %v697 = vsel %vm695, %v674, %v686
        %v698 = vsel %vm695, %v676, %v688
        %v699 = vsel %vm695, %v678, %v690
        %v700 = vmul.f32 %v696, %v555
        %v701 = vmul.f32 %v697, %v555
        %v702 = vmul.f32 %v698, %v555
        %v703 = vmul.f32 %v699, %v555
        %v704 = vadd.f32 %v659, %v700
        %v705 = vadd.f32 %v660, %v701
        %v706 = vadd.f32 %v661, %v702
        %v707 = vadd.f32 %v662, %v703
        %709 = vrot.lane.b32.xlu0 %v554, 32
        %v710 = vpop.permute.xlu0 %709
        %v712 = vmul.f32 %v644, %v710
        %v713 = vmul.f32 %v651, %v710
        %v714 = vmul.f32 %v654, %v710
        %v715 = vmul.f32 %v657, %v710
        %716 = vrot.lane.b32.xlu0 %v663, 92
        %v717 = vpop.permute.xlu0 %716
        %718 = vrot.lane.b32.xlu0 %v664, 92
        %v719 = vpop.permute.xlu0 %718
        %720 = vrot.lane.b32.xlu0 %v665, 92
        %v721 = vpop.permute.xlu0 %720
        %722 = vrot.lane.b32.xlu0 %v666, 92
        %v723 = vpop.permute.xlu0 %722
        %728 = vrot.lane.b32.xlu0 %v644, 100
        %v729 = vpop.permute.xlu0 %728
        %730 = vrot.lane.b32.xlu0 %v651, 100
        %v731 = vpop.permute.xlu0 %730
        %732 = vrot.lane.b32.xlu0 %v654, 100
        %v733 = vpop.permute.xlu0 %732
        %734 = vrot.lane.b32.xlu0 %v657, 100
        %v735 = vpop.permute.xlu0 %734
        %v740 = vsel %vm695, %v717, %v729
        %v741 = vsel %vm695, %v719, %v731
        %v742 = vsel %vm695, %v721, %v733
        %v743 = vsel %vm695, %v723, %v735
        %v744 = vmul.f32 %v740, %v555
        %v745 = vmul.f32 %v741, %v555
        %v746 = vmul.f32 %v742, %v555
        %v747 = vmul.f32 %v743, %v555
        %752 = vrot.lane.b32.xlu0 %v744, 32
        %v753 = vpop.permute.xlu0 %752
        %754 = vrot.lane.b32.xlu0 %v745, 32
        %v755 = vpop.permute.xlu0 %754
        %756 = vrot.lane.b32.xlu0 %v746, 32
        %v757 = vpop.permute.xlu0 %756
        %758 = vrot.lane.b32.xlu0 %v747, 32
        %v759 = vpop.permute.xlu0 %758
        %v764 = vadd.f32 %v712, %v753
        %v765 = vadd.f32 %v713, %v755
        %v766 = vadd.f32 %v714, %v757
        %v767 = vadd.f32 %v715, %v759
        %v768 = vpack.c.bf16 %v704, %v704
        %v769 = vpack.c.bf16 %v705, %v705
        %v770 = vpack.c.bf16 %v706, %v706
        %v771 = vpack.c.bf16 %v707, %v707
        %v772 = vpack.c.bf16 %v764, %v764
        %v773 = vpack.c.bf16 %v765, %v765
        %v774 = vpack.c.bf16 %v766, %v766
        %v775 = vpack.c.bf16 %v767, %v767
        %777 = vrot.lane.b32.xlu0 %v772, 96
        %v778 = vpop.permute.xlu0 %777
        %vm779 = vcmask 64512
        %v781 = vsel %vm779, %v768, 0
        %v784 = vsel %vm779, %v778, 0
        %786 = vmatprep.subr.bf16.mxu0 0
        %787 = vmatpush1.bf16.xpose.msra.mxu0 %v784
        %788 = vmatprep.subr.bf16.mxu0 0
        %789 = vmatpush1.bf16.xpose.msra.mxu0 0
        %790 = vmatprep.subr.bf16.mxu0 0
        %791 = vmatpush1.bf16.xpose.msra.mxu0 0
        %792 = vmatprep.subr.bf16.mxu0 0
        %793 = vmatpush1.bf16.xpose.msra.mxu0 0
        %794 = vmatprep.subr.bf16.mxu0 0
        %795 = vmatpush1.bf16.xpose.msra.mxu0 0
        %796 = vmatprep.subr.bf16.mxu0 0
        %797 = vmatpush1.bf16.xpose.msra.mxu0 0
        %798 = vmatprep.subr.bf16.mxu0 0
        %799 = vmatpush1.bf16.xpose.msra.mxu0 0
        %800 = vmatprep.subr.bf16.mxu0 0
        %801 = vmatpush1.bf16.xpose.msra.mxu0 0
        %802 = vmatprep.subr.bf16.mxu0 0
        %803 = vmatpush1.bf16.xpose.msra.mxu0 0
        %804 = vmatprep.subr.bf16.mxu0 0
        %805 = vmatpush1.bf16.xpose.msra.mxu0 0
        %806 = vmatprep.subr.bf16.mxu0 0
        %807 = vmatpush1.bf16.xpose.msra.mxu0 0
        %808 = vmatprep.subr.bf16.mxu0 0
        %809 = vmatpush1.bf16.xpose.msra.mxu0 0
        %810 = vmatprep.subr.bf16.mxu0 0
        %811 = vmatpush1.bf16.xpose.msra.mxu0 0
        %812 = vmatprep.subr.bf16.mxu0 0
        %813 = vmatpush1.bf16.xpose.msra.mxu0 0
        %814 = vmatprep.subr.bf16.mxu0 0
        %815 = vmatpush1.bf16.xpose.msra.mxu0 0
        %816 = vmatprep.subr.bf16.mxu0 0
        %817 = vmatpush1.bf16.xpose.msra.mxu0 0
        %818 = vmatprep.mubr.bf16.mxu0 0
        %819 = vmatmul.mubr.bf16.gmra.mrb[0].mxu0 %v781
        %v820 = vpop.f32.mrb[0].mxu0
        %v821 = vadd.f32 %v556, %v820
        %v822 = vpop.f32.mrb[0].mxu0
        %v823 = vpop.f32.mrb[0].mxu0
        %v824 = vpop.f32.mrb[0].mxu0
        %825 = vdwg.mxu0
        %827 = vrot.lane.b32.xlu0 %v773, 96
        %v828 = vpop.permute.xlu0 %827
        %v830 = vsel %vm779, %v769, 0
        %v833 = vsel %vm779, %v828, 0
        %835 = vmatprep.subr.bf16.mxu0 0
        %836 = vmatpush1.bf16.xpose.msra.mxu0 %v833
        %837 = vmatprep.subr.bf16.mxu0 0
        %838 = vmatpush1.bf16.xpose.msra.mxu0 0
        %839 = vmatprep.subr.bf16.mxu0 0
        %840 = vmatpush1.bf16.xpose.msra.mxu0 0
        %841 = vmatprep.subr.bf16.mxu0 0
        %842 = vmatpush1.bf16.xpose.msra.mxu0 0
        %843 = vmatprep.subr.bf16.mxu0 0
        %844 = vmatpush1.bf16.xpose.msra.mxu0 0
        %845 = vmatprep.subr.bf16.mxu0 0
        %846 = vmatpush1.bf16.xpose.msra.mxu0 0
        %847 = vmatprep.subr.bf16.mxu0 0
        %848 = vmatpush1.bf16.xpose.msra.mxu0 0
        %849 = vmatprep.subr.bf16.mxu0 0
        %850 = vmatpush1.bf16.xpose.msra.mxu0 0
        %851 = vmatprep.subr.bf16.mxu0 0
        %852 = vmatpush1.bf16.xpose.msra.mxu0 0
        %853 = vmatprep.subr.bf16.mxu0 0
        %854 = vmatpush1.bf16.xpose.msra.mxu0 0
        %855 = vmatprep.subr.bf16.mxu0 0
        %856 = vmatpush1.bf16.xpose.msra.mxu0 0
        %857 = vmatprep.subr.bf16.mxu0 0
        %858 = vmatpush1.bf16.xpose.msra.mxu0 0
        %859 = vmatprep.subr.bf16.mxu0 0
        %860 = vmatpush1.bf16.xpose.msra.mxu0 0
        %861 = vmatprep.subr.bf16.mxu0 0
        %862 = vmatpush1.bf16.xpose.msra.mxu0 0
        %863 = vmatprep.subr.bf16.mxu0 0
        %864 = vmatpush1.bf16.xpose.msra.mxu0 0
        %865 = vmatprep.subr.bf16.mxu0 0
        %866 = vmatpush1.bf16.xpose.msra.mxu0 0
        %867 = vmatprep.mubr.bf16.mxu0 0
        %868 = vmatmul.mubr.bf16.gmra.mrb[0].mxu0 %v830
        %v869 = vpop.f32.mrb[0].mxu0
        %v870 = vadd.f32 %v556, %v869
        %v871 = vpop.f32.mrb[0].mxu0
        %v872 = vpop.f32.mrb[0].mxu0
        %v873 = vpop.f32.mrb[0].mxu0
        %874 = vdwg.mxu0
        %876 = vrot.lane.b32.xlu0 %v774, 96
        %v877 = vpop.permute.xlu0 %876
        %v879 = vsel %vm779, %v770, 0
        %v882 = vsel %vm779, %v877, 0
        %884 = vmatprep.subr.bf16.mxu0 0
        %885 = vmatpush1.bf16.xpose.msra.mxu0 %v882
        %886 = vmatprep.subr.bf16.mxu0 0
        %887 = vmatpush1.bf16.xpose.msra.mxu0 0
        %888 = vmatprep.subr.bf16.mxu0 0
        %889 = vmatpush1.bf16.xpose.msra.mxu0 0
        %890 = vmatprep.subr.bf16.mxu0 0
        %891 = vmatpush1.bf16.xpose.msra.mxu0 0
        %892 = vmatprep.subr.bf16.mxu0 0
        %893 = vmatpush1.bf16.xpose.msra.mxu0 0
        %894 = vmatprep.subr.bf16.mxu0 0
        %895 = vmatpush1.bf16.xpose.msra.mxu0 0
        %896 = vmatprep.subr.bf16.mxu0 0
        %897 = vmatpush1.bf16.xpose.msra.mxu0 0
        %898 = vmatprep.subr.bf16.mxu0 0
        %899 = vmatpush1.bf16.xpose.msra.mxu0 0
        %900 = vmatprep.subr.bf16.mxu0 0
        %901 = vmatpush1.bf16.xpose.msra.mxu0 0
        %902 = vmatprep.subr.bf16.mxu0 0
        %903 = vmatpush1.bf16.xpose.msra.mxu0 0
        %904 = vmatprep.subr.bf16.mxu0 0
        %905 = vmatpush1.bf16.xpose.msra.mxu0 0
        %906 = vmatprep.subr.bf16.mxu0 0
        %907 = vmatpush1.bf16.xpose.msra.mxu0 0
        %908 = vmatprep.subr.bf16.mxu0 0
        %909 = vmatpush1.bf16.xpose.msra.mxu0 0
        %910 = vmatprep.subr.bf16.mxu0 0
        %911 = vmatpush1.bf16.xpose.msra.mxu0 0
        %912 = vmatprep.subr.bf16.mxu0 0
        %913 = vmatpush1.bf16.xpose.msra.mxu0 0
        %914 = vmatprep.subr.bf16.mxu0 0
        %915 = vmatpush1.bf16.xpose.msra.mxu0 0
        %916 = vmatprep.mubr.bf16.mxu0 0
        %917 = vmatmul.mubr.bf16.gmra.mrb[0].mxu0 %v879
        %v918 = vpop.f32.mrb[0].mxu0
        %v919 = vadd.f32 %v556, %v918
        %v920 = vpop.f32.mrb[0].mxu0
        %v921 = vpop.f32.mrb[0].mxu0
        %v922 = vpop.f32.mrb[0].mxu0
        %923 = vdwg.mxu0
        %925 = vrot.lane.b32.xlu0 %v775, 96
        %v926 = vpop.permute.xlu0 %925
        %v928 = vsel %vm779, %v771, 0
        %v931 = vsel %vm779, %v926, 0
        %933 = vmatprep.subr.bf16.mxu0 0
        %934 = vmatpush1.bf16.xpose.msra.mxu0 %v931
        %935 = vmatprep.subr.bf16.mxu0 0
        %936 = vmatpush1.bf16.xpose.msra.mxu0 0
        %937 = vmatprep.subr.bf16.mxu0 0
        %938 = vmatpush1.bf16.xpose.msra.mxu0 0
        %939 = vmatprep.subr.bf16.mxu0 0
        %940 = vmatpush1.bf16.xpose.msra.mxu0 0
        %941 = vmatprep.subr.bf16.mxu0 0
        %942 = vmatpush1.bf16.xpose.msra.mxu0 0
        %943 = vmatprep.subr.bf16.mxu0 0
        %944 = vmatpush1.bf16.xpose.msra.mxu0 0
        %945 = vmatprep.subr.bf16.mxu0 0
        %946 = vmatpush1.bf16.xpose.msra.mxu0 0
        %947 = vmatprep.subr.bf16.mxu0 0
        %948 = vmatpush1.bf16.xpose.msra.mxu0 0
        %949 = vmatprep.subr.bf16.mxu0 0
        %950 = vmatpush1.bf16.xpose.msra.mxu0 0
        %951 = vmatprep.subr.bf16.mxu0 0
        %952 = vmatpush1.bf16.xpose.msra.mxu0 0
        %953 = vmatprep.subr.bf16.mxu0 0
        %954 = vmatpush1.bf16.xpose.msra.mxu0 0
        %955 = vmatprep.subr.bf16.mxu0 0
        %956 = vmatpush1.bf16.xpose.msra.mxu0 0
        %957 = vmatprep.subr.bf16.mxu0 0
        %958 = vmatpush1.bf16.xpose.msra.mxu0 0
        %959 = vmatprep.subr.bf16.mxu0 0
        %960 = vmatpush1.bf16.xpose.msra.mxu0 0
        %961 = vmatprep.subr.bf16.mxu0 0
        %962 = vmatpush1.bf16.xpose.msra.mxu0 0
        %963 = vmatprep.subr.bf16.mxu0 0
        %964 = vmatpush1.bf16.xpose.msra.mxu0 0
        %965 = vmatprep.mubr.bf16.mxu0 0
        %966 = vmatmul.mubr.bf16.gmra.mrb[0].mxu0 %v928
        %v967 = vpop.f32.mrb[0].mxu0
        %v968 = vadd.f32 %v556, %v967
        %v969 = vpop.f32.mrb[0].mxu0
        %v970 = vpop.f32.mrb[0].mxu0
        %v971 = vpop.f32.mrb[0].mxu0
        %972 = vdwg.mxu0
        %v973 = vsel %vm779, %v821, -inf
        %974 = vmax.xlane.f32.xlu0 %v973
        %v975 = vpop.xlane.xlu0 %974
        %v976 = vsel %vm779, %v870, -inf
        %977 = vmax.xlane.f32.xlu0 %v976
        %v978 = vpop.xlane.xlu0 %977
        %v979 = vsel %vm779, %v919, -inf
        %980 = vmax.xlane.f32.xlu0 %v979
        %v981 = vpop.xlane.xlu0 %980
        %v982 = vsel %vm779, %v968, -inf
        %983 = vmax.xlane.f32.xlu0 %v982
        %v984 = vpop.xlane.xlu0 %983
        %v985 = vsub.f32 %v821, %v975
        %v986 = vsub.f32 %v870, %v978
        %v987 = vsub.f32 %v919, %v981
        %v988 = vsub.f32 %v968, %v984
        %v989 = vmul.f32 %v985, 1.442695
        %v990 = vpow.pop %v989
        %v991 = vmul.f32 %v986, 1.442695
        %v992 = vpow.pop %v991
        %v993 = vmul.f32 %v987, 1.442695
        %v994 = vpow.pop %v993
        %v995 = vmul.f32 %v988, 1.442695
        %v996 = vpow.pop %v995
        %v997 = vsel %vm779, %v990, 0.0
        %998 = vadd.xlane.f32.xlu0 %v997
        %v999 = vpop.xlane.xlu0 %998
        %v1000 = vsel %vm779, %v992, 0.0
        %1001 = vadd.xlane.f32.xlu0 %v1000
        %v1002 = vpop.xlane.xlu0 %1001
        %v1003 = vsel %vm779, %v994, 0.0
        %1004 = vadd.xlane.f32.xlu0 %v1003
        %v1005 = vpop.xlane.xlu0 %1004
        %v1006 = vsel %vm779, %v996, 0.0
        %1007 = vadd.xlane.f32.xlu0 %v1006
        %v1008 = vpop.xlane.xlu0 %1007
        %v1009 = vrcp.pop %v999
        %v1010 = vrcp.pop %v1002
        %v1011 = vrcp.pop %v1005
        %v1012 = vrcp.pop %v1008
        %v1013 = vmul.f32 %v990, %v1009
        %v1014 = vmul.f32 %v992, %v1010
        %v1015 = vmul.f32 %v994, %v1011
        %v1016 = vmul.f32 %v996, %v1012
        %v1017 = vpack.c.bf16 %v1013, %v1013
        %v1018 = vpack.c.bf16 %v1014, %v1014
        %v1019 = vpack.c.bf16 %v1015, %v1015
        %v1020 = vpack.c.bf16 %v1016, %v1016
        %v1021 = vpack.c.bf16 %v644, %v644
        %v1022 = vpack.c.bf16 %v651, %v651
        %v1023 = vpack.c.bf16 %v654, %v654
        %v1024 = vpack.c.bf16 %v657, %v657
        %1026 = vrot.lane.b32.xlu0 %v1021, 64
        %v1027 = vpop.permute.xlu0 %1026
        %v1029 = vsel %vm779, %v1017, 0
        %vm1031 = vcmask 1043456
        %v1033 = vsel %vm1031, %v1027, 0
        %1035 = vmatprep.subr.bf16.mxu0 0
        %1036 = vmatpush1.bf16.msra.mxu0 %v1033
        %1037 = vmatprep.subr.bf16.mxu0 0
        %1038 = vmatpush1.bf16.msra.mxu0 0
        %1039 = vmatprep.subr.bf16.mxu0 0
        %1040 = vmatpush1.bf16.msra.mxu0 0
        %1041 = vmatprep.subr.bf16.mxu0 0
        %1042 = vmatpush1.bf16.msra.mxu0 0
        %1043 = vmatprep.subr.bf16.mxu0 0
        %1044 = vmatpush1.bf16.msra.mxu0 0
        %1045 = vmatprep.subr.bf16.mxu0 0
        %1046 = vmatpush1.bf16.msra.mxu0 0
        %1047 = vmatprep.subr.bf16.mxu0 0
        %1048 = vmatpush1.bf16.msra.mxu0 0
        %1049 = vmatprep.subr.bf16.mxu0 0
        %1050 = vmatpush1.bf16.msra.mxu0 0
        %1051 = vmatprep.subr.bf16.mxu0 0
        %1052 = vmatpush1.bf16.msra.mxu0 0
        %1053 = vmatprep.subr.bf16.mxu0 0
        %1054 = vmatpush1.bf16.msra.mxu0 0
        %1055 = vmatprep.subr.bf16.mxu0 0
        %1056 = vmatpush1.bf16.msra.mxu0 0
        %1057 = vmatprep.subr.bf16.mxu0 0
        %1058 = vmatpush1.bf16.msra.mxu0 0
        %1059 = vmatprep.subr.bf16.mxu0 0
        %1060 = vmatpush1.bf16.msra.mxu0 0
        %1061 = vmatprep.subr.bf16.mxu0 0
        %1062 = vmatpush1.bf16.msra.mxu0 0
        %1063 = vmatprep.subr.bf16.mxu0 0
        %1064 = vmatpush1.bf16.msra.mxu0 0
        %1065 = vmatprep.subr.bf16.mxu0 0
        %1066 = vmatpush1.bf16.msra.mxu0 0
        %1067 = vmatprep.mubr.bf16.mxu0 0
        %1068 = vmatmul.mubr.bf16.gmra.mrb[0].mxu0 %v1029
        %v1069 = vpop.f32.mrb[0].mxu0
        %v1070 = vadd.f32 0.0, %v1069
        %v1071 = vpop.f32.mrb[0].mxu0
        %v1072 = vpop.f32.mrb[0].mxu0
        %v1073 = vpop.f32.mrb[0].mxu0
        %1074 = vdwg.mxu0
        %1076 = vrot.lane.b32.xlu0 %v1022, 64
        %v1077 = vpop.permute.xlu0 %1076
        %v1079 = vsel %vm779, %v1018, 0
        %v1082 = vsel %vm1031, %v1077, 0
        %1084 = vmatprep.subr.bf16.mxu0 0
        %1085 = vmatpush1.bf16.msra.mxu0 %v1082
        %1086 = vmatprep.subr.bf16.mxu0 0
        %1087 = vmatpush1.bf16.msra.mxu0 0
        %1088 = vmatprep.subr.bf16.mxu0 0
        %1089 = vmatpush1.bf16.msra.mxu0 0
        %1090 = vmatprep.subr.bf16.mxu0 0
        %1091 = vmatpush1.bf16.msra.mxu0 0
        %1092 = vmatprep.subr.bf16.mxu0 0
        %1093 = vmatpush1.bf16.msra.mxu0 0
        %1094 = vmatprep.subr.bf16.mxu0 0
        %1095 = vmatpush1.bf16.msra.mxu0 0
        %1096 = vmatprep.subr.bf16.mxu0 0
        %1097 = vmatpush1.bf16.msra.mxu0 0
        %1098 = vmatprep.subr.bf16.mxu0 0
        %1099 = vmatpush1.bf16.msra.mxu0 0
        %1100 = vmatprep.subr.bf16.mxu0 0
        %1101 = vmatpush1.bf16.msra.mxu0 0
        %1102 = vmatprep.subr.bf16.mxu0 0
        %1103 = vmatpush1.bf16.msra.mxu0 0
        %1104 = vmatprep.subr.bf16.mxu0 0
        %1105 = vmatpush1.bf16.msra.mxu0 0
        %1106 = vmatprep.subr.bf16.mxu0 0
        %1107 = vmatpush1.bf16.msra.mxu0 0
        %1108 = vmatprep.subr.bf16.mxu0 0
        %1109 = vmatpush1.bf16.msra.mxu0 0
        %1110 = vmatprep.subr.bf16.mxu0 0
        %1111 = vmatpush1.bf16.msra.mxu0 0
        %1112 = vmatprep.subr.bf16.mxu0 0
        %1113 = vmatpush1.bf16.msra.mxu0 0
        %1114 = vmatprep.subr.bf16.mxu0 0
        %1115 = vmatpush1.bf16.msra.mxu0 0
        %1116 = vmatprep.mubr.bf16.mxu0 0
        %1117 = vmatmul.mubr.bf16.gmra.mrb[0].mxu0 %v1079
        %v1118 = vpop.f32.mrb[0].mxu0
        %v1119 = vadd.f32 0.0, %v1118
        %v1120 = vpop.f32.mrb[0].mxu0
        %v1121 = vpop.f32.mrb[0].mxu0
        %v1122 = vpop.f32.mrb[0].mxu0
        %1123 = vdwg.mxu0
        %1125 = vrot.lane.b32.xlu0 %v1023, 64
        %v1126 = vpop.permute.xlu0 %1125
        %v1128 = vsel %vm779, %v1019, 0
        %v1131 = vsel %vm1031, %v1126, 0
        %1133 = vmatprep.subr.bf16.mxu0 0
        %1134 = vmatpush1.bf16.msra.mxu0 %v1131
        %1135 = vmatprep.subr.bf16.mxu0 0
        %1136 = vmatpush1.bf16.msra.mxu0 0
        %1137 = vmatprep.subr.bf16.mxu0 0
        %1138 = vmatpush1.bf16.msra.mxu0 0
        %1139 = vmatprep.subr.bf16.mxu0 0
        %1140 = vmatpush1.bf16.msra.mxu0 0
        %1141 = vmatprep.subr.bf16.mxu0 0
        %1142 = vmatpush1.bf16.msra.mxu0 0
        %1143 = vmatprep.subr.bf16.mxu0 0
        %1144 = vmatpush1.bf16.msra.mxu0 0
        %1145 = vmatprep.subr.bf16.mxu0 0
        %1146 = vmatpush1.bf16.msra.mxu0 0
        %1147 = vmatprep.subr.bf16.mxu0 0
        %1148 = vmatpush1.bf16.msra.mxu0 0
        %1149 = vmatprep.subr.bf16.mxu0 0
        %1150 = vmatpush1.bf16.msra.mxu0 0
        %1151 = vmatprep.subr.bf16.mxu0 0
        %1152 = vmatpush1.bf16.msra.mxu0 0
        %1153 = vmatprep.subr.bf16.mxu0 0
        %1154 = vmatpush1.bf16.msra.mxu0 0
        %1155 = vmatprep.subr.bf16.mxu0 0
        %1156 = vmatpush1.bf16.msra.mxu0 0
        %1157 = vmatprep.subr.bf16.mxu0 0
        %1158 = vmatpush1.bf16.msra.mxu0 0
        %1159 = vmatprep.subr.bf16.mxu0 0
        %1160 = vmatpush1.bf16.msra.mxu0 0
        %1161 = vmatprep.subr.bf16.mxu0 0
        %1162 = vmatpush1.bf16.msra.mxu0 0
        %1163 = vmatprep.subr.bf16.mxu0 0
        %1164 = vmatpush1.bf16.msra.mxu0 0
        %1165 = vmatprep.mubr.bf16.mxu0 0
        %1166 = vmatmul.mubr.bf16.gmra.mrb[0].mxu0 %v1128
        %v1167 = vpop.f32.mrb[0].mxu0
        %v1168 = vadd.f32 0.0, %v1167
        %v1169 = vpop.f32.mrb[0].mxu0
        %v1170 = vpop.f32.mrb[0].mxu0
        %v1171 = vpop.f32.mrb[0].mxu0
        %1172 = vdwg.mxu0
        %1174 = vrot.lane.b32.xlu0 %v1024, 64
        %v1175 = vpop.permute.xlu0 %1174
        %v1177 = vsel %vm779, %v1020, 0
        %v1180 = vsel %vm1031, %v1175, 0
        %1182 = vmatprep.subr.bf16.mxu0 0
        %1183 = vmatpush1.bf16.msra.mxu0 %v1180
        %1184 = vmatprep.subr.bf16.mxu0 0
        %1185 = vmatpush1.bf16.msra.mxu0 0
        %1186 = vmatprep.subr.bf16.mxu0 0
        %1187 = vmatpush1.bf16.msra.mxu0 0
        %1188 = vmatprep.subr.bf16.mxu0 0
        %1189 = vmatpush1.bf16.msra.mxu0 0
        %1190 = vmatprep.subr.bf16.mxu0 0
        %1191 = vmatpush1.bf16.msra.mxu0 0
        %1192 = vmatprep.subr.bf16.mxu0 0
        %1193 = vmatpush1.bf16.msra.mxu0 0
        %1194 = vmatprep.subr.bf16.mxu0 0
        %1195 = vmatpush1.bf16.msra.mxu0 0
        %1196 = vmatprep.subr.bf16.mxu0 0
        %1197 = vmatpush1.bf16.msra.mxu0 0
        %1198 = vmatprep.subr.bf16.mxu0 0
        %1199 = vmatpush1.bf16.msra.mxu0 0
        %1200 = vmatprep.subr.bf16.mxu0 0
        %1201 = vmatpush1.bf16.msra.mxu0 0
        %1202 = vmatprep.subr.bf16.mxu0 0
        %1203 = vmatpush1.bf16.msra.mxu0 0
        %1204 = vmatprep.subr.bf16.mxu0 0
        %1205 = vmatpush1.bf16.msra.mxu0 0
        %1206 = vmatprep.subr.bf16.mxu0 0
        %1207 = vmatpush1.bf16.msra.mxu0 0
        %1208 = vmatprep.subr.bf16.mxu0 0
        %1209 = vmatpush1.bf16.msra.mxu0 0
        %1210 = vmatprep.subr.bf16.mxu0 0
        %1211 = vmatpush1.bf16.msra.mxu0 0
        %1212 = vmatprep.subr.bf16.mxu0 0
        %1213 = vmatpush1.bf16.msra.mxu0 0
        %1214 = vmatprep.mubr.bf16.mxu0 0
        %1215 = vmatmul.mubr.bf16.gmra.mrb[0].mxu0 %v1177
        %v1216 = vpop.f32.mrb[0].mxu0
        %v1217 = vadd.f32 0.0, %v1216
        %v1218 = vpop.f32.mrb[0].mxu0
        %v1219 = vpop.f32.mrb[0].mxu0
        %v1220 = vpop.f32.mrb[0].mxu0
        %1221 = vdwg.mxu0
        %1223 = vrot.lane.b32.xlu0 %v1119, 8
        %v1224 = vpop.permute.xlu0 %1223
        %1227 = vrot.lane.b32.xlu0 %v1168, 16
        %v1228 = vpop.permute.xlu0 %1227
        %1231 = vrot.lane.b32.xlu0 %v1217, 24
        %v1232 = vpop.permute.xlu0 %1231
        %v1234 = vsel %vm779, %v1070, %v1224
        %vm1235 = vcmask 130048
        %v1236 = vsel %vm1235, %v1234, %v1228
        %vm1237 = vcmask 195584
        %v1238 = vsel %vm1237, %v1236, %v1232
        %v1239 = vpack.c.bf16 %v1238, %v1238
        %v1244 = vunpack.c.l.b16 %v525
        %v1245 = vunpack.c.l.b16 %v526
        %v1246 = vunpack.c.l.b16 %v527
        %v1247 = vunpack.c.l.b16 %v528
        %v1248 = vpack.c.b16 %v1245, %v1244
        %v1249 = vpack.c.b16 %v1247, %v1246
        %v1253 = vsel %vm558, %v1239, 0
        %1255 = vmatprep.subr.bf16.mxu0 0
        %1256 = vmatpush1.bf16.msra.mxu0 %v1248
        %1257 = vmatprep.subr.bf16.mxu0 0
        %1258 = vmatpush1.bf16.msra.mxu0 %v1249
        %1259 = vmatprep.subr.bf16.mxu0 0
        %1260 = vmatpush1.bf16.msra.mxu0 0
        %1261 = vmatprep.subr.bf16.mxu0 0
        %1262 = vmatpush1.bf16.msra.mxu0 0
        %1263 = vmatprep.subr.bf16.mxu0 0
        %1264 = vmatpush1.bf16.msra.mxu0 0
        %1265 = vmatprep.subr.bf16.mxu0 0
        %1266 = vmatpush1.bf16.msra.mxu0 0
        %1267 = vmatprep.subr.bf16.mxu0 0
        %1268 = vmatpush1.bf16.msra.mxu0 0
        %1269 = vmatprep.subr.bf16.mxu0 0
        %1270 = vmatpush1.bf16.msra.mxu0 0
        %1271 = vmatprep.subr.bf16.mxu0 0
        %1272 = vmatpush1.bf16.msra.mxu0 0
        %1273 = vmatprep.subr.bf16.mxu0 0
        %1274 = vmatpush1.bf16.msra.mxu0 0
        %1275 = vmatprep.subr.bf16.mxu0 0
        %1276 = vmatpush1.bf16.msra.mxu0 0
        %1277 = vmatprep.subr.bf16.mxu0 0
        %1278 = vmatpush1.bf16.msra.mxu0 0
        %1279 = vmatprep.subr.bf16.mxu0 0
        %1280 = vmatpush1.bf16.msra.mxu0 0
        %1281 = vmatprep.subr.bf16.mxu0 0
        %1282 = vmatpush1.bf16.msra.mxu0 0
        %1283 = vmatprep.subr.bf16.mxu0 0
        %1284 = vmatpush1.bf16.msra.mxu0 0
        %1285 = vmatprep.subr.bf16.mxu0 0
        %1286 = vmatpush1.bf16.msra.mxu0 0
        %1287 = vmatprep.mubr.bf16.mxu0 0
        %1288 = vmatmul.mubr.bf16.gmra.mrb[0].mxu0 %v1253
        %v1289 = vpop.f32.mrb[0].mxu0
        %v1290 = vadd.f32 0.0, %v1289
        %v1291 = vpop.f32.mrb[0].mxu0
        %v1292 = vpop.f32.mrb[0].mxu0
        %v1293 = vpop.f32.mrb[0].mxu0
        %1294 = vdwg.mxu0
        %v1295 = vadd.f32 %v557, %v1290
        %v1297 = vlaneseq
        %v1298 = vshrl.u32 %v1297, 7
        %v1299 = vsub.s32 0, %v1298
        %v1300 = vrot.slane %v529, %v1299
        %v1302 = vadd.f32 %v1295, %v1300
        %v1303 = vsel %vm558, %v1302, 0.0
        %1304 = vadd.xlane.f32.xlu0 %v1303
        %v1305 = vpop.xlane.xlu0 %1304
        %v1306 = vmul.f32 %v1305, %v562
        %v1307 = vsub.f32 %v1302, %v1306
        %v1308 = vmul.f32 %v1307, %v1307
        %v1309 = vsel %vm558, %v1308, 0.0
        %1310 = vadd.xlane.f32.xlu0 %v1309
        %v1311 = vpop.xlane.xlu0 %1310
        %v1312 = vmul.f32 %v1311, %v562
        %v1313 = vadd.f32 %v1312, 1e-05
        %v1314 = vrsqrt.pop %v1313
        %v1315 = vmul.f32 %v1307, %v1314
        %v1317 = vlaneseq
        %v1318 = vshrl.u32 %v1317, 7
        %v1319 = vsub.s32 0, %v1318
        %v1320 = vrot.slane %v530, %v1319
        %v1322 = vmul.f32 %v1315, %v1320
        %v1324 = vlaneseq
        %v1325 = vshrl.u32 %v1324, 7
        %v1326 = vsub.s32 0, %v1325
        %v1327 = vrot.slane %v531, %v1326
        %v1329 = vadd.f32 %v1322, %v1327
        %v1330 = vpack.c.bf16 %v1329, %v1329
        %v1332 = vlaneseq
        %v1333 = vshrl.u32 %v1332, 7
        %v1334 = vsub.s32 0, %v1333
        %v1335 = vrot.slane %v536, %v1334
        %v1341 = vunpack.c.l.b16 %v532
        %v1342 = vunpack.c.l.b16 %v533
        %v1343 = vunpack.c.l.b16 %v534
        %v1344 = vunpack.c.l.b16 %v535
        %v1345 = vpack.c.b16 %v1342, %v1341
        %v1346 = vpack.c.b16 %v1344, %v1343
        %v1350 = vsel %vm558, %v1330, 0
        %1352 = vmatprep.subr.bf16.mxu0 0
        %1353 = vmatpush1.bf16.msra.mxu0 %v1345
        %1354 = vmatprep.subr.bf16.mxu0 0
        %1355 = vmatpush1.bf16.msra.mxu0 %v1346
        %1356 = vmatprep.subr.bf16.mxu0 0
        %1357 = vmatpush1.bf16.msra.mxu0 0
        %1358 = vmatprep.subr.bf16.mxu0 0
        %1359 = vmatpush1.bf16.msra.mxu0 0
        %1360 = vmatprep.subr.bf16.mxu0 0
        %1361 = vmatpush1.bf16.msra.mxu0 0
        %1362 = vmatprep.subr.bf16.mxu0 0
        %1363 = vmatpush1.bf16.msra.mxu0 0
        %1364 = vmatprep.subr.bf16.mxu0 0
        %1365 = vmatpush1.bf16.msra.mxu0 0
        %1366 = vmatprep.subr.bf16.mxu0 0
        %1367 = vmatpush1.bf16.msra.mxu0 0
        %1368 = vmatprep.subr.bf16.mxu0 0
        %1369 = vmatpush1.bf16.msra.mxu0 0
        %1370 = vmatprep.subr.bf16.mxu0 0
        %1371 = vmatpush1.bf16.msra.mxu0 0
        %1372 = vmatprep.subr.bf16.mxu0 0
        %1373 = vmatpush1.bf16.msra.mxu0 0
        %1374 = vmatprep.subr.bf16.mxu0 0
        %1375 = vmatpush1.bf16.msra.mxu0 0
        %1376 = vmatprep.subr.bf16.mxu0 0
        %1377 = vmatpush1.bf16.msra.mxu0 0
        %1378 = vmatprep.subr.bf16.mxu0 0
        %1379 = vmatpush1.bf16.msra.mxu0 0
        %1380 = vmatprep.subr.bf16.mxu0 0
        %1381 = vmatpush1.bf16.msra.mxu0 0
        %1382 = vmatprep.subr.bf16.mxu0 0
        %1383 = vmatpush1.bf16.msra.mxu0 0
        %1384 = vmatprep.mubr.bf16.mxu0 0
        %1385 = vmatmul.mubr.bf16.gmra.mrb[0].mxu0 %v1350
        %v1386 = vpop.f32.mrb[0].mxu0
        %v1387 = vadd.f32 %v1335, %v1386
        %v1388 = vpop.f32.mrb[0].mxu0
        %v1389 = vpop.f32.mrb[0].mxu0
        %v1390 = vpop.f32.mrb[0].mxu0
        %1391 = vdwg.mxu0
        %v1392 = vmul.f32 %v1387, 0.5
        %v1393 = vmul.f32 %v1387, 0.70710677
        %v1394 = vand.u32 2147483647, %v1393
        %v1395 = vmul.f32 %v1394, 0.3275911
        %v1396 = vadd.f32 %v1395, 1.0
        %v1397 = vrcp.pop %v1396
        %v1398 = vmul.f32 1.0, %v1397
        %v1399 = vmul.f32 %v1398, 1.0614054
        %v1400 = vadd.f32 %v1399, -1.4531521
        %v1401 = vmul.f32 %v1398, %v1400
        %v1402 = vadd.f32 %v1401, 1.4214138
        %v1403 = vmul.f32 %v1398, %v1402
        %v1404 = vadd.f32 %v1403, -0.28449672
        %v1405 = vmul.f32 %v1398, %v1404
        %v1406 = vadd.f32 %v1405, 0.2548296
        %v1407 = vmul.f32 %v1398, %v1406
        %v1408 = vsub.f32 0.0, %v1394
        %v1409 = vmul.f32 %v1408, %v1394
        %v1410 = vmul.f32 %v1409, 1.442695
        %v1411 = vpow.pop %v1410
        %v1412 = vmul.f32 %v1407, %v1411
        %v1413 = vsub.f32 1.0, %v1412
        %vm1414 = vcmp.ge.f32.partialorder %v1393, 0.0
        %v1415 = vsub.f32 0.0, %v1413
        %v1416 = vsel %vm1414, %v1413, %v1415
        %v1417 = vadd.f32 %v1416, 1.0
        %v1418 = vmul.f32 %v1392, %v1417
        %v1419 = vpack.c.bf16 %v1418, %v1418
        %v1421 = vlaneseq
        %v1422 = vshrl.u32 %v1421, 7
        %v1423 = vsub.s32 0, %v1422
        %v1424 = vrot.slane %v553, %v1423
        %v1442 = vunpack.c.l.b16 %v537
        %v1443 = vunpack.c.l.b16 %v538
        %v1444 = vunpack.c.l.b16 %v539
        %v1445 = vunpack.c.l.b16 %v540
        %v1446 = vunpack.c.l.b16 %v541
        %v1447 = vunpack.c.l.b16 %v542
        %v1448 = vunpack.c.l.b16 %v543
        %v1449 = vunpack.c.l.b16 %v544
        %v1450 = vunpack.c.l.b16 %v545
        %v1451 = vunpack.c.l.b16 %v546
        %v1452 = vunpack.c.l.b16 %v547
        %v1453 = vunpack.c.l.b16 %v548
        %v1454 = vunpack.c.l.b16 %v549
        %v1455 = vunpack.c.l.b16 %v550
        %v1456 = vunpack.c.l.b16 %v551
        %v1457 = vunpack.c.l.b16 %v552
        %v1458 = vpack.c.b16 %v1443, %v1442
        %v1459 = vpack.c.b16 %v1445, %v1444
        %v1460 = vpack.c.b16 %v1447, %v1446
        %v1461 = vpack.c.b16 %v1449, %v1448
        %v1462 = vpack.c.b16 %v1451, %v1450
        %v1463 = vpack.c.b16 %v1453, %v1452
        %v1464 = vpack.c.b16 %v1455, %v1454
        %v1465 = vpack.c.b16 %v1457, %v1456
        %1474 = vmatprep.subr.bf16.mxu0 0
        %1475 = vmatpush1.bf16.msra.mxu0 %v1458
        %1476 = vmatprep.subr.bf16.mxu0 0
        %1477 = vmatpush1.bf16.msra.mxu0 %v1459
        %1478 = vmatprep.subr.bf16.mxu0 0
        %1479 = vmatpush1.bf16.msra.mxu0 %v1460
        %1480 = vmatprep.subr.bf16.mxu0 0
        %1481 = vmatpush1.bf16.msra.mxu0 %v1461
        %1482 = vmatprep.subr.bf16.mxu0 0
        %1483 = vmatpush1.bf16.msra.mxu0 %v1462
        %1484 = vmatprep.subr.bf16.mxu0 0
        %1485 = vmatpush1.bf16.msra.mxu0 %v1463
        %1486 = vmatprep.subr.bf16.mxu0 0
        %1487 = vmatpush1.bf16.msra.mxu0 %v1464
        %1488 = vmatprep.subr.bf16.mxu0 0
        %1489 = vmatpush1.bf16.msra.mxu0 %v1465
        %1490 = vmatprep.subr.bf16.mxu0 0
        %1491 = vmatpush1.bf16.msra.mxu0 0
        %1492 = vmatprep.subr.bf16.mxu0 0
        %1493 = vmatpush1.bf16.msra.mxu0 0
        %1494 = vmatprep.subr.bf16.mxu0 0
        %1495 = vmatpush1.bf16.msra.mxu0 0
        %1496 = vmatprep.subr.bf16.mxu0 0
        %1497 = vmatpush1.bf16.msra.mxu0 0
        %1498 = vmatprep.subr.bf16.mxu0 0
        %1499 = vmatpush1.bf16.msra.mxu0 0
        %1500 = vmatprep.subr.bf16.mxu0 0
        %1501 = vmatpush1.bf16.msra.mxu0 0
        %1502 = vmatprep.subr.bf16.mxu0 0
        %1503 = vmatpush1.bf16.msra.mxu0 0
        %1504 = vmatprep.subr.bf16.mxu0 0
        %1505 = vmatpush1.bf16.msra.mxu0 0
        %1506 = vmatprep.mubr.bf16.mxu0 0
        %1507 = vmatmul.mubr.bf16.gmra.mrb[0].mxu0 %v1419
        %v1508 = vpop.f32.mrb[0].mxu0
        %v1509 = vadd.f32 %v1424, %v1508
        %v1510 = vpop.f32.mrb[0].mxu0
        %v1511 = vpop.f32.mrb[0].mxu0
        %v1512 = vpop.f32.mrb[0].mxu0
        %1513 = vdwg.mxu0
        %v1514 = vadd.f32 %v1302, %v1509
        %1515 = vst.msk [vmem:[%s512] sm:$0xff] %vm558, %v1514
        %s1516 = sand.u32 %s379, 1
        %s1517 = scalar_lea.sflag [#allocation3], %s1516
        %s1518 = sand.u32 %s379, 1
        %s1519 = smul.addr %s1518, 8
        %s1520 = scalar_lea.vmem [#allocation2], %s1519
        // Predicated region
        $region85: #{tpu_custom_call.1} parent=83 // pred_check
          %p1521 = pneg %p389
        $region86: #{tpu_custom_call.1} parent=83 // pred_check_branch
          %1523 = sbr.rel (%p1521) target = $region88
        $region87: #{tpu_custom_call.1} parent=83 // pred_region
          %s1525 = ssub.s32 128, 128
          %1526 = vsyncadd %s1517, %s1525
          %s1527 = smul.addr %s30, 128
          %s1528 = scalar_lea.hbm %s16, %s1527
          %s1530 = sshll.u32 %s1520, 4
          %s1531 = int_to_ptr.vmem [resolvable:$true] %s1530
          %1533 = dma.vmem_to_hbm [thread:$0]  %s1531, 128, %s1528, %s1517
        $region88: #{tpu_custom_call.1} parent=83 // pred_fallthru
          _
      $region84: #{tpu_custom_call.1} parent=5 // pred_fallthru
        _
      %p1534 = scmp.le.s32.totalorder 2, %s25
      // Predicated region
      $region89: #{tpu_custom_call.1} parent=5 // pred_check
        %p1535 = pneg %p1534
      $region90: #{tpu_custom_call.1} parent=5 // pred_check_branch
        %1537 = sbr.rel (%p1535) target = $region92
      $region91: #{tpu_custom_call.1} parent=5 // pred_region
        %s1538 = ssub.s32 %s25, 2
        // Predicated region
        $region93: #{tpu_custom_call.1} parent=91 // pred_check
          %p1539 = pneg %p395
        $region94: #{tpu_custom_call.1} parent=91 // pred_check_branch
          %1541 = sbr.rel (%p1539) target = $region96
        $region95: #{tpu_custom_call.1} parent=91 // pred_region
          %s1542 = sand.u32 %s380, 1
          %s1543 = scalar_lea.sflag [#allocation3], %s1542
          %s1544 = sand.u32 %s380, 1
          %s1545 = smul.addr %s1544, 8
          %s1546 = scalar_lea.vmem [#allocation2], %s1545
          %1547 = dma.done %s1543, 128
        $region96: #{tpu_custom_call.1} parent=91 // pred_fallthru
          _
      $region92: #{tpu_custom_call.1} parent=5 // pred_fallthru
        _
    $region6: #{tpu_custom_call.1} parent=1 // loop_footer
      %s29 = sadd.s32 1, %s25
    $region7: #{tpu_custom_call.1} parent=1 // loop_footer_branch
      %24 = sbr.rel target = $region3
    $region8: #{tpu_custom_call.1} parent=1 // loop_exit
      _
    %1548 = vsyncpa [#allocation3], 1
    %s1549 = scalar_lea.sflag [#allocation3], 1
    %1550 = vsyncpa %s1549, 1

// kernel: tpu_custom_call.1
$region0: #{tpu_custom_call.1}
  #allocation0 [shape = 'u32[]', space=smem, size = 0x4, offset = 0x4, fixed_abs, tag = 'smem constant byte address 0x4 - core index']
  #allocation1 [shape = 'u32[144,128]{1,0:T(1,128)}', space=vmem, size = 0x12000, scoped, tag = 'internal scratch']
  %s0 = inlined_call_operand.vmem [shape: f32[2,8,32], index: 0, kind: input, shape index: {}]
  %s1 = inlined_call_operand.vmem [shape: f32[1,32], index: 1, kind: input, shape index: {}]
  %s2 = inlined_call_operand.vmem [shape: f32[1,32], index: 2, kind: input, shape index: {}]
  %s3 = inlined_call_operand.vmem [shape: bf16[32,96], index: 3, kind: input, shape index: {}]
  %s4 = inlined_call_operand.vmem [shape: f32[1,96], index: 4, kind: input, shape index: {}]
  %s5 = inlined_call_operand.vmem [shape: bf16[32,32], index: 5, kind: input, shape index: {}]
  %s6 = inlined_call_operand.vmem [shape: f32[1,32], index: 6, kind: input, shape index: {}]
  %s7 = inlined_call_operand.vmem [shape: f32[1,32], index: 7, kind: input, shape index: {}]
  %s8 = inlined_call_operand.vmem [shape: f32[1,32], index: 8, kind: input, shape index: {}]
  %s9 = inlined_call_operand.vmem [shape: bf16[32,128], index: 9, kind: input, shape index: {}]
  %s10 = inlined_call_operand.vmem [shape: f32[1,128], index: 10, kind: input, shape index: {}]
  %s11 = inlined_call_operand.vmem [shape: bf16[128,32], index: 11, kind: input, shape index: {}]
  %s12 = inlined_call_operand.vmem [shape: f32[1,32], index: 12, kind: input, shape index: {}]
  %s13 = inlined_call_operand.vmem [shape: f32[8,8], index: 13, kind: input, shape index: {}]
  %s14 = inlined_call_operand.vmem [shape: f32[8,8], index: 14, kind: input, shape index: {}]
  %s15 = inlined_call_operand.vmem [shape: f32[8,8], index: 15, kind: input, shape index: {}]
  %s16 = inlined_call_operand.hbm [shape: f32[2,8,32], index: 16, kind: output, shape index: {}]
  %s17 = sld [smem:[#allocation0]]
  $region97: #{tpu_custom_call.1} parent=0
    _
  %s19 = ssub.s32 1, %s17
  %s20 = scalar_select 0, %s19, %s17
  $region1: #{tpu_custom_call.1} parent=0
    #allocation2 [shape = 'u8[8192]{0}', space=vmem, size = 0x2000, scoped, tag = 'output window, operand 0']
    #allocation3 [shape = 's32[2]{0}', space=sflag, size = 0x8, scoped, tag = 'scoped memory for tpu_custom_call.1']
    %21 = vsyncpa [#allocation3], 0
    %s22 = scalar_lea.sflag [#allocation3], 1
    %23 = vsyncpa %s22, 0
    loop: start=0, step=1, limit=4
    $region2: #{tpu_custom_call.1} parent=1 // loop_pre_header
      _
    $region3: #{tpu_custom_call.1} parent=1 // loop_header
      %s25 = sphi 0, %s29
      %p26 = scmp.ge.s32.totalorder %s25, 4
      %s35 = sphi 0, %s37
      %s38 = sphi 0, %s35
      %s39 = sphi 0, %s38
      %s55 = sphi 0, %s39
      %s59 = sphi 0, %s59
      %s61 = sphi 0, %s59
      %s62 = sphi 0, %s61
      %s76 = sphi 0, %s62
      %s80 = sphi 0, %s80
      %s82 = sphi 0, %s80
      %s83 = sphi 0, %s82
      %s97 = sphi 0, %s83
      %s101 = sphi 0, %s101
      %s103 = sphi 0, %s101
      %s104 = sphi 0, %s103
      %s118 = sphi 0, %s104
      %s122 = sphi 0, %s122
      %s124 = sphi 0, %s122
      %s125 = sphi 0, %s124
      %s139 = sphi 0, %s125
      %s143 = sphi 0, %s143
      %s145 = sphi 0, %s143
      %s146 = sphi 0, %s145
      %s160 = sphi 0, %s146
      %s164 = sphi 0, %s164
      %s166 = sphi 0, %s164
      %s167 = sphi 0, %s166
      %s181 = sphi 0, %s167
      %s185 = sphi 0, %s185
      %s187 = sphi 0, %s185
      %s188 = sphi 0, %s187
      %s202 = sphi 0, %s188
      %s206 = sphi 0, %s206
      %s208 = sphi 0, %s206
      %s209 = sphi 0, %s208
      %s223 = sphi 0, %s209
      %s227 = sphi 0, %s227
      %s229 = sphi 0, %s227
      %s230 = sphi 0, %s229
      %s244 = sphi 0, %s230
      %s248 = sphi 0, %s248
      %s250 = sphi 0, %s248
      %s251 = sphi 0, %s250
      %s265 = sphi 0, %s251
      %s269 = sphi 0, %s269
      %s271 = sphi 0, %s269
      %s272 = sphi 0, %s271
      %s286 = sphi 0, %s272
      %s290 = sphi 0, %s290
      %s292 = sphi 0, %s290
      %s293 = sphi 0, %s292
      %s307 = sphi 0, %s293
      %s311 = sphi 0, %s311
      %s313 = sphi 0, %s311
      %s314 = sphi 0, %s313
      %s328 = sphi 0, %s314
      %s332 = sphi 0, %s332
      %s334 = sphi 0, %s332
      %s335 = sphi 0, %s334
      %s349 = sphi 0, %s335
      %s353 = sphi 0, %s353
      %s355 = sphi 0, %s353
      %s356 = sphi 0, %s355
      %s370 = sphi 0, %s356
      %s376 = sphi 0, %s378
      %s379 = sphi 0, %s376
      %s380 = sphi 0, %s379
      %s396 = sphi 0, %s380
    $region4: #{tpu_custom_call.1} parent=1 // loop_header_branch
      %28 = sbr.rel (%p26) target = $region8
    $region5: #{tpu_custom_call.1} parent=1 // loop_body
      %s30 = ssub.s32 %s25, 1
      %s31 = ssub.s32 %s25, 2
      %s32 = sadd.s32 %s25, 1
      %s33 = ssub.s32 %s25, %s32
      %p34 = scmp.eq.s32.totalorder %s33, 0
      %s36 = sadd.s32 %s35, 1
      %s37 = scalar_select %p34, %s35, %s36
      %p40 = pneg %p34
      %p41 = scmp.eq.s32.totalorder %s25, 1
      %p42 = por %p40, %p41
      %p43 = scmp.ne.s32.totalorder %s35, %s38
      %p44 = scmp.eq.s32.totalorder %s25, 0
      %p45 = por %p43, %p44
      %p46 = scmp.ne.s32.totalorder %s35, %s38
      %p47 = scmp.eq.s32.totalorder %s30, 1
      %p48 = por %p46, %p47
      %p49 = scmp.ne.s32.totalorder %s38, %s39
      %p50 = scmp.eq.s32.totalorder %s30, 0
      %p51 = por %p49, %p50
      %p52 = scmp.ne.s32.totalorder %s38, %s39
      %p53 = scmp.eq.s32.totalorder %s31, 1
      %p54 = por %p52, %p53
      %p56 = scmp.ne.s32.totalorder %s39, %s55
      %p57 = scmp.eq.s32.totalorder %s31, 0
      %p58 = por %p56, %p57
      %s60 = sadd.s32 %s59, 1
      %p63 = scmp.eq.s32.totalorder %s25, 1
      %p64 = scmp.ne.s32.totalorder %s59, %s61
      %p65 = scmp.eq.s32.totalorder %s25, 0
      %p66 = por %p64, %p65
      %p67 = scmp.ne.s32.totalorder %s59, %s61
      %p68 = scmp.eq.s32.totalorder %s30, 1
      %p69 = por %p67, %p68
      %p70 = scmp.ne.s32.totalorder %s61, %s62
      %p71 = scmp.eq.s32.totalorder %s30, 0
      %p72 = por %p70, %p71
      %p73 = scmp.ne.s32.totalorder %s61, %s62
      %p74 = scmp.eq.s32.totalorder %s31, 1
      %p75 = por %p73, %p74
      %p77 = scmp.ne.s32.totalorder %s62, %s76
      %p78 = scmp.eq.s32.totalorder %s31, 0
      %p79 = por %p77, %p78
      %s81 = sadd.s32 %s80, 1
      %p84 = scmp.eq.s32.totalorder %s25, 1
      %p85 = scmp.ne.s32.totalorder %s80, %s82
      %p86 = scmp.eq.s32.totalorder %s25, 0
      %p87 = por %p85, %p86
      %p88 = scmp.ne.s32.totalorder %s80, %s82
      %p89 = scmp.eq.s32.totalorder %s30, 1
      %p90 = por %p88, %p89
      %p91 = scmp.ne.s32.totalorder %s82, %s83
      %p92 = scmp.eq.s32.totalorder %s30, 0
      %p93 = por %p91, %p92
      %p94 = scmp.ne.s32.totalorder %s82, %s83
      %p95 = scmp.eq.s32.totalorder %s31, 1
      %p96 = por %p94, %p95
      %p98 = scmp.ne.s32.totalorder %s83, %s97
      %p99 = scmp.eq.s32.totalorder %s31, 0
      %p100 = por %p98, %p99
      %s102 = sadd.s32 %s101, 1
      %p105 = scmp.eq.s32.totalorder %s25, 1
      %p106 = scmp.ne.s32.totalorder %s101, %s103
      %p107 = scmp.eq.s32.totalorder %s25, 0
      %p108 = por %p106, %p107
      %p109 = scmp.ne.s32.totalorder %s101, %s103
      %p110 = scmp.eq.s32.totalorder %s30, 1
      %p111 = por %p109, %p110
      %p112 = scmp.ne.s32.totalorder %s103, %s104
      %p113 = scmp.eq.s32.totalorder %s30, 0
      %p114 = por %p112, %p113
      %p115 = scmp.ne.s32.totalorder %s103, %s104
      %p116 = scmp.eq.s32.totalorder %s31, 1
      %p117 = por %p115, %p116
      %p119 = scmp.ne.s32.totalorder %s104, %s118
      %p120 = scmp.eq.s32.totalorder %s31, 0
      %p121 = por %p119, %p120
      %s123 = sadd.s32 %s122, 1
      %p126 = scmp.eq.s32.totalorder %s25, 1
      %p127 = scmp.ne.s32.totalorder %s122, %s124
      %p128 = scmp.eq.s32.totalorder %s25, 0
      %p129 = por %p127, %p128
      %p130 = scmp.ne.s32.totalorder %s122, %s124
      %p131 = scmp.eq.s32.totalorder %s30, 1
      %p132 = por %p130, %p131
      %p133 = scmp.ne.s32.totalorder %s124, %s125
      %p134 = scmp.eq.s32.totalorder %s30, 0
      %p135 = por %p133, %p134
      %p136 = scmp.ne.s32.totalorder %s124, %s125
      %p137 = scmp.eq.s32.totalorder %s31, 1
      %p138 = por %p136, %p137
      %p140 = scmp.ne.s32.totalorder %s125, %s139
      %p141 = scmp.eq.s32.totalorder %s31, 0
      %p142 = por %p140, %p141
      %s144 = sadd.s32 %s143, 1
      %p147 = scmp.eq.s32.totalorder %s25, 1
      %p148 = scmp.ne.s32.totalorder %s143, %s145
      %p149 = scmp.eq.s32.totalorder %s25, 0
      %p150 = por %p148, %p149
      %p151 = scmp.ne.s32.totalorder %s143, %s145
      %p152 = scmp.eq.s32.totalorder %s30, 1
      %p153 = por %p151, %p152
      %p154 = scmp.ne.s32.totalorder %s145, %s146
      %p155 = scmp.eq.s32.totalorder %s30, 0
      %p156 = por %p154, %p155
      %p157 = scmp.ne.s32.totalorder %s145, %s146
      %p158 = scmp.eq.s32.totalorder %s31, 1
      %p159 = por %p157, %p158
      %p161 = scmp.ne.s32.totalorder %s146, %s160
      %p162 = scmp.eq.s32.totalorder %s31, 0
      %p163 = por %p161, %p162
      %s165 = sadd.s32 %s164, 1
      %p168 = scmp.eq.s32.totalorder %s25, 1
      %p169 = scmp.ne.s32.totalorder %s164, %s166
      %p170 = scmp.eq.s32.totalorder %s25, 0
      %p171 = por %p169, %p170
      %p172 = scmp.ne.s32.totalorder %s164, %s166
      %p173 = scmp.eq.s32.totalorder %s30, 1
      %p174 = por %p172, %p173
      %p175 = scmp.ne.s32.totalorder %s166, %s167
      %p176 = scmp.eq.s32.totalorder %s30, 0
      %p177 = por %p175, %p176
      %p178 = scmp.ne.s32.totalorder %s166, %s167
      %p179 = scmp.eq.s32.totalorder %s31, 1
      %p180 = por %p178, %p179
      %p182 = scmp.ne.s32.totalorder %s167, %s181
      %p183 = scmp.eq.s32.totalorder %s31, 0
      %p184 = por %p182, %p183
      %s186 = sadd.s32 %s185, 1
      %p189 = scmp.eq.s32.totalorder %s25, 1
      %p190 = scmp.ne.s32.totalorder %s185, %s187
      %p191 = scmp.eq.s32.totalorder %s25, 0
      %p192 = por %p190, %p191
      %p193 = scmp.ne.s32.totalorder %s185, %s187
      %p194 = scmp.eq.s32.totalorder %s30, 1
      %p195 = por %p193, %p194
      %p196 = scmp.ne.s32.totalorder %s187, %s188
      %p197 = scmp.eq.s32.totalorder %s30, 0
      %p198 = por %p196, %p197
      %p199 = scmp.ne.s32.totalorder %s187, %s188
      %p200 = scmp.eq.s32.totalorder %s31, 1
      %p201 = por %p199, %p200
      %p203 = scmp.ne.s32.totalorder %s188, %s202
      %p204 = scmp.eq.s32.totalorder %s31, 0
      %p205 = por %p203, %p204
      %s207 = sadd.s32 %s206, 1
      %p210 = scmp.eq.s32.totalorder %s25, 1
      %p211 = scmp.ne.s32.totalorder %s206, %s208
      %p212 = scmp.eq.s32.totalorder %s25, 0
      %p213 = por %p211, %p212
      %p214 = scmp.ne.s32.totalorder %s206, %s208
      %p215 = scmp.eq.s32.totalorder %s30, 1
      %p216 = por %p214, %p215
      %p217 = scmp.ne.s32.totalorder %s208, %s209
      %p218 = scmp.eq.s32.totalorder %s30, 0
      %p219 = por %p217, %p218
      %p220 = scmp.ne.s32.totalorder %s208, %s209
      %p221 = scmp.eq.s32.totalorder %s31, 1
      %p222 = por %p220, %p221
      %p224 = scmp.ne.s32.totalorder %s209, %s223
      %p225 = scmp.eq.s32.totalorder %s31, 0
      %p226 = por %p224, %p225
      %s228 = sadd.s32 %s227, 1
      %p231 = scmp.eq.s32.totalorder %s25, 1
      %p232 = scmp.ne.s32.totalorder %s227, %s229
      %p233 = scmp.eq.s32.totalorder %s25, 0
      %p234 = por %p232, %p233
      %p235 = scmp.ne.s32.totalorder %s227, %s229
      %p236 = scmp.eq.s32.totalorder %s30, 1
      %p237 = por %p235, %p236
      %p238 = scmp.ne.s32.totalorder %s229, %s230
      %p239 = scmp.eq.s32.totalorder %s30, 0
      %p240 = por %p238, %p239
      %p241 = scmp.ne.s32.totalorder %s229, %s230
      %p242 = scmp.eq.s32.totalorder %s31, 1
      %p243 = por %p241, %p242
      %p245 = scmp.ne.s32.totalorder %s230, %s244
      %p246 = scmp.eq.s32.totalorder %s31, 0
      %p247 = por %p245, %p246
      %s249 = sadd.s32 %s248, 1
      %p252 = scmp.eq.s32.totalorder %s25, 1
      %p253 = scmp.ne.s32.totalorder %s248, %s250
      %p254 = scmp.eq.s32.totalorder %s25, 0
      %p255 = por %p253, %p254
      %p256 = scmp.ne.s32.totalorder %s248, %s250
      %p257 = scmp.eq.s32.totalorder %s30, 1
      %p258 = por %p256, %p257
      %p259 = scmp.ne.s32.totalorder %s250, %s251
      %p260 = scmp.eq.s32.totalorder %s30, 0
      %p261 = por %p259, %p260
      %p262 = scmp.ne.s32.totalorder %s250, %s251
      %p263 = scmp.eq.s32.totalorder %s31, 1
      %p264 = por %p262, %p263
      %p266 = scmp.ne.s32.totalorder %s251, %s265
      %p267 = scmp.eq.s32.totalorder %s31, 0
      %p268 = por %p266, %p267
      %s270 = sadd.s32 %s269, 1
      %p273 = scmp.eq.s32.totalorder %s25, 1
      %p274 = scmp.ne.s32.totalorder %s269, %s271
      %p275 = scmp.eq.s32.totalorder %s25, 0
      %p276 = por %p274, %p275
      %p277 = scmp.ne.s32.totalorder %s269, %s271
      %p278 = scmp.eq.s32.totalorder %s30, 1
      %p279 = por %p277, %p278
      %p280 = scmp.ne.s32.totalorder %s271, %s272
      %p281 = scmp.eq.s32.totalorder %s30, 0
      %p282 = por %p280, %p281
      %p283 = scmp.ne.s32.totalorder %s271, %s272
      %p284 = scmp.eq.s32.totalorder %s31, 1
      %p285 = por %p283, %p284
      %p287 = scmp.ne.s32.totalorder %s272, %s286
      %p288 = scmp.eq.s32.totalorder %s31, 0
      %p289 = por %p287, %p288
      %s291 = sadd.s32 %s290, 1
      %p294 = scmp.eq.s32.totalorder %s25, 1
      %p295 = scmp.ne.s32.totalorder %s290, %s292
      %p296 = scmp.eq.s32.totalorder %s25, 0
      %p297 = por %p295, %p296
      %p298 = scmp.ne.s32.totalorder %s290, %s292
      %p299 = scmp.eq.s32.totalorder %s30, 1
      %p300 = por %p298, %p299
      %p301 = scmp.ne.s32.totalorder %s292, %s293
      %p302 = scmp.eq.s32.totalorder %s30, 0
      %p303 = por %p301, %p302
      %p304 = scmp.ne.s32.totalorder %s292, %s293
      %p305 = scmp.eq.s32.totalorder %s31, 1
      %p306 = por %p304, %p305
      %p308 = scmp.ne.s32.totalorder %s293, %s307
      %p309 = scmp.eq.s32.totalorder %s31, 0
      %p310 = por %p308, %p309
      %s312 = sadd.s32 %s311, 1
      %p315 = scmp.eq.s32.totalorder %s25, 1
      %p316 = scmp.ne.s32.totalorder %s311, %s313
      %p317 = scmp.eq.s32.totalorder %s25, 0
      %p318 = por %p316, %p317
      %p319 = scmp.ne.s32.totalorder %s311, %s313
      %p320 = scmp.eq.s32.totalorder %s30, 1
      %p321 = por %p319, %p320
      %p322 = scmp.ne.s32.totalorder %s313, %s314
      %p323 = scmp.eq.s32.totalorder %s30, 0
      %p324 = por %p322, %p323
      %p325 = scmp.ne.s32.totalorder %s313, %s314
      %p326 = scmp.eq.s32.totalorder %s31, 1
      %p327 = por %p325, %p326
      %p329 = scmp.ne.s32.totalorder %s314, %s328
      %p330 = scmp.eq.s32.totalorder %s31, 0
      %p331 = por %p329, %p330
      %s333 = sadd.s32 %s332, 1
      %p336 = scmp.eq.s32.totalorder %s25, 1
      %p337 = scmp.ne.s32.totalorder %s332, %s334
      %p338 = scmp.eq.s32.totalorder %s25, 0
      %p339 = por %p337, %p338
      %p340 = scmp.ne.s32.totalorder %s332, %s334
      %p341 = scmp.eq.s32.totalorder %s30, 1
      %p342 = por %p340, %p341
      %p343 = scmp.ne.s32.totalorder %s334, %s335
      %p344 = scmp.eq.s32.totalorder %s30, 0
      %p345 = por %p343, %p344
      %p346 = scmp.ne.s32.totalorder %s334, %s335
      %p347 = scmp.eq.s32.totalorder %s31, 1
      %p348 = por %p346, %p347
      %p350 = scmp.ne.s32.totalorder %s335, %s349
      %p351 = scmp.eq.s32.totalorder %s31, 0
      %p352 = por %p350, %p351
      %s354 = sadd.s32 %s353, 1
      %p357 = scmp.eq.s32.totalorder %s25, 1
      %p358 = scmp.ne.s32.totalorder %s353, %s355
      %p359 = scmp.eq.s32.totalorder %s25, 0
      %p360 = por %p358, %p359
      %p361 = scmp.ne.s32.totalorder %s353, %s355
      %p362 = scmp.eq.s32.totalorder %s30, 1
      %p363 = por %p361, %p362
      %p364 = scmp.ne.s32.totalorder %s355, %s356
      %p365 = scmp.eq.s32.totalorder %s30, 0
      %p366 = por %p364, %p365
      %p367 = scmp.ne.s32.totalorder %s355, %s356
      %p368 = scmp.eq.s32.totalorder %s31, 1
      %p369 = por %p367, %p368
      %p371 = scmp.ne.s32.totalorder %s356, %s370
      %p372 = scmp.eq.s32.totalorder %s31, 0
      %p373 = por %p371, %p372
      %s374 = ssub.s32 %s25, %s32
      %p375 = scmp.eq.s32.totalorder %s374, 0
      %s377 = sadd.s32 %s376, 1
      %s378 = scalar_select %p375, %s376, %s377
      %p381 = pneg %p375
      %p382 = scmp.eq.s32.totalorder %s25, 1
      %p383 = por %p381, %p382
      %p384 = scmp.ne.s32.totalorder %s376, %s379
      %p385 = scmp.eq.s32.totalorder %s25, 0
      %p386 = por %p384, %p385
      %p387 = scmp.ne.s32.totalorder %s376, %s379
      %p388 = scmp.eq.s32.totalorder %s30, 1
      %p389 = por %p387, %p388
      %p390 = scmp.ne.s32.totalorder %s379, %s380
      %p391 = scmp.eq.s32.totalorder %s30, 0
      %p392 = por %p390, %p391
      %p393 = scmp.ne.s32.totalorder %s379, %s380
      %p394 = scmp.eq.s32.totalorder %s31, 1
      %p395 = por %p393, %p394
      %p397 = scmp.ne.s32.totalorder %s380, %s396
      %p398 = scmp.eq.s32.totalorder %s31, 0
      %p399 = por %p397, %p398
      %p400 = scmp.le.s32.totalorder 1, %s25
      %p401 = scmp.lt.s32.totalorder %s25, 3
      %p402 = pnand %p400, %p401
      %p403 = pneg %p402
      // Predicated region
      $region9: #{tpu_custom_call.1} parent=5 // pred_check
        _
      $region10: #{tpu_custom_call.1} parent=5 // pred_check_branch
        %405 = sbr.rel (%p402) target = $region12
      $region11: #{tpu_custom_call.1} parent=5 // pred_region
        %s406 = ssub.s32 %s25, 1
        // Predicated region
        $region13: #{tpu_custom_call.1} parent=11 // pred_check
          %p407 = pneg %p72
        $region14: #{tpu_custom_call.1} parent=11 // pred_check_branch
          %409 = sbr.rel (%p407) target = $region16
        $region15: #{tpu_custom_call.1} parent=11 // pred_region
          _
        $region16: #{tpu_custom_call.1} parent=11 // pred_fallthru
          _
        // Predicated region
        $region17: #{tpu_custom_call.1} parent=11 // pred_check
          %p410 = pneg %p93
        $region18: #{tpu_custom_call.1} parent=11 // pred_check_branch
          %412 = sbr.rel (%p410) target = $region20
        $region19: #{tpu_custom_call.1} parent=11 // pred_region
          _
        $region20: #{tpu_custom_call.1} parent=11 // pred_fallthru
          _
        // Predicated region
        $region21: #{tpu_custom_call.1} parent=11 // pred_check
          %p413 = pneg %p114
        $region22: #{tpu_custom_call.1} parent=11 // pred_check_branch
          %415 = sbr.rel (%p413) target = $region24
        $region23: #{tpu_custom_call.1} parent=11 // pred_region
          _
        $region24: #{tpu_custom_call.1} parent=11 // pred_fallthru
          _
        // Predicated region
        $region25: #{tpu_custom_call.1} parent=11 // pred_check
          %p416 = pneg %p135
        $region26: #{tpu_custom_call.1} parent=11 // pred_check_branch
          %418 = sbr.rel (%p416) target = $region28
        $region27: #{tpu_custom_call.1} parent=11 // pred_region
          _
        $region28: #{tpu_custom_call.1} parent=11 // pred_fallthru
          _
        // Predicated region
        $region29: #{tpu_custom_call.1} parent=11 // pred_check
          %p419 = pneg %p156
        $region30: #{tpu_custom_call.1} parent=11 // pred_check_branch
          %421 = sbr.rel (%p419) target = $region32
        $region31: #{tpu_custom_call.1} parent=11 // pred_region
          _
        $region32: #{tpu_custom_call.1} parent=11 // pred_fallthru
          _
        // Predicated region
        $region33: #{tpu_custom_call.1} parent=11 // pred_check
          %p422 = pneg %p177
        $region34: #{tpu_custom_call.1} parent=11 // pred_check_branch
          %424 = sbr.rel (%p422) target = $region36
        $region35: #{tpu_custom_call.1} parent=11 // pred_region
          _
        $region36: #{tpu_custom_call.1} parent=11 // pred_fallthru
          _
        // Predicated region
        $region37: #{tpu_custom_call.1} parent=11 // pred_check
          %p425 = pneg %p198
        $region38: #{tpu_custom_call.1} parent=11 // pred_check_branch
          %427 = sbr.rel (%p425) target = $region40
        $region39: #{tpu_custom_call.1} parent=11 // pred_region
          _
        $region40: #{tpu_custom_call.1} parent=11 // pred_fallthru
          _
        // Predicated region
        $region41: #{tpu_custom_call.1} parent=11 // pred_check
          %p428 = pneg %p219
        $region42: #{tpu_custom_call.1} parent=11 // pred_check_branch
          %430 = sbr.rel (%p428) target = $region44
        $region43: #{tpu_custom_call.1} parent=11 // pred_region
          _
        $region44: #{tpu_custom_call.1} parent=11 // pred_fallthru
          _
        // Predicated region
        $region45: #{tpu_custom_call.1} parent=11 // pred_check
          %p431 = pneg %p240
        $region46: #{tpu_custom_call.1} parent=11 // pred_check_branch
          %433 = sbr.rel (%p431) target = $region48
        $region47: #{tpu_custom_call.1} parent=11 // pred_region
          _
        $region48: #{tpu_custom_call.1} parent=11 // pred_fallthru
          _
        // Predicated region
        $region49: #{tpu_custom_call.1} parent=11 // pred_check
          %p434 = pneg %p261
        $region50: #{tpu_custom_call.1} parent=11 // pred_check_branch
          %436 = sbr.rel (%p434) target = $region52
        $region51: #{tpu_custom_call.1} parent=11 // pred_region
          _
        $region52: #{tpu_custom_call.1} parent=11 // pred_fallthru
          _
        // Predicated region
        $region53: #{tpu_custom_call.1} parent=11 // pred_check
          %p437 = pneg %p282
        $region54: #{tpu_custom_call.1} parent=11 // pred_check_branch
          %439 = sbr.rel (%p437) target = $region56
        $region55: #{tpu_custom_call.1} parent=11 // pred_region
          _
        $region56: #{tpu_custom_call.1} parent=11 // pred_fallthru
          _
        // Predicated region
        $region57: #{tpu_custom_call.1} parent=11 // pred_check
          %p440 = pneg %p303
        $region58: #{tpu_custom_call.1} parent=11 // pred_check_branch
          %442 = sbr.rel (%p440) target = $region60
        $region59: #{tpu_custom_call.1} parent=11 // pred_region
          _
        $region60: #{tpu_custom_call.1} parent=11 // pred_fallthru
          _
        // Predicated region
        $region61: #{tpu_custom_call.1} parent=11 // pred_check
          %p443 = pneg %p324
        $region62: #{tpu_custom_call.1} parent=11 // pred_check_branch
          %445 = sbr.rel (%p443) target = $region64
        $region63: #{tpu_custom_call.1} parent=11 // pred_region
          _
        $region64: #{tpu_custom_call.1} parent=11 // pred_fallthru
          _
        // Predicated region
        $region65: #{tpu_custom_call.1} parent=11 // pred_check
          %p446 = pneg %p345
        $region66: #{tpu_custom_call.1} parent=11 // pred_check_branch
          %448 = sbr.rel (%p446) target = $region68
        $region67: #{tpu_custom_call.1} parent=11 // pred_region
          _
        $region68: #{tpu_custom_call.1} parent=11 // pred_fallthru
          _
        // Predicated region
        $region69: #{tpu_custom_call.1} parent=11 // pred_check
          %p449 = pneg %p366
        $region70: #{tpu_custom_call.1} parent=11 // pred_check_branch
          %451 = sbr.rel (%p449) target = $region72
        $region71: #{tpu_custom_call.1} parent=11 // pred_region
          _
        $region72: #{tpu_custom_call.1} parent=11 // pred_fallthru
          _
      $region12: #{tpu_custom_call.1} parent=5 // pred_fallthru
        _
      %p452 = scmp.lt.s32.totalorder %s25, 2
      // Predicated region
      $region73: #{tpu_custom_call.1} parent=5 // pred_check
        %p453 = pneg %p452
      $region74: #{tpu_custom_call.1} parent=5 // pred_check_branch
        %455 = sbr.rel (%p453) target = $region76
      $region75: #{tpu_custom_call.1} parent=5 // pred_region
        // Predicated region
        $region77: #{tpu_custom_call.1} parent=75 // pred_check
          %p456 = pneg %p45
        $region78: #{tpu_custom_call.1} parent=75 // pred_check_branch
          %458 = sbr.rel (%p456) target = $region80
        $region79: #{tpu_custom_call.1} parent=75 // pred_region
          %p459 = scmp.lt.s32.totalorder %s25, 1
          %s460 = scalar_select %p459, %s25, 1
          %s461 = smul.addr %s460, 8
          %s462 = scalar_lea.vmem %s0, %s461
        $region80: #{tpu_custom_call.1} parent=75 // pred_fallthru
          _
      $region76: #{tpu_custom_call.1} parent=5 // pred_fallthru
        _
      %p463 = scmp.le.s32.totalorder 1, %s25
      %p464 = scmp.lt.s32.totalorder %s25, 3
      %p465 = pnand %p463, %p464
      %p466 = pneg %p465
      // Predicated region
      $region81: #{tpu_custom_call.1} parent=5 // pred_check
        _
      $region82: #{tpu_custom_call.1} parent=5 // pred_check_branch
        %468 = sbr.rel (%p465) target = $region84
      $region83: #{tpu_custom_call.1} parent=5 // pred_region
        %s469 = ssub.s32 %s25, 1
        %p470 = scmp.lt.s32.totalorder %s30, 1
        %s471 = scalar_select %p470, %s30, 1
        %s472 = smul.addr %s471, 8
        %s473 = scalar_lea.vmem %s0, %s472
        %p474 = pneg %p51
        %p475 = pneg %p48
        %p476 = pneg %p72
        %p477 = pneg %p69
        %p478 = pneg %p93
        %p479 = pneg %p90
        %p480 = pneg %p114
        %p481 = pneg %p111
        %p482 = pneg %p135
        %p483 = pneg %p132
        %p484 = pneg %p156
        %p485 = pneg %p153
        %p486 = pneg %p177
        %p487 = pneg %p174
        %p488 = pneg %p198
        %p489 = pneg %p195
        %p490 = pneg %p219
        %p491 = pneg %p216
        %p492 = pneg %p240
        %p493 = pneg %p237
        %p494 = pneg %p261
        %p495 = pneg %p258
        %p496 = pneg %p282
        %p497 = pneg %p279
        %p498 = pneg %p303
        %p499 = pneg %p300
        %p500 = pneg %p324
        %p501 = pneg %p321
        %p502 = pneg %p345
        %p503 = pneg %p342
        %p504 = pneg %p366
        %p505 = pneg %p363
        %p506 = pneg %p392
        %p507 = pneg %p389
        %s508 = sand.u32 %s379, 1
        %s509 = scalar_lea.sflag [#allocation3], %s508
        %s510 = sand.u32 %s379, 1
        %s511 = smul.addr %s510, 8
        %s512 = scalar_lea.vmem [#allocation2], %s511
        %p513 = scmp.lt.s32.totalorder %s30, 1
        %s514 = scalar_select %p513, %s30, 1
        %s515 = smul.addr %s514, 8
        %s516 = scalar_lea.vmem %s0, %s515
        %v518 = vld [vmem:[%s1] sm:$0x1]
        %v519 = vld [vmem:[%s2] sm:$0x1]
        %v520 = vld [vmem:[%s3] sm:$0xf]
        %v521 = vld [vmem:[%s3 + $0x4] sm:$0xf]
        %v522 = vld [vmem:[%s3 + $0x8] sm:$0xf]
        %v523 = vld [vmem:[%s3 + $0xc] sm:$0xf]
        %v524 = vld [vmem:[%s4] sm:$0x1]
        %v525 = vld [vmem:[%s5] sm:$0xf]
        %v526 = vld [vmem:[%s5 + $0x4] sm:$0xf]
        %v527 = vld [vmem:[%s5 + $0x8] sm:$0xf]
        %v528 = vld [vmem:[%s5 + $0xc] sm:$0xf]
        %v529 = vld [vmem:[%s6] sm:$0x1]
        %v530 = vld [vmem:[%s7] sm:$0x1]
        %v531 = vld [vmem:[%s8] sm:$0x1]
        %v532 = vld [vmem:[%s9] sm:$0xf]
        %v533 = vld [vmem:[%s9 + $0x4] sm:$0xf]
        %v534 = vld [vmem:[%s9 + $0x8] sm:$0xf]
        %v535 = vld [vmem:[%s9 + $0xc] sm:$0xf]
        %v536 = vld [vmem:[%s10] sm:$0x1]
        %v537 = vld [vmem:[%s11] sm:$0xf]
        %v538 = vld [vmem:[%s11 + $0x4] sm:$0xf]
        %v539 = vld [vmem:[%s11 + $0x8] sm:$0xf]
        %v540 = vld [vmem:[%s11 + $0xc] sm:$0xf]
        %v541 = vld [vmem:[%s11 + $0x10] sm:$0xf]
        %v542 = vld [vmem:[%s11 + $0x14] sm:$0xf]
        %v543 = vld [vmem:[%s11 + $0x18] sm:$0xf]
        %v544 = vld [vmem:[%s11 + $0x1c] sm:$0xf]
        %v545 = vld [vmem:[%s11 + $0x20] sm:$0xf]
        %v546 = vld [vmem:[%s11 + $0x24] sm:$0xf]
        %v547 = vld [vmem:[%s11 + $0x28] sm:$0xf]
        %v548 = vld [vmem:[%s11 + $0x2c] sm:$0xf]
        %v549 = vld [vmem:[%s11 + $0x30] sm:$0xf]
        %v550 = vld [vmem:[%s11 + $0x34] sm:$0xf]
        %v551 = vld [vmem:[%s11 + $0x38] sm:$0xf]
        %v552 = vld [vmem:[%s11 + $0x3c] sm:$0xf]
        %v553 = vld [vmem:[%s12] sm:$0x1]
        %v554 = vld [vmem:[%s13] sm:$0xff]
        %v555 = vld [vmem:[%s14] sm:$0xff]
        %v556 = vld [vmem:[%s15] sm:$0xff]
        %v557 = vld [vmem:[%s516] sm:$0xff]
        %vm558 = vcmask 261120
        %v559 = vsel %vm558, %v557, 0.0
        %560 = vadd.xlane.f32.xlu0 %v559
        %v561 = vpop.xlane.xlu0 %560
        %v562 = vrcp.pop 32.0
        %v563 = vmul.f32 %v561, %v562
        %v564 = vsub.f32 %v557, %v563
        %v565 = vmul.f32 %v564, %v564
        %v566 = vsel %vm558, %v565, 0.0
        %567 = vadd.xlane.f32.xlu0 %v566
        %v568 = vpop.xlane.xlu0 %567
        %v569 = vmul.f32 %v568, %v562
        %v570 = vadd.f32 %v569, 1e-05
        %v571 = vrsqrt.pop %v570
        %v572 = vmul.f32 %v564, %v571
        %v574 = vlaneseq
        %v575 = vshrl.u32 %v574, 7
        %v576 = vsub.s32 0, %v575
        %v577 = vrot.slane %v518, %v576
        %v579 = vmul.f32 %v572, %v577
        %v581 = vlaneseq
        %v582 = vshrl.u32 %v581, 7
        %v583 = vsub.s32 0, %v582
        %v584 = vrot.slane %v519, %v583
        %v586 = vadd.f32 %v579, %v584
        %v587 = vpack.c.bf16 %v586, %v586
        %v589 = vlaneseq
        %v590 = vshrl.u32 %v589, 7
        %v591 = vsub.s32 0, %v590
        %v592 = vrot.slane %v524, %v591
        %v598 = vunpack.c.l.b16 %v520
        %v599 = vunpack.c.l.b16 %v521
        %v600 = vunpack.c.l.b16 %v522
        %v601 = vunpack.c.l.b16 %v523
        %v602 = vpack.c.b16 %v599, %v598
        %v603 = vpack.c.b16 %v601, %v600
        %v607 = vsel %vm558, %v587, 0
        %609 = vmatprep.subr.bf16.mxu0 0
        %610 = vmatpush1.bf16.msra.mxu0 %v602
        %611 = vmatprep.subr.bf16.mxu0 0
        %612 = vmatpush1.bf16.msra.mxu0 %v603
        %613 = vmatprep.subr.bf16.mxu0 0
        %614 = vmatpush1.bf16.msra.mxu0 0
        %615 = vmatprep.subr.bf16.mxu0 0
        %616 = vmatpush1.bf16.msra.mxu0 0
        %617 = vmatprep.subr.bf16.mxu0 0
        %618 = vmatpush1.bf16.msra.mxu0 0
        %619 = vmatprep.subr.bf16.mxu0 0
        %620 = vmatpush1.bf16.msra.mxu0 0
        %621 = vmatprep.subr.bf16.mxu0 0
        %622 = vmatpush1.bf16.msra.mxu0 0
        %623 = vmatprep.subr.bf16.mxu0 0
        %624 = vmatpush1.bf16.msra.mxu0 0
        %625 = vmatprep.subr.bf16.mxu0 0
        %626 = vmatpush1.bf16.msra.mxu0 0
        %627 = vmatprep.subr.bf16.mxu0 0
        %628 = vmatpush1.bf16.msra.mxu0 0
        %629 = vmatprep.subr.bf16.mxu0 0
        %630 = vmatpush1.bf16.msra.mxu0 0
        %631 = vmatprep.subr.bf16.mxu0 0
        %632 = vmatpush1.bf16.msra.mxu0 0
        %633 = vmatprep.subr.bf16.mxu0 0
        %634 = vmatpush1.bf16.msra.mxu0 0
        %635 = vmatprep.subr.bf16.mxu0 0
        %636 = vmatpush1.bf16.msra.mxu0 0
        %637 = vmatprep.subr.bf16.mxu0 0
        %638 = vmatpush1.bf16.msra.mxu0 0
        %639 = vmatprep.subr.bf16.mxu0 0
        %640 = vmatpush1.bf16.msra.mxu0 0
        %641 = vmatprep.mubr.bf16.mxu0 0
        %642 = vmatmul.mubr.bf16.gmra.mrb[0].mxu0 %v607
        %v643 = vpop.f32.mrb[0].mxu0
        %v644 = vadd.f32 %v592, %v643
        %v645 = vpop.f32.mrb[0].mxu0
        %v646 = vpop.f32.mrb[0].mxu0
        %v647 = vpop.f32.mrb[0].mxu0
        %648 = vdwg.mxu0
        %650 = vrot.lane.b32.xlu0 %v644, 120
        %v651 = vpop.permute.xlu0 %650
        %653 = vrot.lane.b32.xlu0 %v644, 112
        %v654 = vpop.permute.xlu0 %653
        %656 = vrot.lane.b32.xlu0 %v644, 104
        %v657 = vpop.permute.xlu0 %656
        %v659 = vmul.f32 %v644, %v554
        %v660 = vmul.f32 %v651, %v554
        %v661 = vmul.f32 %v654, %v554
        %v662 = vmul.f32 %v657, %v554
        %v663 = vsub.f32 0.0, %v644
        %v664 = vsub.f32 0.0, %v651
        %v665 = vsub.f32 0.0, %v654
        %v666 = vsub.f32 0.0, %v657
        %671 = vrot.lane.b32.xlu0 %v663, 124
        %v672 = vpop.permute.xlu0 %671
        %673 = vrot.lane.b32.xlu0 %v664, 124
        %v674 = vpop.permute.xlu0 %673
        %675 = vrot.lane.b32.xlu0 %v665, 124
        %v676 = vpop.permute.xlu0 %675
        %677 = vrot.lane.b32.xlu0 %v666, 124
        %v678 = vpop.permute.xlu0 %677
        %683 = vrot.lane.b32.xlu0 %v644, 4
        %v684 = vpop.permute.xlu0 %683
        %685 = vrot.lane.b32.xlu0 %v651, 4
        %v686 = vpop.permute.xlu0 %685
        %687 = vrot.lane.b32.xlu0 %v654, 4
        %v688 = vpop.permute.xlu0 %687
        %689 = vrot.lane.b32.xlu0 %v657, 4
        %v690 = vpop.permute.xlu0 %689
        %vm695 = vcmask 31744
        %v696 = vsel %vm695, %v672, %v684
        %v697 = vsel %vm695, %v674, %v686
        %v698 = vsel %vm695, %v676, %v688
        %v699 = vsel %vm695, %v678, %v690
        %v700 = vmul.f32 %v696, %v555
        %v701 = vmul.f32 %v697, %v555
        %v702 = vmul.f32 %v698, %v555
        %v703 = vmul.f32 %v699, %v555
        %v704 = vadd.f32 %v659, %v700
        %v705 = vadd.f32 %v660, %v701
        %v706 = vadd.f32 %v661, %v702
        %v707 = vadd.f32 %v662, %v703
        %709 = vrot.lane.b32.xlu0 %v554, 32
        %v710 = vpop.permute.xlu0 %709
        %v712 = vmul.f32 %v644, %v710
        %v713 = vmul.f32 %v651, %v710
        %v714 = vmul.f32 %v654, %v710
        %v715 = vmul.f32 %v657, %v710
        %716 = vrot.lane.b32.xlu0 %v663, 92
        %v717 = vpop.permute.xlu0 %716
        %718 = vrot.lane.b32.xlu0 %v664, 92
        %v719 = vpop.permute.xlu0 %718
        %720 = vrot.lane.b32.xlu0 %v665, 92
        %v721 = vpop.permute.xlu0 %720
        %722 = vrot.lane.b32.xlu0 %v666, 92
        %v723 = vpop.permute.xlu0 %722
        %728 = vrot.lane.b32.xlu0 %v644, 100
        %v729 = vpop.permute.xlu0 %728
        %730 = vrot.lane.b32.xlu0 %v651, 100
        %v731 = vpop.permute.xlu0 %730
        %732 = vrot.lane.b32.xlu0 %v654, 100
        %v733 = vpop.permute.xlu0 %732
        %734 = vrot.lane.b32.xlu0 %v657, 100
        %v735 = vpop.permute.xlu0 %734
        %v740 = vsel %vm695, %v717, %v729
        %v741 = vsel %vm695, %v719, %v731
        %v742 = vsel %vm695, %v721, %v733
        %v743 = vsel %vm695, %v723, %v735
        %v744 = vmul.f32 %v740, %v555
        %v745 = vmul.f32 %v741, %v555
        %v746 = vmul.f32 %v742, %v555
        %v747 = vmul.f32 %v743, %v555
        %752 = vrot.lane.b32.xlu0 %v744, 32
        %v753 = vpop.permute.xlu0 %752
        %754 = vrot.lane.b32.xlu0 %v745, 32
        %v755 = vpop.permute.xlu0 %754
        %756 = vrot.lane.b32.xlu0 %v746, 32
        %v757 = vpop.permute.xlu0 %756
        %758 = vrot.lane.b32.xlu0 %v747, 32
        %v759 = vpop.permute.xlu0 %758
        %v764 = vadd.f32 %v712, %v753
        %v765 = vadd.f32 %v713, %v755
        %v766 = vadd.f32 %v714, %v757
        %v767 = vadd.f32 %v715, %v759
        %v768 = vpack.c.bf16 %v704, %v704
        %v769 = vpack.c.bf16 %v705, %v705
        %v770 = vpack.c.bf16 %v706, %v706
        %v771 = vpack.c.bf16 %v707, %v707
        %v772 = vpack.c.bf16 %v764, %v764
        %v773 = vpack.c.bf16 %v765, %v765
        %v774 = vpack.c.bf16 %v766, %v766
        %v775 = vpack.c.bf16 %v767, %v767
        %777 = vrot.lane.b32.xlu0 %v772, 96
        %v778 = vpop.permute.xlu0 %777
        %vm779 = vcmask 64512
        %v781 = vsel %vm779, %v768, 0
        %v784 = vsel %vm779, %v778, 0
        %786 = vmatprep.subr.bf16.mxu0 0
        %787 = vmatpush1.bf16.xpose.msra.mxu0 %v784
        %788 = vmatprep.subr.bf16.mxu0 0
        %789 = vmatpush1.bf16.xpose.msra.mxu0 0
        %790 = vmatprep.subr.bf16.mxu0 0
        %791 = vmatpush1.bf16.xpose.msra.mxu0 0
        %792 = vmatprep.subr.bf16.mxu0 0
        %793 = vmatpush1.bf16.xpose.msra.mxu0 0
        %794 = vmatprep.subr.bf16.mxu0 0
        %795 = vmatpush1.bf16.xpose.msra.mxu0 0
        %796 = vmatprep.subr.bf16.mxu0 0
        %797 = vmatpush1.bf16.xpose.msra.mxu0 0
        %798 = vmatprep.subr.bf16.mxu0 0
        %799 = vmatpush1.bf16.xpose.msra.mxu0 0
        %800 = vmatprep.subr.bf16.mxu0 0
        %801 = vmatpush1.bf16.xpose.msra.mxu0 0
        %802 = vmatprep.subr.bf16.mxu0 0
        %803 = vmatpush1.bf16.xpose.msra.mxu0 0
        %804 = vmatprep.subr.bf16.mxu0 0
        %805 = vmatpush1.bf16.xpose.msra.mxu0 0
        %806 = vmatprep.subr.bf16.mxu0 0
        %807 = vmatpush1.bf16.xpose.msra.mxu0 0
        %808 = vmatprep.subr.bf16.mxu0 0
        %809 = vmatpush1.bf16.xpose.msra.mxu0 0
        %810 = vmatprep.subr.bf16.mxu0 0
        %811 = vmatpush1.bf16.xpose.msra.mxu0 0
        %812 = vmatprep.subr.bf16.mxu0 0
        %813 = vmatpush1.bf16.xpose.msra.mxu0 0
        %814 = vmatprep.subr.bf16.mxu0 0
        %815 = vmatpush1.bf16.xpose.msra.mxu0 0
        %816 = vmatprep.subr.bf16.mxu0 0
        %817 = vmatpush1.bf16.xpose.msra.mxu0 0
        %818 = vmatprep.mubr.bf16.mxu0 0
        %819 = vmatmul.mubr.bf16.gmra.mrb[0].mxu0 %v781
        %v820 = vpop.f32.mrb[0].mxu0
        %v821 = vadd.f32 %v556, %v820
        %v822 = vpop.f32.mrb[0].mxu0
        %v823 = vpop.f32.mrb[0].mxu0
        %v824 = vpop.f32.mrb[0].mxu0
        %825 = vdwg.mxu0
        %827 = vrot.lane.b32.xlu0 %v773, 96
        %v828 = vpop.permute.xlu0 %827
        %v830 = vsel %vm779, %v769, 0
        %v833 = vsel %vm779, %v828, 0
        %835 = vmatprep.subr.bf16.mxu0 0
        %836 = vmatpush1.bf16.xpose.msra.mxu0 %v833
        %837 = vmatprep.subr.bf16.mxu0 0
        %838 = vmatpush1.bf16.xpose.msra.mxu0 0
        %839 = vmatprep.subr.bf16.mxu0 0
        %840 = vmatpush1.bf16.xpose.msra.mxu0 0
        %841 = vmatprep.subr.bf16.mxu0 0
        %842 = vmatpush1.bf16.xpose.msra.mxu0 0
        %843 = vmatprep.subr.bf16.mxu0 0
        %844 = vmatpush1.bf16.xpose.msra.mxu0 0
        %845 = vmatprep.subr.bf16.mxu0 0
        %846 = vmatpush1.bf16.xpose.msra.mxu0 0
        %847 = vmatprep.subr.bf16.mxu0 0
        %848 = vmatpush1.bf16.xpose.msra.mxu0 0
        %849 = vmatprep.subr.bf16.mxu0 0
        %850 = vmatpush1.bf16.xpose.msra.mxu0 0
        %851 = vmatprep.subr.bf16.mxu0 0
        %852 = vmatpush1.bf16.xpose.msra.mxu0 0
        %853 = vmatprep.subr.bf16.mxu0 0
        %854 = vmatpush1.bf16.xpose.msra.mxu0 0
        %855 = vmatprep.subr.bf16.mxu0 0
        %856 = vmatpush1.bf16.xpose.msra.mxu0 0
        %857 = vmatprep.subr.bf16.mxu0 0
        %858 = vmatpush1.bf16.xpose.msra.mxu0 0
        %859 = vmatprep.subr.bf16.mxu0 0
        %860 = vmatpush1.bf16.xpose.msra.mxu0 0
        %861 = vmatprep.subr.bf16.mxu0 0
        %862 = vmatpush1.bf16.xpose.msra.mxu0 0
        %863 = vmatprep.subr.bf16.mxu0 0
        %864 = vmatpush1.bf16.xpose.msra.mxu0 0
        %865 = vmatprep.subr.bf16.mxu0 0
        %866 = vmatpush1.bf16.xpose.msra.mxu0 0
        %867 = vmatprep.mubr.bf16.mxu0 0
        %868 = vmatmul.mubr.bf16.gmra.mrb[0].mxu0 %v830
        %v869 = vpop.f32.mrb[0].mxu0
        %v870 = vadd.f32 %v556, %v869
        %v871 = vpop.f32.mrb[0].mxu0
        %v872 = vpop.f32.mrb[0].mxu0
        %v873 = vpop.f32.mrb[0].mxu0
        %874 = vdwg.mxu0
        %876 = vrot.lane.b32.xlu0 %v774, 96
        %v877 = vpop.permute.xlu0 %876
        %v879 = vsel %vm779, %v770, 0
        %v882 = vsel %vm779, %v877, 0
        %884 = vmatprep.subr.bf16.mxu0 0
        %885 = vmatpush1.bf16.xpose.msra.mxu0 %v882
        %886 = vmatprep.subr.bf16.mxu0 0
        %887 = vmatpush1.bf16.xpose.msra.mxu0 0
        %888 = vmatprep.subr.bf16.mxu0 0
        %889 = vmatpush1.bf16.xpose.msra.mxu0 0
        %890 = vmatprep.subr.bf16.mxu0 0
        %891 = vmatpush1.bf16.xpose.msra.mxu0 0
        %892 = vmatprep.subr.bf16.mxu0 0
        %893 = vmatpush1.bf16.xpose.msra.mxu0 0
        %894 = vmatprep.subr.bf16.mxu0 0
        %895 = vmatpush1.bf16.xpose.msra.mxu0 0
        %896 = vmatprep.subr.bf16.mxu0 0
        %897 = vmatpush1.bf16.xpose.msra.mxu0 0
        %898 = vmatprep.subr.bf16.mxu0 0
        %899 = vmatpush1.bf16.xpose.msra.mxu0 0
        %900 = vmatprep.subr.bf16.mxu0 0
        %901 = vmatpush1.bf16.xpose.msra.mxu0 0
        %902 = vmatprep.subr.bf16.mxu0 0
        %903 = vmatpush1.bf16.xpose.msra.mxu0 0
        %904 = vmatprep.subr.bf16.mxu0 0
        %905 = vmatpush1.bf16.xpose.msra.mxu0 0
        %906 = vmatprep.subr.bf16.mxu0 0
        %907 = vmatpush1.bf16.xpose.msra.mxu0 0
        %908 = vmatprep.subr.bf16.mxu0 0
        %909 = vmatpush1.bf16.xpose.msra.mxu0 0
        %910 = vmatprep.subr.bf16.mxu0 0
        %911 = vmatpush1.bf16.xpose.msra.mxu0 0
        %912 = vmatprep.subr.bf16.mxu0 0
        %913 = vmatpush1.bf16.xpose.msra.mxu0 0
        %914 = vmatprep.subr.bf16.mxu0 0
        %915 = vmatpush1.bf16.xpose.msra.mxu0 0
        %916 = vmatprep.mubr.bf16.mxu0 0
        %917 = vmatmul.mubr.bf16.gmra.mrb[0].mxu0 %v879
        %v918 = vpop.f32.mrb[0].mxu0
        %v919 = vadd.f32 %v556, %v918
        %v920 = vpop.f32.mrb[0].mxu0
        %v921 = vpop.f32.mrb[0].mxu0
        %v922 = vpop.f32.mrb[0].mxu0
        %923 = vdwg.mxu0
        %925 = vrot.lane.b32.xlu0 %v775, 96
        %v926 = vpop.permute.xlu0 %925
        %v928 = vsel %vm779, %v771, 0
        %v931 = vsel %vm779, %v926, 0
        %933 = vmatprep.subr.bf16.mxu0 0
        %934 = vmatpush1.bf16.xpose.msra.mxu0 %v931
        %935 = vmatprep.subr.bf16.mxu0 0
        %936 = vmatpush1.bf16.xpose.msra.mxu0 0
        %937 = vmatprep.subr.bf16.mxu0 0
        %938 = vmatpush1.bf16.xpose.msra.mxu0 0
        %939 = vmatprep.subr.bf16.mxu0 0
        %940 = vmatpush1.bf16.xpose.msra.mxu0 0
        %941 = vmatprep.subr.bf16.mxu0 0
        %942 = vmatpush1.bf16.xpose.msra.mxu0 0
        %943 = vmatprep.subr.bf16.mxu0 0
        %944 = vmatpush1.bf16.xpose.msra.mxu0 0
        %945 = vmatprep.subr.bf16.mxu0 0
        %946 = vmatpush1.bf16.xpose.msra.mxu0 0
        %947 = vmatprep.subr.bf16.mxu0 0
        %948 = vmatpush1.bf16.xpose.msra.mxu0 0
        %949 = vmatprep.subr.bf16.mxu0 0
        %950 = vmatpush1.bf16.xpose.msra.mxu0 0
        %951 = vmatprep.subr.bf16.mxu0 0
        %952 = vmatpush1.bf16.xpose.msra.mxu0 0
        %953 = vmatprep.subr.bf16.mxu0 0
        %954 = vmatpush1.bf16.xpose.msra.mxu0 0
        %955 = vmatprep.subr.bf16.mxu0 0
        %956 = vmatpush1.bf16.xpose.msra.mxu0 0
        %957 = vmatprep.subr.bf16.mxu0 0
        %958 = vmatpush1.bf16.xpose.msra.mxu0 0
        %959 = vmatprep.subr.bf16.mxu0 0
        %960 = vmatpush1.bf16.xpose.msra.mxu0 0
        %961 = vmatprep.subr.bf16.mxu0 0
        %962 = vmatpush1.bf16.xpose.msra.mxu0 0
        %963 = vmatprep.subr.bf16.mxu0 0
        %964 = vmatpush1.bf16.xpose.msra.mxu0 0
        %965 = vmatprep.mubr.bf16.mxu0 0
        %966 = vmatmul.mubr.bf16.gmra.mrb[0].mxu0 %v928
        %v967 = vpop.f32.mrb[0].mxu0
        %v968 = vadd.f32 %v556, %v967
        %v969 = vpop.f32.mrb[0].mxu0
        %v970 = vpop.f32.mrb[0].mxu0
        %v971 = vpop.f32.mrb[0].mxu0
        %972 = vdwg.mxu0
        %v973 = vsel %vm779, %v821, -inf
        %974 = vmax.xlane.f32.xlu0 %v973
        %v975 = vpop.xlane.xlu0 %974
        %v976 = vsel %vm779, %v870, -inf
        %977 = vmax.xlane.f32.xlu0 %v976
        %v978 = vpop.xlane.xlu0 %977
        %v979 = vsel %vm779, %v919, -inf
        %980 = vmax.xlane.f32.xlu0 %v979
        %v981 = vpop.xlane.xlu0 %980
        %v982 = vsel %vm779, %v968, -inf
        %983 = vmax.xlane.f32.xlu0 %v982
        %v984 = vpop.xlane.xlu0 %983
        %v985 = vsub.f32 %v821, %v975
        %v986 = vsub.f32 %v870, %v978
        %v987 = vsub.f32 %v919, %v981
        %v988 = vsub.f32 %v968, %v984
        %v989 = vmul.f32 %v985, 1.442695
        %v990 = vpow.pop %v989
        %v991 = vmul.f32 %v986, 1.442695
        %v992 = vpow.pop %v991
        %v993 = vmul.f32 %v987, 1.442695
        %v994 = vpow.pop %v993
        %v995 = vmul.f32 %v988, 1.442695
        %v996 = vpow.pop %v995
        %v997 = vsel %vm779, %v990, 0.0
        %998 = vadd.xlane.f32.xlu0 %v997
        %v999 = vpop.xlane.xlu0 %998
        %v1000 = vsel %vm779, %v992, 0.0
        %1001 = vadd.xlane.f32.xlu0 %v1000
        %v1002 = vpop.xlane.xlu0 %1001
        %v1003 = vsel %vm779, %v994, 0.0
        %1004 = vadd.xlane.f32.xlu0 %v1003
        %v1005 = vpop.xlane.xlu0 %1004
        %v1006 = vsel %vm779, %v996, 0.0
        %1007 = vadd.xlane.f32.xlu0 %v1006
        %v1008 = vpop.xlane.xlu0 %1007
        %v1009 = vrcp.pop %v999
        %v1010 = vrcp.pop %v1002
        %v1011 = vrcp.pop %v1005
        %v1012 = vrcp.pop %v1008
        %v1013 = vmul.f32 %v990, %v1009
        %v1014 = vmul.f32 %v992, %v1010
        %v1015 = vmul.f32 %v994, %v1011
        %v1016 = vmul.f32 %v996, %v1012
        %v1017 = vpack.c.bf16 %v1013, %v1013
        %v1018 = vpack.c.bf16 %v1014, %v1014
        %v1019 = vpack.c.bf16 %v1015, %v1015
        %v1020 = vpack.c.bf16 %v1016, %v1016
        %v1021 = vpack.c.bf16 %v644, %v644
        %v1022 = vpack.c.bf16 %v651, %v651
        %v1023 = vpack.c.bf16 %v654, %v654
        %v1024 = vpack.c.bf16 %v657, %v657
        %1026 = vrot.lane.b32.xlu0 %v1021, 64
        %v1027 = vpop.permute.xlu0 %1026
        %v1029 = vsel %vm779, %v1017, 0
        %vm1031 = vcmask 1043456
        %v1033 = vsel %vm1031, %v1027, 0
        %1035 = vmatprep.subr.bf16.mxu0 0
        %1036 = vmatpush1.bf16.msra.mxu0 %v1033
        %1037 = vmatprep.subr.bf16.mxu0 0
        %1038 = vmatpush1.bf16.msra.mxu0 0
        %1039 = vmatprep.subr.bf16.mxu0 0
        %1040 = vmatpush1.bf16.msra.mxu0 0
        %1041 = vmatprep.subr.bf16.mxu0 0
        %1042 = vmatpush1.bf16.msra.mxu0 0
        %1043 = vmatprep.subr.bf16.mxu0 0
        %1044 = vmatpush1.bf16.msra.mxu0 0
        %1045 = vmatprep.subr.bf16.mxu0 0
        %1046 = vmatpush1.bf16.msra.mxu0 0
        %1047 = vmatprep.subr.bf16.mxu0 0
        %1048 = vmatpush1.bf16.msra.mxu0 0
        %1049 = vmatprep.subr.bf16.mxu0 0
        %1050 = vmatpush1.bf16.msra.mxu0 0
        %1051 = vmatprep.subr.bf16.mxu0 0
        %1052 = vmatpush1.bf16.msra.mxu0 0
        %1053 = vmatprep.subr.bf16.mxu0 0
        %1054 = vmatpush1.bf16.msra.mxu0 0
        %1055 = vmatprep.subr.bf16.mxu0 0
        %1056 = vmatpush1.bf16.msra.mxu0 0
        %1057 = vmatprep.subr.bf16.mxu0 0
        %1058 = vmatpush1.bf16.msra.mxu0 0
        %1059 = vmatprep.subr.bf16.mxu0 0
        %1060 = vmatpush1.bf16.msra.mxu0 0
        %1061 = vmatprep.subr.bf16.mxu0 0
        %1062 = vmatpush1.bf16.msra.mxu0 0
        %1063 = vmatprep.subr.bf16.mxu0 0
        %1064 = vmatpush1.bf16.msra.mxu0 0
        %1065 = vmatprep.subr.bf16.mxu0 0
        %1066 = vmatpush1.bf16.msra.mxu0 0
        %1067 = vmatprep.mubr.bf16.mxu0 0
        %1068 = vmatmul.mubr.bf16.gmra.mrb[0].mxu0 %v1029
        %v1069 = vpop.f32.mrb[0].mxu0
        %v1070 = vadd.f32 0.0, %v1069
        %v1071 = vpop.f32.mrb[0].mxu0
        %v1072 = vpop.f32.mrb[0].mxu0
        %v1073 = vpop.f32.mrb[0].mxu0
        %1074 = vdwg.mxu0
        %1076 = vrot.lane.b32.xlu0 %v1022, 64
        %v1077 = vpop.permute.xlu0 %1076
        %v1079 = vsel %vm779, %v1018, 0
        %v1082 = vsel %vm1031, %v1077, 0
        %1084 = vmatprep.subr.bf16.mxu0 0
        %1085 = vmatpush1.bf16.msra.mxu0 %v1082
        %1086 = vmatprep.subr.bf16.mxu0 0
        %1087 = vmatpush1.bf16.msra.mxu0 0
        %1088 = vmatprep.subr.bf16.mxu0 0
        %1089 = vmatpush1.bf16.msra.mxu0 0
        %1090 = vmatprep.subr.bf16.mxu0 0
        %1091 = vmatpush1.bf16.msra.mxu0 0
        %1092 = vmatprep.subr.bf16.mxu0 0
        %1093 = vmatpush1.bf16.msra.mxu0 0
        %1094 = vmatprep.subr.bf16.mxu0 0
        %1095 = vmatpush1.bf16.msra.mxu0 0
        %1096 = vmatprep.subr.bf16.mxu0 0
        %1097 = vmatpush1.bf16.msra.mxu0 0
        %1098 = vmatprep.subr.bf16.mxu0 0
        %1099 = vmatpush1.bf16.msra.mxu0 0
        %1100 = vmatprep.subr.bf16.mxu0 0
        %1101 = vmatpush1.bf16.msra.mxu0 0
        %1102 = vmatprep.subr.bf16.mxu0 0
        %1103 = vmatpush1.bf16.msra.mxu0 0
        %1104 = vmatprep.subr.bf16.mxu0 0
        %1105 = vmatpush1.bf16.msra.mxu0 0
        %1106 = vmatprep.subr.bf16.mxu0 0
        %1107 = vmatpush1.bf16.msra.mxu0 0
        %1108 = vmatprep.subr.bf16.mxu0 0
        %1109 = vmatpush1.bf16.msra.mxu0 0
        %1110 = vmatprep.subr.bf16.mxu0 0
        %1111 = vmatpush1.bf16.msra.mxu0 0
        %1112 = vmatprep.subr.bf16.mxu0 0
        %1113 = vmatpush1.bf16.msra.mxu0 0
        %1114 = vmatprep.subr.bf16.mxu0 0
        %1115 = vmatpush1.bf16.msra.mxu0 0
        %1116 = vmatprep.mubr.bf16.mxu0 0
        %1117 = vmatmul.mubr.bf16.gmra.mrb[0].mxu0 %v1079
        %v1118 = vpop.f32.mrb[0].mxu0
        %v1119 = vadd.f32 0.0, %v1118
        %v1120 = vpop.f32.mrb[0].mxu0
        %v1121 = vpop.f32.mrb[0].mxu0
        %v1122 = vpop.f32.mrb[0].mxu0
        %1123 = vdwg.mxu0
        %1125 = vrot.lane.b32.xlu0 %v1023, 64
        %v1126 = vpop.permute.xlu0 %1125
        %v1128 = vsel %vm779, %v1019, 0
        %v1131 = vsel %vm1031, %v1126, 0
        %1133 = vmatprep.subr.bf16.mxu0 0
        %1134 = vmatpush1.bf16.msra.mxu0 %v1131
        %1135 = vmatprep.subr.bf16.mxu0 0
        %1136 = vmatpush1.bf16.msra.mxu0 0
        %1137 = vmatprep.subr.bf16.mxu0 0
        %1138 = vmatpush1.bf16.msra.mxu0 0
        %1139 = vmatprep.subr.bf16.mxu0 0
        %1140 = vmatpush1.bf16.msra.mxu0 0
        %1141 = vmatprep.subr.bf16.mxu0 0
        %1142 = vmatpush1.bf16.msra.mxu0 0
        %1143 = vmatprep.subr.bf16.mxu0 0
        %1144 = vmatpush1.bf16.msra.mxu0 0
        %1145 = vmatprep.subr.bf16.mxu0 0
        %1146 = vmatpush1.bf16.msra.mxu0 0
        %1147 = vmatprep.subr.bf16.mxu0 0
        %1148 = vmatpush1.bf16.msra.mxu0 0
        %1149 = vmatprep.subr.bf16.mxu0 0
        %1150 = vmatpush1.bf16.msra.mxu0 0
        %1151 = vmatprep.subr.bf16.mxu0 0
        %1152 = vmatpush1.bf16.msra.mxu0 0
        %1153 = vmatprep.subr.bf16.mxu0 0
        %1154 = vmatpush1.bf16.msra.mxu0 0
        %1155 = vmatprep.subr.bf16.mxu0 0
        %1156 = vmatpush1.bf16.msra.mxu0 0
        %1157 = vmatprep.subr.bf16.mxu0 0
        %1158 = vmatpush1.bf16.msra.mxu0 0
        %1159 = vmatprep.subr.bf16.mxu0 0
        %1160 = vmatpush1.bf16.msra.mxu0 0
        %1161 = vmatprep.subr.bf16.mxu0 0
        %1162 = vmatpush1.bf16.msra.mxu0 0
        %1163 = vmatprep.subr.bf16.mxu0 0
        %1164 = vmatpush1.bf16.msra.mxu0 0
        %1165 = vmatprep.mubr.bf16.mxu0 0
        %1166 = vmatmul.mubr.bf16.gmra.mrb[0].mxu0 %v1128
        %v1167 = vpop.f32.mrb[0].mxu0
        %v1168 = vadd.f32 0.0, %v1167
        %v1169 = vpop.f32.mrb[0].mxu0
        %v1170 = vpop.f32.mrb[0].mxu0
        %v1171 = vpop.f32.mrb[0].mxu0
        %1172 = vdwg.mxu0
        %1174 = vrot.lane.b32.xlu0 %v1024, 64
        %v1175 = vpop.permute.xlu0 %1174
        %v1177 = vsel %vm779, %v1020, 0
        %v1180 = vsel %vm1031, %v1175, 0
        %1182 = vmatprep.subr.bf16.mxu0 0
        %1183 = vmatpush1.bf16.msra.mxu0 %v1180
        %1184 = vmatprep.subr.bf16.mxu0 0
        %1185 = vmatpush1.bf16.msra.mxu0 0
        %1186 = vmatprep.subr.bf16.mxu0 0
        %1187 = vmatpush1.bf16.msra.mxu0 0
        %1188 = vmatprep.subr.bf16.mxu0 0
        %1189 = vmatpush1.bf16.msra.mxu0 0
        %1190 = vmatprep.subr.bf16.mxu0 0
        %1191 = vmatpush1.bf16.msra.mxu0 0
        %1192 = vmatprep.subr.bf16.mxu0 0
        %1193 = vmatpush1.bf16.msra.mxu0 0
        %1194 = vmatprep.subr.bf16.mxu0 0
        %1195 = vmatpush1.bf16.msra.mxu0 0
        %1196 = vmatprep.subr.bf16.mxu0 0
        %1197 = vmatpush1.bf16.msra.mxu0 0
        %1198 = vmatprep.subr.bf16.mxu0 0
        %1199 = vmatpush1.bf16.msra.mxu0 0
        %1200 = vmatprep.subr.bf16.mxu0 0
        %1201 = vmatpush1.bf16.msra.mxu0 0
        %1202 = vmatprep.subr.bf16.mxu0 0
        %1203 = vmatpush1.bf16.msra.mxu0 0
        %1204 = vmatprep.subr.bf16.mxu0 0
        %1205 = vmatpush1.bf16.msra.mxu0 0
        %1206 = vmatprep.subr.bf16.mxu0 0
        %1207 = vmatpush1.bf16.msra.mxu0 0
        %1208 = vmatprep.subr.bf16.mxu0 0
        %1209 = vmatpush1.bf16.msra.mxu0 0
        %1210 = vmatprep.subr.bf16.mxu0 0
        %1211 = vmatpush1.bf16.msra.mxu0 0
        %1212 = vmatprep.subr.bf16.mxu0 0
        %1213 = vmatpush1.bf16.msra.mxu0 0
        %1214 = vmatprep.mubr.bf16.mxu0 0
        %1215 = vmatmul.mubr.bf16.gmra.mrb[0].mxu0 %v1177
        %v1216 = vpop.f32.mrb[0].mxu0
        %v1217 = vadd.f32 0.0, %v1216
        %v1218 = vpop.f32.mrb[0].mxu0
        %v1219 = vpop.f32.mrb[0].mxu0
        %v1220 = vpop.f32.mrb[0].mxu0
        %1221 = vdwg.mxu0
        %1223 = vrot.lane.b32.xlu0 %v1119, 8
        %v1224 = vpop.permute.xlu0 %1223
        %1227 = vrot.lane.b32.xlu0 %v1168, 16
        %v1228 = vpop.permute.xlu0 %1227
        %1231 = vrot.lane.b32.xlu0 %v1217, 24
        %v1232 = vpop.permute.xlu0 %1231
        %v1234 = vsel %vm779, %v1070, %v1224
        %vm1235 = vcmask 130048
        %v1236 = vsel %vm1235, %v1234, %v1228
        %vm1237 = vcmask 195584
        %v1238 = vsel %vm1237, %v1236, %v1232
        %v1239 = vpack.c.bf16 %v1238, %v1238
        %v1244 = vunpack.c.l.b16 %v525
        %v1245 = vunpack.c.l.b16 %v526
        %v1246 = vunpack.c.l.b16 %v527
        %v1247 = vunpack.c.l.b16 %v528
        %v1248 = vpack.c.b16 %v1245, %v1244
        %v1249 = vpack.c.b16 %v1247, %v1246
        %v1253 = vsel %vm558, %v1239, 0
        %1255 = vmatprep.subr.bf16.mxu0 0
        %1256 = vmatpush1.bf16.msra.mxu0 %v1248
        %1257 = vmatprep.subr.bf16.mxu0 0
        %1258 = vmatpush1.bf16.msra.mxu0 %v1249
        %1259 = vmatprep.subr.bf16.mxu0 0
        %1260 = vmatpush1.bf16.msra.mxu0 0
        %1261 = vmatprep.subr.bf16.mxu0 0
        %1262 = vmatpush1.bf16.msra.mxu0 0
        %1263 = vmatprep.subr.bf16.mxu0 0
        %1264 = vmatpush1.bf16.msra.mxu0 0
        %1265 = vmatprep.subr.bf16.mxu0 0
        %1266 = vmatpush1.bf16.msra.mxu0 0
        %1267 = vmatprep.subr.bf16.mxu0 0
        %1268 = vmatpush1.bf16.msra.mxu0 0
        %1269 = vmatprep.subr.bf16.mxu0 0
        %1270 = vmatpush1.bf16.msra.mxu0 0
        %1271 = vmatprep.subr.bf16.mxu0 0
        %1272 = vmatpush1.bf16.msra.mxu0 0
        %1273 = vmatprep.subr.bf16.mxu0 0
        %1274 = vmatpush1.bf16.msra.mxu0 0
        %1275 = vmatprep.subr.bf16.mxu0 0
        %1276 = vmatpush1.bf16.msra.mxu0 0
        %1277 = vmatprep.subr.bf16.mxu0 0
        %1278 = vmatpush1.bf16.msra.mxu0 0
        %1279 = vmatprep.subr.bf16.mxu0 0
        %1280 = vmatpush1.bf16.msra.mxu0 0
        %1281 = vmatprep.subr.bf16.mxu0 0
        %1282 = vmatpush1.bf16.msra.mxu0 0
        %1283 = vmatprep.subr.bf16.mxu0 0
        %1284 = vmatpush1.bf16.msra.mxu0 0
        %1285 = vmatprep.subr.bf16.mxu0 0
        %1286 = vmatpush1.bf16.msra.mxu0 0
        %1287 = vmatprep.mubr.bf16.mxu0 0
        %1288 = vmatmul.mubr.bf16.gmra.mrb[0].mxu0 %v1253
        %v1289 = vpop.f32.mrb[0].mxu0
        %v1290 = vadd.f32 0.0, %v1289
        %v1291 = vpop.f32.mrb[0].mxu0
        %v1292 = vpop.f32.mrb[0].mxu0
        %v1293 = vpop.f32.mrb[0].mxu0
        %1294 = vdwg.mxu0
        %v1295 = vadd.f32 %v557, %v1290
        %v1297 = vlaneseq
        %v1298 = vshrl.u32 %v1297, 7
        %v1299 = vsub.s32 0, %v1298
        %v1300 = vrot.slane %v529, %v1299
        %v1302 = vadd.f32 %v1295, %v1300
        %v1303 = vsel %vm558, %v1302, 0.0
        %1304 = vadd.xlane.f32.xlu0 %v1303
        %v1305 = vpop.xlane.xlu0 %1304
        %v1306 = vmul.f32 %v1305, %v562
        %v1307 = vsub.f32 %v1302, %v1306
        %v1308 = vmul.f32 %v1307, %v1307
        %v1309 = vsel %vm558, %v1308, 0.0
        %1310 = vadd.xlane.f32.xlu0 %v1309
        %v1311 = vpop.xlane.xlu0 %1310
        %v1312 = vmul.f32 %v1311, %v562
        %v1313 = vadd.f32 %v1312, 1e-05
        %v1314 = vrsqrt.pop %v1313
        %v1315 = vmul.f32 %v1307, %v1314
        %v1317 = vlaneseq
        %v1318 = vshrl.u32 %v1317, 7
        %v1319 = vsub.s32 0, %v1318
        %v1320 = vrot.slane %v530, %v1319
        %v1322 = vmul.f32 %v1315, %v1320
        %v1324 = vlaneseq
        %v1325 = vshrl.u32 %v1324, 7
        %v1326 = vsub.s32 0, %v1325
        %v1327 = vrot.slane %v531, %v1326
        %v1329 = vadd.f32 %v1322, %v1327
        %v1330 = vpack.c.bf16 %v1329, %v1329
        %v1332 = vlaneseq
        %v1333 = vshrl.u32 %v1332, 7
        %v1334 = vsub.s32 0, %v1333
        %v1335 = vrot.slane %v536, %v1334
        %v1341 = vunpack.c.l.b16 %v532
        %v1342 = vunpack.c.l.b16 %v533
        %v1343 = vunpack.c.l.b16 %v534
        %v1344 = vunpack.c.l.b16 %v535
        %v1345 = vpack.c.b16 %v1342, %v1341
        %v1346 = vpack.c.b16 %v1344, %v1343
        %v1350 = vsel %vm558, %v1330, 0
        %1352 = vmatprep.subr.bf16.mxu0 0
        %1353 = vmatpush1.bf16.msra.mxu0 %v1345
        %1354 = vmatprep.subr.bf16.mxu0 0
        %1355 = vmatpush1.bf16.msra.mxu0 %v1346
        %1356 = vmatprep.subr.bf16.mxu0 0
        %1357 = vmatpush1.bf16.msra.mxu0 0
        %1358 = vmatprep.subr.bf16.mxu0 0
        %1359 = vmatpush1.bf16.msra.mxu0 0
        %1360 = vmatprep.subr.bf16.mxu0 0
        %1361 = vmatpush1.bf16.msra.mxu0 0
        %1362 = vmatprep.subr.bf16.mxu0 0
        %1363 = vmatpush1.bf16.msra.mxu0 0
        %1364 = vmatprep.subr.bf16.mxu0 0
        %1365 = vmatpush1.bf16.msra.mxu0 0
        %1366 = vmatprep.subr.bf16.mxu0 0
        %1367 = vmatpush1.bf16.msra.mxu0 0
        %1368 = vmatprep.subr.bf16.mxu0 0
        %1369 = vmatpush1.bf16.msra.mxu0 0
        %1370 = vmatprep.subr.bf16.mxu0 0
        %1371 = vmatpush1.bf16.msra.mxu0 0
        %1372 = vmatprep.subr.bf16.mxu0 0
        %1373 = vmatpush1.bf16.msra.mxu0 0
        %1374 = vmatprep.subr.bf16.mxu0 0
        %1375 = vmatpush1.bf16.msra.mxu0 0
        %1376 = vmatprep.subr.bf16.mxu0 0
        %1377 = vmatpush1.bf16.msra.mxu0 0
        %1378 = vmatprep.subr.bf16.mxu0 0
        %1379 = vmatpush1.bf16.msra.mxu0 0
        %1380 = vmatprep.subr.bf16.mxu0 0
        %1381 = vmatpush1.bf16.msra.mxu0 0
        %1382 = vmatprep.subr.bf16.mxu0 0
        %1383 = vmatpush1.bf16.msra.mxu0 0
        %1384 = vmatprep.mubr.bf16.mxu0 0
        %1385 = vmatmul.mubr.bf16.gmra.mrb[0].mxu0 %v1350
        %v1386 = vpop.f32.mrb[0].mxu0
        %v1387 = vadd.f32 %v1335, %v1386
        %v1388 = vpop.f32.mrb[0].mxu0
        %v1389 = vpop.f32.mrb[0].mxu0
        %v1390 = vpop.f32.mrb[0].mxu0
        %1391 = vdwg.mxu0
        %v1392 = vmul.f32 %v1387, 0.5
        %v1393 = vmul.f32 %v1387, 0.70710677
        %v1394 = vand.u32 2147483647, %v1393
        %v1395 = vmul.f32 %v1394, 0.3275911
        %v1396 = vadd.f32 %v1395, 1.0
        %v1397 = vrcp.pop %v1396
        %v1398 = vmul.f32 1.0, %v1397
        %v1399 = vmul.f32 %v1398, 1.0614054
        %v1400 = vadd.f32 %v1399, -1.4531521
        %v1401 = vmul.f32 %v1398, %v1400
        %v1402 = vadd.f32 %v1401, 1.4214138
        %v1403 = vmul.f32 %v1398, %v1402
        %v1404 = vadd.f32 %v1403, -0.28449672
        %v1405 = vmul.f32 %v1398, %v1404
        %v1406 = vadd.f32 %v1405, 0.2548296
        %v1407 = vmul.f32 %v1398, %v1406
        %v1408 = vsub.f32 0.0, %v1394
        %v1409 = vmul.f32 %v1408, %v1394
        %v1410 = vmul.f32 %v1409, 1.442695
        %v1411 = vpow.pop %v1410
        %v1412 = vmul.f32 %v1407, %v1411
        %v1413 = vsub.f32 1.0, %v1412
        %vm1414 = vcmp.ge.f32.partialorder %v1393, 0.0
        %v1415 = vsub.f32 0.0, %v1413
        %v1416 = vsel %vm1414, %v1413, %v1415
        %v1417 = vadd.f32 %v1416, 1.0
        %v1418 = vmul.f32 %v1392, %v1417
        %v1419 = vpack.c.bf16 %v1418, %v1418
        %v1421 = vlaneseq
        %v1422 = vshrl.u32 %v1421, 7
        %v1423 = vsub.s32 0, %v1422
        %v1424 = vrot.slane %v553, %v1423
        %v1442 = vunpack.c.l.b16 %v537
        %v1443 = vunpack.c.l.b16 %v538
        %v1444 = vunpack.c.l.b16 %v539
        %v1445 = vunpack.c.l.b16 %v540
        %v1446 = vunpack.c.l.b16 %v541
        %v1447 = vunpack.c.l.b16 %v542
        %v1448 = vunpack.c.l.b16 %v543
        %v1449 = vunpack.c.l.b16 %v544
        %v1450 = vunpack.c.l.b16 %v545
        %v1451 = vunpack.c.l.b16 %v546
        %v1452 = vunpack.c.l.b16 %v547
        %v1453 = vunpack.c.l.b16 %v548
        %v1454 = vunpack.c.l.b16 %v549
        %v1455 = vunpack.c.l.b16 %v550
        %v1456 = vunpack.c.l.b16 %v551
        %v1457 = vunpack.c.l.b16 %v552
        %v1458 = vpack.c.b16 %v1443, %v1442
        %v1459 = vpack.c.b16 %v1445, %v1444
        %v1460 = vpack.c.b16 %v1447, %v1446
        %v1461 = vpack.c.b16 %v1449, %v1448
        %v1462 = vpack.c.b16 %v1451, %v1450
        %v1463 = vpack.c.b16 %v1453, %v1452
        %v1464 = vpack.c.b16 %v1455, %v1454
        %v1465 = vpack.c.b16 %v1457, %v1456
        %1474 = vmatprep.subr.bf16.mxu0 0
        %1475 = vmatpush1.bf16.msra.mxu0 %v1458
        %1476 = vmatprep.subr.bf16.mxu0 0
        %1477 = vmatpush1.bf16.msra.mxu0 %v1459
        %1478 = vmatprep.subr.bf16.mxu0 0
        %1479 = vmatpush1.bf16.msra.mxu0 %v1460
        %1480 = vmatprep.subr.bf16.mxu0 0
        %1481 = vmatpush1.bf16.msra.mxu0 %v1461
        %1482 = vmatprep.subr.bf16.mxu0 0
        %1483 = vmatpush1.bf16.msra.mxu0 %v1462
        %1484 = vmatprep.subr.bf16.mxu0 0
        %1485 = vmatpush1.bf16.msra.mxu0 %v1463
        %1486 = vmatprep.subr.bf16.mxu0 0
        %1487 = vmatpush1.bf16.msra.mxu0 %v1464
        %1488 = vmatprep.subr.bf16.mxu0 0
        %1489 = vmatpush1.bf16.msra.mxu0 %v1465
        %1490 = vmatprep.subr.bf16.mxu0 0
        %1491 = vmatpush1.bf16.msra.mxu0 0
        %1492 = vmatprep.subr.bf16.mxu0 0
        %1493 = vmatpush1.bf16.msra.mxu0 0
        %1494 = vmatprep.subr.bf16.mxu0 0
        %1495 = vmatpush1.bf16.msra.mxu0 0
        %1496 = vmatprep.subr.bf16.mxu0 0
        %1497 = vmatpush1.bf16.msra.mxu0 0
        %1498 = vmatprep.subr.bf16.mxu0 0
        %1499 = vmatpush1.bf16.msra.mxu0 0
        %1500 = vmatprep.subr.bf16.mxu0 0
        %1501 = vmatpush1.bf16.msra.mxu0 0
        %1502 = vmatprep.subr.bf16.mxu0 0
        %1503 = vmatpush1.bf16.msra.mxu0 0
        %1504 = vmatprep.subr.bf16.mxu0 0
        %1505 = vmatpush1.bf16.msra.mxu0 0
        %1506 = vmatprep.mubr.bf16.mxu0 0
        %1507 = vmatmul.mubr.bf16.gmra.mrb[0].mxu0 %v1419
        %v1508 = vpop.f32.mrb[0].mxu0
        %v1509 = vadd.f32 %v1424, %v1508
        %v1510 = vpop.f32.mrb[0].mxu0
        %v1511 = vpop.f32.mrb[0].mxu0
        %v1512 = vpop.f32.mrb[0].mxu0
        %1513 = vdwg.mxu0
        %v1514 = vadd.f32 %v1302, %v1509
        %1515 = vst.msk [vmem:[%s512] sm:$0xff] %vm558, %v1514
        %s1516 = sand.u32 %s379, 1
        %s1517 = scalar_lea.sflag [#allocation3], %s1516
        %s1518 = sand.u32 %s379, 1
        %s1519 = smul.addr %s1518, 8
        %s1520 = scalar_lea.vmem [#allocation2], %s1519
        // Predicated region
        $region85: #{tpu_custom_call.1} parent=83 // pred_check
          %p1521 = pneg %p389
        $region86: #{tpu_custom_call.1} parent=83 // pred_check_branch
          %1523 = sbr.rel (%p1521) target = $region88
        $region87: #{tpu_custom_call.1} parent=83 // pred_region
          %s1525 = ssub.s32 128, 128
          %1526 = vsyncadd %s1517, %s1525
          %s1527 = smul.addr %s30, 128
          %s1528 = scalar_lea.hbm %s16, %s1527
          %s1530 = sshll.u32 %s1520, 4
          %s1531 = int_to_ptr.vmem [resolvable:$true] %s1530
          %1533 = dma.vmem_to_hbm [thread:$0]  %s1531, 128, %s1528, %s1517
        $region88: #{tpu_custom_call.1} parent=83 // pred_fallthru
          _
      $region84: #{tpu_custom_call.1} parent=5 // pred_fallthru
        _
      %p1534 = scmp.le.s32.totalorder 2, %s25
      // Predicated region
      $region89: #{tpu_custom_call.1} parent=5 // pred_check
        %p1535 = pneg %p1534
      $region90: #{tpu_custom_call.1} parent=5 // pred_check_branch
        %1537 = sbr.rel (%p1535) target = $region92
      $region91: #{tpu_custom_call.1} parent=5 // pred_region
        %s1538 = ssub.s32 %s25, 2
        // Predicated region
        $region93: #{tpu_custom_call.1} parent=91 // pred_check
          %p1539 = pneg %p395
        $region94: #{tpu_custom_call.1} parent=91 // pred_check_branch
          %1541 = sbr.rel (%p1539) target = $region96
        $region95: #{tpu_custom_call.1} parent=91 // pred_region
          %s1542 = sand.u32 %s380, 1
          %s1543 = scalar_lea.sflag [#allocation3], %s1542
          %s1544 = sand.u32 %s380, 1
          %s1545 = smul.addr %s1544, 8
          %s1546 = scalar_lea.vmem [#allocation2], %s1545
          %1547 = dma.done %s1543, 128
        $region96: #{tpu_custom_call.1} parent=91 // pred_fallthru
          _
      $region92: #{tpu_custom_call.1} parent=5 // pred_fallthru
        _
    $region6: #{tpu_custom_call.1} parent=1 // loop_footer
      %s29 = sadd.s32 1, %s25
    $region7: #{tpu_custom_call.1} parent=1 // loop_footer_branch
      %24 = sbr.rel target = $region3
    $region8: #{tpu_custom_call.1} parent=1 // loop_exit
      _
    %1548 = vsyncpa [#allocation3], 1
    %s1549 = scalar_lea.sflag [#allocation3], 1
    %1550 = vsyncpa %s1549, 1

</llo_original>
